<compile_context>
chip_gen: v6e
topology: v6e:2x2x1
jax: 0.10.0
libtpu: 0.0.40
codegen_flags: <defaults>
</compile_context>

<pallas_src>
import functools

import jax
import jax.numpy as jnp
from jax.experimental import pallas as pl
from jax.experimental.pallas import tpu as pltpu


# ---------------------------------------------------------------------------
# Fused tower kernel: one grid step == one batch element.
# ---------------------------------------------------------------------------
def _tower_kernel(x_ref, xt_ref, mask_ref, w_in_ref, b_in_ref, w_stack_ref,
                  w0t_ref, scale_ref, shift_ref, w_out_ref, b_out_ref, o_ref,
                  *, C, k, Wp, Npad, ext, dilates, dot_dtype):
    f32 = jnp.float32
    mask = mask_ref[...]                                   # (1, Npad) 0/1 valid-pixel mask

    def im2col(u, d):
        # u: (C, Npad) flat padded activation (halo positions are zero).
        # Every dilated tap is a contiguous static lane-slice of the zero-extended
        # flat array -> no sublane-merging reshape, no relayout copy per tap.
        p = (k - 1) * d // 2
        z = jnp.zeros((C, ext), f32)
        ue = jnp.concatenate([z, u, z], axis=1)            # (C, Npad + 2*ext)
        taps = []
        for ki in range(k):
            for kj in range(k):
                off = ext + (ki * d - p) * Wp + (kj * d - p)
                taps.append(jax.lax.slice_in_dim(ue, off, off + Npad, axis=1))
        return jnp.concatenate(taps, axis=0)               # (k*k*C, Npad)

    def conv(u, w_pack, d):
        # Single long-K MXU dot per conv: (C, k*k*C) @ (k*k*C, Npad).
        slab = im2col(u, d)
        return jnp.dot(w_pack.astype(dot_dtype), slab.astype(dot_dtype),
                       preferred_element_type=f32)

    # Input 1x1 conv (per-pixel matmul) on x and on its (l, n)-transpose; zero the
    # padding halo so the dilated convs see proper 'same' zero padding.
    w_in = w_in_ref[...].astype(dot_dtype)
    b_in = b_in_ref[...]
    y0 = (jnp.dot(w_in, x_ref[...].astype(dot_dtype),
                  preferred_element_type=f32) + b_in) * mask
    y0t = (jnp.dot(w_in, xt_ref[...].astype(dot_dtype),
                   preferred_element_type=f32) + b_in) * mask

    # Convblock 0: input not symmetric -> exact dual-conv identity
    #   S(BN(conv_W(y0)) + y0)
    #     = scale*(conv_W(y0) + conv_{Wt}(y0^T))/2 + shift + (y0 + y0^T)/2.
    ca = conv(y0, w_stack_ref[0], dilates[0])
    cb = conv(y0t, w0t_ref[...], dilates[0])
    u = jnp.maximum(0.5 * (ca + cb) * scale_ref[0] + shift_ref[0]
                    + 0.5 * (y0 + y0t), 0.0) * mask

    # Convblocks 1..: input already symmetric -> symmetric() folded into host-side
    # tap-symmetrized weights:  u = relu(BN(conv_{(W+Wt)/2}(u)) + u).
    for i in range(1, len(dilates)):
        c = conv(u, w_stack_ref[i], dilates[i])
        u = jnp.maximum(c * scale_ref[i] + shift_ref[i] + u, 0.0) * mask

    # Output 1x1 conv; emit the full lane-dense map, crop happens in the wrapper.
    o_ref[...] = jnp.dot(w_out_ref[...].astype(dot_dtype), u.astype(dot_dtype),
                         preferred_element_type=f32) + b_out_ref[...]


# ---------------------------------------------------------------------------
# Wrapper: host-side weight/layout prep + pallas_call + crop.
# ---------------------------------------------------------------------------
def dilated_tower_forward(x, params, *, crop, kernel_size, dot_dtype=jnp.float32):
    """params:
         w_in (E, C), b_in (C,),
         blocks = [(w (k*k, Cin, Cout), scale (C,), shift (C,), dilate)],
         w_out (C, C), b_out (C,).
       torch mapping: Conv2d 1x1 weight (C,E,1,1) -> w_in = w[:, :, 0, 0].T;
         KxK weight (Cout,Cin,k,k) -> w = w.permute(2,3,1,0).reshape(k*k, Cin, Cout);
         eval BN folded: scale = gamma/sqrt(var+eps), shift = (conv_bias-mean)*scale+beta."""
    assert crop >= 1, "crop must be >= 1 (crop=0 would return an empty tensor)"
    B, L, N, E = x.shape
    assert L == N, "symmetric() requires square (l, n) spatial dims"
    k = kernel_size
    blocks = params["blocks"]
    nb = len(blocks)
    C = params["w_in"].shape[1]
    H = W = L
    dilates = tuple(int(d) for (_, _, _, d) in blocks)
    PM = (k - 1) * max(dilates) // 2          # halo = exactly pmax (no sublane rounding)
    Hp, Wp = H + 2 * PM, W + 2 * PM
    Npad = Hp * Wp
    ext = PM * (Wp + 1)                       # worst-case |tap shift| in flat-index units

    def pack(w4):                              # (k, k, Cin, Cout) -> (Cout, k*k*Cin)
        return jnp.transpose(w4, (3, 0, 1, 2)).reshape(C, k * k * C)

    # Host-side (one-time) weight prep:
    #  * block 0 also gets its tap-transposed kernel (dual-conv path),
    #  * blocks >= 1 get tap-symmetrized kernels (W + Wt)/2.
    w_list, scale_list, shift_list = [], [], []
    w0t = None
    for i, (kw, scale, shift, _) in enumerate(blocks):
        w4 = kw.reshape(k, k, C, C)
        w4t = jnp.transpose(w4, (1, 0, 2, 3))
        if i == 0:
            w_list.append(pack(w4))
            w0t = pack(w4t)
        else:
            w_list.append(pack(0.5 * (w4 + w4t)))
        scale_list.append(scale.reshape(C, 1))
        shift_list.append(shift.reshape(C, 1))
    w_stack = jnp.stack(w_list)               # (nb, C, k*k*C)
    scale_stack = jnp.stack(scale_list)       # (nb, C, 1)
    shift_stack = jnp.stack(shift_list)       # (nb, C, 1)

    # Channels-first, zero-padded, flattened (lane-dense) input + its (l,n) transpose.
    pad = ((0, 0), (0, 0), (PM, PM), (PM, PM))
    x_pad = jnp.pad(jnp.transpose(x, (0, 3, 1, 2)), pad).reshape(B, E, Npad)
    xt_pad = jnp.pad(jnp.transpose(x, (0, 3, 2, 1)), pad).reshape(B, E, Npad)

    ii = (jnp.arange(Hp) >= PM) & (jnp.arange(Hp) < PM + H)
    jj = (jnp.arange(Wp) >= PM) & (jnp.arange(Wp) < PM + W)
    mask = (ii[:, None] & jj[None, :]).reshape(1, Npad).astype(jnp.float32)

    kern = functools.partial(_tower_kernel, C=C, k=k, Wp=Wp, Npad=Npad,
                             ext=ext, dilates=dilates, dot_dtype=dot_dtype)

    out_flat = pl.pallas_call(
        kern,
        out_shape=jax.ShapeDtypeStruct((B, C, Npad), jnp.float32),
        grid=(B,),
        in_specs=[
            pl.BlockSpec((None, E, Npad), lambda b: (b, 0, 0)),       # x (padded, chan-first)
            pl.BlockSpec((None, E, Npad), lambda b: (b, 0, 0)),       # x^T (padded, chan-first)
            pl.BlockSpec((1, Npad), lambda b: (0, 0)),                # valid-pixel mask
            pl.BlockSpec((C, E), lambda b: (0, 0)),                   # w_in^T
            pl.BlockSpec((C, 1), lambda b: (0, 0)),                   # b_in
            pl.BlockSpec((nb, C, k * k * C), lambda b: (0, 0, 0)),    # packed conv weights
            pl.BlockSpec((C, k * k * C), lambda b: (0, 0)),           # block-0 transposed taps
            pl.BlockSpec((nb, C, 1), lambda b: (0, 0, 0)),            # folded BN scales
            pl.BlockSpec((nb, C, 1), lambda b: (0, 0, 0)),            # folded BN shifts
            pl.BlockSpec((C, C), lambda b: (0, 0)),                   # w_out^T
            pl.BlockSpec((C, 1), lambda b: (0, 0)),                   # b_out
        ],
        out_specs=pl.BlockSpec((None, C, Npad), lambda b: (b, 0, 0)),
        compiler_params=pltpu.CompilerParams(
            dimension_semantics=("parallel",),
            vmem_limit_bytes=32 * 1024 * 1024),
    )(x_pad, xt_pad, mask,
      params["w_in"].T, params["b_in"].reshape(C, 1),
      w_stack, w0t, scale_stack, shift_stack,
      params["w_out"].T, params["b_out"].reshape(C, 1))

    # Crop + back to (b, l, n, d) with XLA at the boundary (lane-dense store in-kernel).
    out = out_flat.reshape(B, C, Hp, Wp)[
        :, :, PM + crop:PM + H - crop, PM + crop:PM + W - crop]
    return jnp.transpose(out, (0, 2, 3, 1))


# ---------------------------------------------------------------------------
# Pure-JAX reference (explicit transpose symmetrize) for self-checking.
# ---------------------------------------------------------------------------
def dilated_tower_ref(x, params, *, crop, kernel_size):
    y = x @ params["w_in"] + params["b_in"]
    k = kernel_size
    for (w, scale, shift, d) in params["blocks"]:
        C = w.shape[1]
        w_hwio = w.reshape(k, k, C, C)
        pad = (k - 1) * d // 2
        conv = jax.lax.conv_general_dilated(
            y, w_hwio, window_strides=(1, 1),
            padding=[(pad, pad), (pad, pad)], rhs_dilation=(d, d),
            dimension_numbers=("NHWC", "HWIO", "NHWC"))
        z = conv * scale + shift + y
        z = (z + jnp.transpose(z, (0, 2, 1, 3))) * 0.5
        y = jnp.maximum(z, 0.0)
    y = y @ params["w_out"] + params["b_out"]
    return y[:, crop:-crop, crop:-crop, :]


if __name__ == "__main__":
    B, L, N = 2, 16, 16
    embed_dim, in_channel = 16, 8
    kernel_size, dilate_rate = 3, 2   # small constructor args (defaults are 9 / 4)
    crop = 2
    eps = 1e-5

    keys = iter(jax.random.split(jax.random.PRNGKey(0), 64))

    x = jax.random.normal(next(keys), (B, L, N, embed_dim), jnp.float32)

    # deterministic synthetic parameters
    w_in = 0.2 * jax.random.normal(next(keys), (embed_dim, in_channel), jnp.float32)
    b_in = 0.1 * jax.random.normal(next(keys), (in_channel,), jnp.float32)

    blocks = []
    for i in range(dilate_rate + 1):
        d = 2 ** i
        kw = 0.05 * jax.random.normal(
            next(keys), (kernel_size * kernel_size, in_channel, in_channel), jnp.float32)
        kb = 0.05 * jax.random.normal(next(keys), (in_channel,), jnp.float32)
        gamma = 1.0 + 0.1 * jax.random.normal(next(keys), (in_channel,), jnp.float32)
        beta = 0.1 * jax.random.normal(next(keys), (in_channel,), jnp.float32)
        rmean = 0.05 * jax.random.normal(next(keys), (in_channel,), jnp.float32)
        rvar = 1.0 + 0.1 * jax.random.uniform(next(keys), (in_channel,), jnp.float32)
        scale = gamma / jnp.sqrt(rvar + eps)          # folded eval-mode BatchNorm
        shift = (kb - rmean) * scale + beta           # folded conv bias + BN shift
        blocks.append((kw, scale, shift, d))

    w_out = 0.2 * jax.random.normal(next(keys), (in_channel, in_channel), jnp.float32)
    b_out = 0.1 * jax.random.normal(next(keys), (in_channel,), jnp.float32)

    params = dict(w_in=w_in, b_in=b_in, blocks=blocks, w_out=w_out, b_out=b_out)

    out = dilated_tower_forward(x, params, crop=crop, kernel_size=kernel_size)
    out = jax.block_until_ready(out)

    ref = dilated_tower_ref(x, params, crop=crop, kernel_size=kernel_size)
    assert out.shape == (B, L - 2 * crop, N - 2 * crop, in_channel), out.shape
    err = float(jnp.max(jnp.abs(out - ref)))
    assert err < 1e-3, f"max abs error {err}"
    print("KERNEL_OK")
</pallas_src>

<mosaic_0001>
module attributes {stable_mosaic.version = 11 : i64} {
  func.func @_tower_kernel(%arg0: i32, %arg1: memref<1x16x576xf32, #tpu.memory_space<vmem>>, %arg2: memref<1x16x576xf32, #tpu.memory_space<vmem>>, %arg3: memref<1x576xf32, #tpu.memory_space<vmem>>, %arg4: memref<8x16xf32, #tpu.memory_space<vmem>>, %arg5: memref<8x1xf32, #tpu.memory_space<vmem>>, %arg6: memref<3x8x72xf32, #tpu.memory_space<vmem>>, %arg7: memref<8x72xf32, #tpu.memory_space<vmem>>, %arg8: memref<3x8x1xf32, #tpu.memory_space<vmem>>, %arg9: memref<3x8x1xf32, #tpu.memory_space<vmem>>, %arg10: memref<8x8xf32, #tpu.memory_space<vmem>>, %arg11: memref<8x1xf32, #tpu.memory_space<vmem>>, %arg12: memref<1x8x576xf32, #tpu.memory_space<vmem>>) attributes {dimension_semantics = [#tpu.dimension_semantics<parallel>], iteration_bounds = array<i64: 2>, scalar_prefetch = 0 : i64, scratch_operands = 0 : i64, tpu.core_type = #tpu.core_type<tc>, window_params = [{transform_indices = @transform_0, window_bounds = array<i64: 1, 16, 576>}, {transform_indices = @transform_1, window_bounds = array<i64: 1, 16, 576>}, {pipeline_mode = #tpu.pipeline_mode<synchronous>, transform_indices = @transform_2, window_bounds = array<i64: 1, 576>}, {pipeline_mode = #tpu.pipeline_mode<synchronous>, transform_indices = @transform_3, window_bounds = array<i64: 8, 16>}, {pipeline_mode = #tpu.pipeline_mode<synchronous>, transform_indices = @transform_4, window_bounds = array<i64: 8, 1>}, {pipeline_mode = #tpu.pipeline_mode<synchronous>, transform_indices = @transform_5, window_bounds = array<i64: 3, 8, 72>}, {pipeline_mode = #tpu.pipeline_mode<synchronous>, transform_indices = @transform_6, window_bounds = array<i64: 8, 72>}, {pipeline_mode = #tpu.pipeline_mode<synchronous>, transform_indices = @transform_7, window_bounds = array<i64: 3, 8, 1>}, {pipeline_mode = #tpu.pipeline_mode<synchronous>, transform_indices = @transform_8, window_bounds = array<i64: 3, 8, 1>}, {pipeline_mode = #tpu.pipeline_mode<synchronous>, transform_indices = @transform_9, window_bounds = array<i64: 8, 8>}, {pipeline_mode = #tpu.pipeline_mode<synchronous>, transform_indices = @transform_10, window_bounds = array<i64: 8, 1>}, {transform_indices = @transform_11, window_bounds = array<i64: 1, 8, 576>}]} {
    %c0 = arith.constant 0 : index
    %c0_0 = arith.constant 0 : index
    %0 = vector.load %arg3[%c0, %c0_0] : memref<1x576xf32, #tpu.memory_space<vmem>>, vector<1x576xf32>
    %c0_1 = arith.constant 0 : index
    %c0_2 = arith.constant 0 : index
    %1 = vector.load %arg4[%c0_1, %c0_2] : memref<8x16xf32, #tpu.memory_space<vmem>>, vector<8x16xf32>
    %c0_3 = arith.constant 0 : index
    %c0_4 = arith.constant 0 : index
    %2 = vector.load %arg5[%c0_3, %c0_4] : memref<8x1xf32, #tpu.memory_space<vmem>>, vector<8x1xf32>
    %c0_5 = arith.constant 0 : index
    %c0_6 = arith.constant 0 : index
    %c0_7 = arith.constant 0 : index
    %3 = vector.load %arg1[%c0_5, %c0_6, %c0_7] : memref<1x16x576xf32, #tpu.memory_space<vmem>>, vector<1x16x576xf32>
    %4 = vector.shape_cast %3 : vector<1x16x576xf32> to vector<16x576xf32>
    %cst = arith.constant dense<0.000000e+00> : vector<8x576xf32>
    %5 = tpu.matmul %1, %4, %cst {dimension_numbers = #tpu.dot_dimension_numbers<[1], [0], [0], [1], [0, 0, 1, 1], [], []>} : vector<8x16xf32>, vector<16x576xf32>, vector<8x576xf32> -> vector<8x576xf32>
    %6 = vector.broadcast %2 : vector<8x1xf32> to vector<8x576xf32>
    %7 = arith.addf %5, %6 : vector<8x576xf32>
    %8 = vector.broadcast %0 : vector<1x576xf32> to vector<8x576xf32>
    %9 = arith.mulf %7, %8 : vector<8x576xf32>
    %c0_8 = arith.constant 0 : index
    %c0_9 = arith.constant 0 : index
    %c0_10 = arith.constant 0 : index
    %10 = vector.load %arg2[%c0_8, %c0_9, %c0_10] : memref<1x16x576xf32, #tpu.memory_space<vmem>>, vector<1x16x576xf32>
    %11 = vector.shape_cast %10 : vector<1x16x576xf32> to vector<16x576xf32>
    %cst_11 = arith.constant dense<0.000000e+00> : vector<8x576xf32>
    %12 = tpu.matmul %1, %11, %cst_11 {dimension_numbers = #tpu.dot_dimension_numbers<[1], [0], [0], [1], [0, 0, 1, 1], [], []>} : vector<8x16xf32>, vector<16x576xf32>, vector<8x576xf32> -> vector<8x576xf32>
    %13 = vector.broadcast %2 : vector<8x1xf32> to vector<8x576xf32>
    %14 = arith.addf %12, %13 : vector<8x576xf32>
    %15 = vector.broadcast %0 : vector<1x576xf32> to vector<8x576xf32>
    %16 = arith.mulf %14, %15 : vector<8x576xf32>
    %c0_12 = arith.constant 0 : index
    %c0_13 = arith.constant 0 : index
    %c0_14 = arith.constant 0 : index
    %17 = vector.load %arg6[%c0_12, %c0_13, %c0_14] : memref<3x8x72xf32, #tpu.memory_space<vmem>>, vector<1x8x72xf32>
    %18 = vector.shape_cast %17 : vector<1x8x72xf32> to vector<8x72xf32>
    %cst_15 = arith.constant 0.000000e+00 : f32
    %19 = vector.broadcast %cst_15 : f32 to vector<8x100xf32>
    %20 = tpu.concatenate %19, %9, %19 in 1 : vector<8x100xf32>, vector<8x576xf32>, vector<8x100xf32> -> vector<8x776xf32>
    %21 = vector.extract_strided_slice %20 {offsets = [0, 75], sizes = [8, 576], strides = [1, 1]} : vector<8x776xf32> to vector<8x576xf32>
    %22 = vector.extract_strided_slice %20 {offsets = [0, 76], sizes = [8, 576], strides = [1, 1]} : vector<8x776xf32> to vector<8x576xf32>
    %23 = vector.extract_strided_slice %20 {offsets = [0, 77], sizes = [8, 576], strides = [1, 1]} : vector<8x776xf32> to vector<8x576xf32>
    %24 = vector.extract_strided_slice %20 {offsets = [0, 99], sizes = [8, 576], strides = [1, 1]} : vector<8x776xf32> to vector<8x576xf32>
    %25 = vector.extract_strided_slice %20 {offsets = [0, 100], sizes = [8, 576], strides = [1, 1]} : vector<8x776xf32> to vector<8x576xf32>
    %26 = vector.extract_strided_slice %20 {offsets = [0, 101], sizes = [8, 576], strides = [1, 1]} : vector<8x776xf32> to vector<8x576xf32>
    %27 = vector.extract_strided_slice %20 {offsets = [0, 123], sizes = [8, 576], strides = [1, 1]} : vector<8x776xf32> to vector<8x576xf32>
    %28 = vector.extract_strided_slice %20 {offsets = [0, 124], sizes = [8, 576], strides = [1, 1]} : vector<8x776xf32> to vector<8x576xf32>
    %29 = vector.extract_strided_slice %20 {offsets = [0, 125], sizes = [8, 576], strides = [1, 1]} : vector<8x776xf32> to vector<8x576xf32>
    %30 = tpu.concatenate %21, %22, %23, %24, %25, %26, %27, %28, %29 in 0 : vector<8x576xf32>, vector<8x576xf32>, vector<8x576xf32>, vector<8x576xf32>, vector<8x576xf32>, vector<8x576xf32>, vector<8x576xf32>, vector<8x576xf32>, vector<8x576xf32> -> vector<72x576xf32>
    %cst_16 = arith.constant dense<0.000000e+00> : vector<8x576xf32>
    %31 = tpu.matmul %18, %30, %cst_16 {dimension_numbers = #tpu.dot_dimension_numbers<[1], [0], [0], [1], [0, 0, 1, 1], [], []>} : vector<8x72xf32>, vector<72x576xf32>, vector<8x576xf32> -> vector<8x576xf32>
    %c0_17 = arith.constant 0 : index
    %c0_18 = arith.constant 0 : index
    %32 = vector.load %arg7[%c0_17, %c0_18] : memref<8x72xf32, #tpu.memory_space<vmem>>, vector<8x72xf32>
    %cst_19 = arith.constant 0.000000e+00 : f32
    %33 = vector.broadcast %cst_19 : f32 to vector<8x100xf32>
    %34 = tpu.concatenate %33, %16, %33 in 1 : vector<8x100xf32>, vector<8x576xf32>, vector<8x100xf32> -> vector<8x776xf32>
    %35 = vector.extract_strided_slice %34 {offsets = [0, 75], sizes = [8, 576], strides = [1, 1]} : vector<8x776xf32> to vector<8x576xf32>
    %36 = vector.extract_strided_slice %34 {offsets = [0, 76], sizes = [8, 576], strides = [1, 1]} : vector<8x776xf32> to vector<8x576xf32>
    %37 = vector.extract_strided_slice %34 {offsets = [0, 77], sizes = [8, 576], strides = [1, 1]} : vector<8x776xf32> to vector<8x576xf32>
    %38 = vector.extract_strided_slice %34 {offsets = [0, 99], sizes = [8, 576], strides = [1, 1]} : vector<8x776xf32> to vector<8x576xf32>
    %39 = vector.extract_strided_slice %34 {offsets = [0, 100], sizes = [8, 576], strides = [1, 1]} : vector<8x776xf32> to vector<8x576xf32>
    %40 = vector.extract_strided_slice %34 {offsets = [0, 101], sizes = [8, 576], strides = [1, 1]} : vector<8x776xf32> to vector<8x576xf32>
    %41 = vector.extract_strided_slice %34 {offsets = [0, 123], sizes = [8, 576], strides = [1, 1]} : vector<8x776xf32> to vector<8x576xf32>
    %42 = vector.extract_strided_slice %34 {offsets = [0, 124], sizes = [8, 576], strides = [1, 1]} : vector<8x776xf32> to vector<8x576xf32>
    %43 = vector.extract_strided_slice %34 {offsets = [0, 125], sizes = [8, 576], strides = [1, 1]} : vector<8x776xf32> to vector<8x576xf32>
    %44 = tpu.concatenate %35, %36, %37, %38, %39, %40, %41, %42, %43 in 0 : vector<8x576xf32>, vector<8x576xf32>, vector<8x576xf32>, vector<8x576xf32>, vector<8x576xf32>, vector<8x576xf32>, vector<8x576xf32>, vector<8x576xf32>, vector<8x576xf32> -> vector<72x576xf32>
    %cst_20 = arith.constant dense<0.000000e+00> : vector<8x576xf32>
    %45 = tpu.matmul %32, %44, %cst_20 {dimension_numbers = #tpu.dot_dimension_numbers<[1], [0], [0], [1], [0, 0, 1, 1], [], []>} : vector<8x72xf32>, vector<72x576xf32>, vector<8x576xf32> -> vector<8x576xf32>
    %46 = arith.addf %31, %45 : vector<8x576xf32>
    %cst_21 = arith.constant 5.000000e-01 : f32
    %47 = vector.broadcast %cst_21 : f32 to vector<8x576xf32>
    %48 = arith.mulf %47, %46 : vector<8x576xf32>
    %c0_22 = arith.constant 0 : index
    %c0_23 = arith.constant 0 : index
    %c0_24 = arith.constant 0 : index
    %49 = vector.load %arg8[%c0_22, %c0_23, %c0_24] : memref<3x8x1xf32, #tpu.memory_space<vmem>>, vector<1x8x1xf32>
    %50 = vector.shape_cast %49 : vector<1x8x1xf32> to vector<8x1xf32>
    %51 = vector.broadcast %50 : vector<8x1xf32> to vector<8x576xf32>
    %52 = arith.mulf %48, %51 : vector<8x576xf32>
    %c0_25 = arith.constant 0 : index
    %c0_26 = arith.constant 0 : index
    %c0_27 = arith.constant 0 : index
    %53 = vector.load %arg9[%c0_25, %c0_26, %c0_27] : memref<3x8x1xf32, #tpu.memory_space<vmem>>, vector<1x8x1xf32>
    %54 = vector.shape_cast %53 : vector<1x8x1xf32> to vector<8x1xf32>
    %55 = vector.broadcast %54 : vector<8x1xf32> to vector<8x576xf32>
    %56 = arith.addf %52, %55 : vector<8x576xf32>
    %57 = arith.addf %9, %16 : vector<8x576xf32>
    %cst_28 = arith.constant 5.000000e-01 : f32
    %58 = vector.broadcast %cst_28 : f32 to vector<8x576xf32>
    %59 = arith.mulf %58, %57 : vector<8x576xf32>
    %60 = arith.addf %56, %59 : vector<8x576xf32>
    %cst_29 = arith.constant 0.000000e+00 : f32
    %61 = vector.broadcast %cst_29 : f32 to vector<8x576xf32>
    %62 = arith.maximumf %60, %61 : vector<8x576xf32>
    %63 = vector.broadcast %0 : vector<1x576xf32> to vector<8x576xf32>
    %64 = arith.mulf %62, %63 : vector<8x576xf32>
    %c1 = arith.constant 1 : index
    %c0_30 = arith.constant 0 : index
    %c0_31 = arith.constant 0 : index
    %65 = vector.load %arg6[%c1, %c0_30, %c0_31] : memref<3x8x72xf32, #tpu.memory_space<vmem>>, vector<1x8x72xf32>
    %66 = vector.shape_cast %65 : vector<1x8x72xf32> to vector<8x72xf32>
    %cst_32 = arith.constant 0.000000e+00 : f32
    %67 = vector.broadcast %cst_32 : f32 to vector<8x100xf32>
    %68 = tpu.concatenate %67, %64, %67 in 1 : vector<8x100xf32>, vector<8x576xf32>, vector<8x100xf32> -> vector<8x776xf32>
    %69 = vector.extract_strided_slice %68 {offsets = [0, 50], sizes = [8, 576], strides = [1, 1]} : vector<8x776xf32> to vector<8x576xf32>
    %70 = vector.extract_strided_slice %68 {offsets = [0, 52], sizes = [8, 576], strides = [1, 1]} : vector<8x776xf32> to vector<8x576xf32>
    %71 = vector.extract_strided_slice %68 {offsets = [0, 54], sizes = [8, 576], strides = [1, 1]} : vector<8x776xf32> to vector<8x576xf32>
    %72 = vector.extract_strided_slice %68 {offsets = [0, 98], sizes = [8, 576], strides = [1, 1]} : vector<8x776xf32> to vector<8x576xf32>
    %73 = vector.extract_strided_slice %68 {offsets = [0, 100], sizes = [8, 576], strides = [1, 1]} : vector<8x776xf32> to vector<8x576xf32>
    %74 = vector.extract_strided_slice %68 {offsets = [0, 102], sizes = [8, 576], strides = [1, 1]} : vector<8x776xf32> to vector<8x576xf32>
    %75 = vector.extract_strided_slice %68 {offsets = [0, 146], sizes = [8, 576], strides = [1, 1]} : vector<8x776xf32> to vector<8x576xf32>
    %76 = vector.extract_strided_slice %68 {offsets = [0, 148], sizes = [8, 576], strides = [1, 1]} : vector<8x776xf32> to vector<8x576xf32>
    %77 = vector.extract_strided_slice %68 {offsets = [0, 150], sizes = [8, 576], strides = [1, 1]} : vector<8x776xf32> to vector<8x576xf32>
    %78 = tpu.concatenate %69, %70, %71, %72, %73, %74, %75, %76, %77 in 0 : vector<8x576xf32>, vector<8x576xf32>, vector<8x576xf32>, vector<8x576xf32>, vector<8x576xf32>, vector<8x576xf32>, vector<8x576xf32>, vector<8x576xf32>, vector<8x576xf32> -> vector<72x576xf32>
    %cst_33 = arith.constant dense<0.000000e+00> : vector<8x576xf32>
    %79 = tpu.matmul %66, %78, %cst_33 {dimension_numbers = #tpu.dot_dimension_numbers<[1], [0], [0], [1], [0, 0, 1, 1], [], []>} : vector<8x72xf32>, vector<72x576xf32>, vector<8x576xf32> -> vector<8x576xf32>
    %c1_34 = arith.constant 1 : index
    %c0_35 = arith.constant 0 : index
    %c0_36 = arith.constant 0 : index
    %80 = vector.load %arg8[%c1_34, %c0_35, %c0_36] : memref<3x8x1xf32, #tpu.memory_space<vmem>>, vector<1x8x1xf32>
    %81 = vector.shape_cast %80 : vector<1x8x1xf32> to vector<8x1xf32>
    %82 = vector.broadcast %81 : vector<8x1xf32> to vector<8x576xf32>
    %83 = arith.mulf %79, %82 : vector<8x576xf32>
    %c1_37 = arith.constant 1 : index
    %c0_38 = arith.constant 0 : index
    %c0_39 = arith.constant 0 : index
    %84 = vector.load %arg9[%c1_37, %c0_38, %c0_39] : memref<3x8x1xf32, #tpu.memory_space<vmem>>, vector<1x8x1xf32>
    %85 = vector.shape_cast %84 : vector<1x8x1xf32> to vector<8x1xf32>
    %86 = vector.broadcast %85 : vector<8x1xf32> to vector<8x576xf32>
    %87 = arith.addf %83, %86 : vector<8x576xf32>
    %88 = arith.addf %87, %64 : vector<8x576xf32>
    %cst_40 = arith.constant 0.000000e+00 : f32
    %89 = vector.broadcast %cst_40 : f32 to vector<8x576xf32>
    %90 = arith.maximumf %88, %89 : vector<8x576xf32>
    %91 = vector.broadcast %0 : vector<1x576xf32> to vector<8x576xf32>
    %92 = arith.mulf %90, %91 : vector<8x576xf32>
    %c2 = arith.constant 2 : index
    %c0_41 = arith.constant 0 : index
    %c0_42 = arith.constant 0 : index
    %93 = vector.load %arg6[%c2, %c0_41, %c0_42] : memref<3x8x72xf32, #tpu.memory_space<vmem>>, vector<1x8x72xf32>
    %94 = vector.shape_cast %93 : vector<1x8x72xf32> to vector<8x72xf32>
    %cst_43 = arith.constant 0.000000e+00 : f32
    %95 = vector.broadcast %cst_43 : f32 to vector<8x100xf32>
    %96 = tpu.concatenate %95, %92, %95 in 1 : vector<8x100xf32>, vector<8x576xf32>, vector<8x100xf32> -> vector<8x776xf32>
    %97 = vector.extract_strided_slice %96 {offsets = [0, 0], sizes = [8, 576], strides = [1, 1]} : vector<8x776xf32> to vector<8x576xf32>
    %98 = vector.extract_strided_slice %96 {offsets = [0, 4], sizes = [8, 576], strides = [1, 1]} : vector<8x776xf32> to vector<8x576xf32>
    %99 = vector.extract_strided_slice %96 {offsets = [0, 8], sizes = [8, 576], strides = [1, 1]} : vector<8x776xf32> to vector<8x576xf32>
    %100 = vector.extract_strided_slice %96 {offsets = [0, 96], sizes = [8, 576], strides = [1, 1]} : vector<8x776xf32> to vector<8x576xf32>
    %101 = vector.extract_strided_slice %96 {offsets = [0, 100], sizes = [8, 576], strides = [1, 1]} : vector<8x776xf32> to vector<8x576xf32>
    %102 = vector.extract_strided_slice %96 {offsets = [0, 104], sizes = [8, 576], strides = [1, 1]} : vector<8x776xf32> to vector<8x576xf32>
    %103 = vector.extract_strided_slice %96 {offsets = [0, 192], sizes = [8, 576], strides = [1, 1]} : vector<8x776xf32> to vector<8x576xf32>
    %104 = vector.extract_strided_slice %96 {offsets = [0, 196], sizes = [8, 576], strides = [1, 1]} : vector<8x776xf32> to vector<8x576xf32>
    %105 = vector.extract_strided_slice %96 {offsets = [0, 200], sizes = [8, 576], strides = [1, 1]} : vector<8x776xf32> to vector<8x576xf32>
    %106 = tpu.concatenate %97, %98, %99, %100, %101, %102, %103, %104, %105 in 0 : vector<8x576xf32>, vector<8x576xf32>, vector<8x576xf32>, vector<8x576xf32>, vector<8x576xf32>, vector<8x576xf32>, vector<8x576xf32>, vector<8x576xf32>, vector<8x576xf32> -> vector<72x576xf32>
    %cst_44 = arith.constant dense<0.000000e+00> : vector<8x576xf32>
    %107 = tpu.matmul %94, %106, %cst_44 {dimension_numbers = #tpu.dot_dimension_numbers<[1], [0], [0], [1], [0, 0, 1, 1], [], []>} : vector<8x72xf32>, vector<72x576xf32>, vector<8x576xf32> -> vector<8x576xf32>
    %c2_45 = arith.constant 2 : index
    %c0_46 = arith.constant 0 : index
    %c0_47 = arith.constant 0 : index
    %108 = vector.load %arg8[%c2_45, %c0_46, %c0_47] : memref<3x8x1xf32, #tpu.memory_space<vmem>>, vector<1x8x1xf32>
    %109 = vector.shape_cast %108 : vector<1x8x1xf32> to vector<8x1xf32>
    %110 = vector.broadcast %109 : vector<8x1xf32> to vector<8x576xf32>
    %111 = arith.mulf %107, %110 : vector<8x576xf32>
    %c2_48 = arith.constant 2 : index
    %c0_49 = arith.constant 0 : index
    %c0_50 = arith.constant 0 : index
    %112 = vector.load %arg9[%c2_48, %c0_49, %c0_50] : memref<3x8x1xf32, #tpu.memory_space<vmem>>, vector<1x8x1xf32>
    %113 = vector.shape_cast %112 : vector<1x8x1xf32> to vector<8x1xf32>
    %114 = vector.broadcast %113 : vector<8x1xf32> to vector<8x576xf32>
    %115 = arith.addf %111, %114 : vector<8x576xf32>
    %116 = arith.addf %115, %92 : vector<8x576xf32>
    %cst_51 = arith.constant 0.000000e+00 : f32
    %117 = vector.broadcast %cst_51 : f32 to vector<8x576xf32>
    %118 = arith.maximumf %116, %117 : vector<8x576xf32>
    %119 = vector.broadcast %0 : vector<1x576xf32> to vector<8x576xf32>
    %120 = arith.mulf %118, %119 : vector<8x576xf32>
    %c0_52 = arith.constant 0 : index
    %c0_53 = arith.constant 0 : index
    %121 = vector.load %arg10[%c0_52, %c0_53] : memref<8x8xf32, #tpu.memory_space<vmem>>, vector<8x8xf32>
    %cst_54 = arith.constant dense<0.000000e+00> : vector<8x576xf32>
    %122 = tpu.matmul %121, %120, %cst_54 {dimension_numbers = #tpu.dot_dimension_numbers<[1], [0], [0], [1], [0, 0, 1, 1], [], []>} : vector<8x8xf32>, vector<8x576xf32>, vector<8x576xf32> -> vector<8x576xf32>
    %c0_55 = arith.constant 0 : index
    %c0_56 = arith.constant 0 : index
    %123 = vector.load %arg11[%c0_55, %c0_56] : memref<8x1xf32, #tpu.memory_space<vmem>>, vector<8x1xf32>
    %124 = vector.broadcast %123 : vector<8x1xf32> to vector<8x576xf32>
    %125 = arith.addf %122, %124 : vector<8x576xf32>
    %c0_57 = arith.constant 0 : index
    %c0_58 = arith.constant 0 : index
    %c0_59 = arith.constant 0 : index
    %126 = vector.load %arg12[%c0_57, %c0_58, %c0_59] : memref<1x8x576xf32, #tpu.memory_space<vmem>>, vector<1x8x576xf32>
    %127 = vector.shape_cast %126 : vector<1x8x576xf32> to vector<8x576xf32>
    %128 = vector.shape_cast %125 : vector<8x576xf32> to vector<1x8x576xf32>
    tpu.vector_store %arg12[%c0_57, %c0_58, %c0_59], %128 {strides = array<i32>} : memref<1x8x576xf32, #tpu.memory_space<vmem>>, vector<1x8x576xf32>,
    return
  }
  func.func @transform_0(%arg0: i32) -> (i32, i32, i32) {
    %c0_i32 = arith.constant 0 : i32
    %c0_i32_0 = arith.constant 0 : i32
    %c0_i32_1 = arith.constant 0 : i32
    return %arg0, %c0_i32, %c0_i32_0 : i32, i32, i32
  }
  func.func @transform_1(%arg0: i32) -> (i32, i32, i32) {
    %c0_i32 = arith.constant 0 : i32
    %c0_i32_0 = arith.constant 0 : i32
    %c0_i32_1 = arith.constant 0 : i32
    return %arg0, %c0_i32, %c0_i32_0 : i32, i32, i32
  }
  func.func @transform_2(%arg0: i32) -> (i32, i32) {
    %c0_i32 = arith.constant 0 : i32
    %c0_i32_0 = arith.constant 0 : i32
    %c0_i32_1 = arith.constant 0 : i32
    return %c0_i32, %c0_i32_0 : i32, i32
  }
  func.func @transform_3(%arg0: i32) -> (i32, i32) {
    %c0_i32 = arith.constant 0 : i32
    %c0_i32_0 = arith.constant 0 : i32
    %c0_i32_1 = arith.constant 0 : i32
    return %c0_i32, %c0_i32_0 : i32, i32
  }
  func.func @transform_4(%arg0: i32) -> (i32, i32) {
    %c0_i32 = arith.constant 0 : i32
    %c0_i32_0 = arith.constant 0 : i32
    %c0_i32_1 = arith.constant 0 : i32
    return %c0_i32, %c0_i32_0 : i32, i32
  }
  func.func @transform_5(%arg0: i32) -> (i32, i32, i32) {
    %c0_i32 = arith.constant 0 : i32
    %c0_i32_0 = arith.constant 0 : i32
    %c0_i32_1 = arith.constant 0 : i32
    %c0_i32_2 = arith.constant 0 : i32
    return %c0_i32, %c0_i32_0, %c0_i32_1 : i32, i32, i32
  }
  func.func @transform_6(%arg0: i32) -> (i32, i32) {
    %c0_i32 = arith.constant 0 : i32
    %c0_i32_0 = arith.constant 0 : i32
    %c0_i32_1 = arith.constant 0 : i32
    return %c0_i32, %c0_i32_0 : i32, i32
  }
  func.func @transform_7(%arg0: i32) -> (i32, i32, i32) {
    %c0_i32 = arith.constant 0 : i32
    %c0_i32_0 = arith.constant 0 : i32
    %c0_i32_1 = arith.constant 0 : i32
    %c0_i32_2 = arith.constant 0 : i32
    return %c0_i32, %c0_i32_0, %c0_i32_1 : i32, i32, i32
  }
  func.func @transform_8(%arg0: i32) -> (i32, i32, i32) {
    %c0_i32 = arith.constant 0 : i32
    %c0_i32_0 = arith.constant 0 : i32
    %c0_i32_1 = arith.constant 0 : i32
    %c0_i32_2 = arith.constant 0 : i32
    return %c0_i32, %c0_i32_0, %c0_i32_1 : i32, i32, i32
  }
  func.func @transform_9(%arg0: i32) -> (i32, i32) {
    %c0_i32 = arith.constant 0 : i32
    %c0_i32_0 = arith.constant 0 : i32
    %c0_i32_1 = arith.constant 0 : i32
    return %c0_i32, %c0_i32_0 : i32, i32
  }
  func.func @transform_10(%arg0: i32) -> (i32, i32) {
    %c0_i32 = arith.constant 0 : i32
    %c0_i32_0 = arith.constant 0 : i32
    %c0_i32_1 = arith.constant 0 : i32
    return %c0_i32, %c0_i32_0 : i32, i32
  }
  func.func @transform_11(%arg0: i32) -> (i32, i32, i32) {
    %c0_i32 = arith.constant 0 : i32
    %c0_i32_0 = arith.constant 0 : i32
    %c0_i32_1 = arith.constant 0 : i32
    return %arg0, %c0_i32, %c0_i32_0 : i32, i32, i32
  }
}

</mosaic_0001>

<llo_original>
// kernel: tpu_custom_call.1
$region0: #{tpu_custom_call.1}
  #allocation0 [shape = 'u32[]', space=smem, size = 0x4, offset = 0x4, fixed_abs, tag = 'smem constant byte address 0x4 - core index']
  #allocation1 [shape = 'u32[144,128]{1,0:T(1,128)}', space=vmem, size = 0x12000, scoped, tag = 'internal scratch']
  %s0 = inlined_call_operand.hbm [shape: f32[2,16,576], index: 0, kind: input, shape index: {}]
  %s1 = inlined_call_operand.hbm [shape: f32[2,16,576], index: 1, kind: input, shape index: {}]
  %s2 = inlined_call_operand.vmem [shape: f32[1,576], index: 2, kind: input, shape index: {}]
  %s3 = inlined_call_operand.vmem [shape: f32[8,16], index: 3, kind: input, shape index: {}]
  %s4 = inlined_call_operand.vmem [shape: f32[8,1], index: 4, kind: input, shape index: {}]
  %s5 = inlined_call_operand.vmem [shape: f32[3,8,72], index: 5, kind: input, shape index: {}]
  %s6 = inlined_call_operand.vmem [shape: f32[8,72], index: 6, kind: input, shape index: {}]
  %s7 = inlined_call_operand.vmem [shape: f32[3,8,1], index: 7, kind: input, shape index: {}]
  %s8 = inlined_call_operand.vmem [shape: f32[3,8,1], index: 8, kind: input, shape index: {}]
  %s9 = inlined_call_operand.vmem [shape: f32[8,8], index: 9, kind: input, shape index: {}]
  %s10 = inlined_call_operand.vmem [shape: f32[8,1], index: 10, kind: input, shape index: {}]
  %s11 = inlined_call_operand.hbm [shape: f32[2,8,576], index: 11, kind: output, shape index: {}]
  %s12 = sld [smem:[#allocation0]]
  $region85: #{tpu_custom_call.1} parent=0
    _
  %s14 = ssub.s32 1, %s12
  %s15 = scalar_select 0, %s14, %s12
  $region1: #{tpu_custom_call.1} parent=0
    #allocation2 [shape = 'u8[81920]{0}', space=vmem, size = 0x14000, scoped, tag = 'input window, operand 0']
    #allocation3 [shape = 's32[2]{0}', space=sflag, size = 0x8, scoped, tag = 'scoped memory for tpu_custom_call.1']
    #allocation4 [shape = 's32[2]{0}', space=sflag, size = 0x8, scoped, tag = 'scoped memory for tpu_custom_call.1']
    #allocation5 [shape = 'u8[81920]{0}', space=vmem, size = 0x14000, scoped, tag = 'input window, operand 1']
    #allocation6 [shape = 's32[2]{0}', space=sflag, size = 0x8, scoped, tag = 'scoped memory for tpu_custom_call.1']
    #allocation7 [shape = 'u8[40960]{0}', space=vmem, size = 0xa000, scoped, tag = 'output window, operand 0']
    %16 = vsyncpa [#allocation3], 0
    %s17 = scalar_lea.sflag [#allocation3], 1
    %18 = vsyncpa %s17, 0
    %19 = vsyncpa [#allocation6], 0
    %s20 = scalar_lea.sflag [#allocation6], 1
    %21 = vsyncpa %s20, 0
    %22 = vsyncpa [#allocation4], 0
    %s23 = scalar_lea.sflag [#allocation4], 1
    %24 = vsyncpa %s23, 0
    loop: start=0, step=1, limit=4
    $region2: #{tpu_custom_call.1} parent=1 // loop_pre_header
      _
    $region3: #{tpu_custom_call.1} parent=1 // loop_header
      %s26 = sphi 0, %s30
      %p27 = scmp.ge.s32.totalorder %s26, 4
      %s36 = sphi 0, %s38
      %s39 = sphi 0, %s36
      %s40 = sphi 0, %s39
      %s56 = sphi 0, %s40
      %s62 = sphi 0, %s64
      %s65 = sphi 0, %s62
      %s66 = sphi 0, %s65
      %s82 = sphi 0, %s66
      %s86 = sphi 0, %s86
      %s88 = sphi 0, %s86
      %s89 = sphi 0, %s88
      %s103 = sphi 0, %s89
      %s107 = sphi 0, %s107
      %s109 = sphi 0, %s107
      %s110 = sphi 0, %s109
      %s124 = sphi 0, %s110
      %s128 = sphi 0, %s128
      %s130 = sphi 0, %s128
      %s131 = sphi 0, %s130
      %s145 = sphi 0, %s131
      %s149 = sphi 0, %s149
      %s151 = sphi 0, %s149
      %s152 = sphi 0, %s151
      %s166 = sphi 0, %s152
      %s170 = sphi 0, %s170
      %s172 = sphi 0, %s170
      %s173 = sphi 0, %s172
      %s187 = sphi 0, %s173
      %s191 = sphi 0, %s191
      %s193 = sphi 0, %s191
      %s194 = sphi 0, %s193
      %s208 = sphi 0, %s194
      %s212 = sphi 0, %s212
      %s214 = sphi 0, %s212
      %s215 = sphi 0, %s214
      %s229 = sphi 0, %s215
      %s233 = sphi 0, %s233
      %s235 = sphi 0, %s233
      %s236 = sphi 0, %s235
      %s250 = sphi 0, %s236
      %s254 = sphi 0, %s254
      %s256 = sphi 0, %s254
      %s257 = sphi 0, %s256
      %s271 = sphi 0, %s257
      %s277 = sphi 0, %s279
      %s280 = sphi 0, %s277
      %s281 = sphi 0, %s280
      %s297 = sphi 0, %s281
    $region4: #{tpu_custom_call.1} parent=1 // loop_header_branch
      %29 = sbr.rel (%p27) target = $region8
    $region5: #{tpu_custom_call.1} parent=1 // loop_body
      %s31 = ssub.s32 %s26, 1
      %s32 = ssub.s32 %s26, 2
      %s33 = sadd.s32 %s26, 1
      %s34 = ssub.s32 %s26, %s33
      %p35 = scmp.eq.s32.totalorder %s34, 0
      %s37 = sadd.s32 %s36, 1
      %s38 = scalar_select %p35, %s36, %s37
      %p41 = pneg %p35
      %p42 = scmp.eq.s32.totalorder %s26, 1
      %p43 = por %p41, %p42
      %p44 = scmp.ne.s32.totalorder %s36, %s39
      %p45 = scmp.eq.s32.totalorder %s26, 0
      %p46 = por %p44, %p45
      %p47 = scmp.ne.s32.totalorder %s36, %s39
      %p48 = scmp.eq.s32.totalorder %s31, 1
      %p49 = por %p47, %p48
      %p50 = scmp.ne.s32.totalorder %s39, %s40
      %p51 = scmp.eq.s32.totalorder %s31, 0
      %p52 = por %p50, %p51
      %p53 = scmp.ne.s32.totalorder %s39, %s40
      %p54 = scmp.eq.s32.totalorder %s32, 1
      %p55 = por %p53, %p54
      %p57 = scmp.ne.s32.totalorder %s40, %s56
      %p58 = scmp.eq.s32.totalorder %s32, 0
      %p59 = por %p57, %p58
      %s60 = ssub.s32 %s26, %s33
      %p61 = scmp.eq.s32.totalorder %s60, 0
      %s63 = sadd.s32 %s62, 1
      %s64 = scalar_select %p61, %s62, %s63
      %p67 = pneg %p61
      %p68 = scmp.eq.s32.totalorder %s26, 1
      %p69 = por %p67, %p68
      %p70 = scmp.ne.s32.totalorder %s62, %s65
      %p71 = scmp.eq.s32.totalorder %s26, 0
      %p72 = por %p70, %p71
      %p73 = scmp.ne.s32.totalorder %s62, %s65
      %p74 = scmp.eq.s32.totalorder %s31, 1
      %p75 = por %p73, %p74
      %p76 = scmp.ne.s32.totalorder %s65, %s66
      %p77 = scmp.eq.s32.totalorder %s31, 0
      %p78 = por %p76, %p77
      %p79 = scmp.ne.s32.totalorder %s65, %s66
      %p80 = scmp.eq.s32.totalorder %s32, 1
      %p81 = por %p79, %p80
      %p83 = scmp.ne.s32.totalorder %s66, %s82
      %p84 = scmp.eq.s32.totalorder %s32, 0
      %p85 = por %p83, %p84
      %s87 = sadd.s32 %s86, 1
      %p90 = scmp.eq.s32.totalorder %s26, 1
      %p91 = scmp.ne.s32.totalorder %s86, %s88
      %p92 = scmp.eq.s32.totalorder %s26, 0
      %p93 = por %p91, %p92
      %p94 = scmp.ne.s32.totalorder %s86, %s88
      %p95 = scmp.eq.s32.totalorder %s31, 1
      %p96 = por %p94, %p95
      %p97 = scmp.ne.s32.totalorder %s88, %s89
      %p98 = scmp.eq.s32.totalorder %s31, 0
      %p99 = por %p97, %p98
      %p100 = scmp.ne.s32.totalorder %s88, %s89
      %p101 = scmp.eq.s32.totalorder %s32, 1
      %p102 = por %p100, %p101
      %p104 = scmp.ne.s32.totalorder %s89, %s103
      %p105 = scmp.eq.s32.totalorder %s32, 0
      %p106 = por %p104, %p105
      %s108 = sadd.s32 %s107, 1
      %p111 = scmp.eq.s32.totalorder %s26, 1
      %p112 = scmp.ne.s32.totalorder %s107, %s109
      %p113 = scmp.eq.s32.totalorder %s26, 0
      %p114 = por %p112, %p113
      %p115 = scmp.ne.s32.totalorder %s107, %s109
      %p116 = scmp.eq.s32.totalorder %s31, 1
      %p117 = por %p115, %p116
      %p118 = scmp.ne.s32.totalorder %s109, %s110
      %p119 = scmp.eq.s32.totalorder %s31, 0
      %p120 = por %p118, %p119
      %p121 = scmp.ne.s32.totalorder %s109, %s110
      %p122 = scmp.eq.s32.totalorder %s32, 1
      %p123 = por %p121, %p122
      %p125 = scmp.ne.s32.totalorder %s110, %s124
      %p126 = scmp.eq.s32.totalorder %s32, 0
      %p127 = por %p125, %p126
      %s129 = sadd.s32 %s128, 1
      %p132 = scmp.eq.s32.totalorder %s26, 1
      %p133 = scmp.ne.s32.totalorder %s128, %s130
      %p134 = scmp.eq.s32.totalorder %s26, 0
      %p135 = por %p133, %p134
      %p136 = scmp.ne.s32.totalorder %s128, %s130
      %p137 = scmp.eq.s32.totalorder %s31, 1
      %p138 = por %p136, %p137
      %p139 = scmp.ne.s32.totalorder %s130, %s131
      %p140 = scmp.eq.s32.totalorder %s31, 0
      %p141 = por %p139, %p140
      %p142 = scmp.ne.s32.totalorder %s130, %s131
      %p143 = scmp.eq.s32.totalorder %s32, 1
      %p144 = por %p142, %p143
      %p146 = scmp.ne.s32.totalorder %s131, %s145
      %p147 = scmp.eq.s32.totalorder %s32, 0
      %p148 = por %p146, %p147
      %s150 = sadd.s32 %s149, 1
      %p153 = scmp.eq.s32.totalorder %s26, 1
      %p154 = scmp.ne.s32.totalorder %s149, %s151
      %p155 = scmp.eq.s32.totalorder %s26, 0
      %p156 = por %p154, %p155
      %p157 = scmp.ne.s32.totalorder %s149, %s151
      %p158 = scmp.eq.s32.totalorder %s31, 1
      %p159 = por %p157, %p158
      %p160 = scmp.ne.s32.totalorder %s151, %s152
      %p161 = scmp.eq.s32.totalorder %s31, 0
      %p162 = por %p160, %p161
      %p163 = scmp.ne.s32.totalorder %s151, %s152
      %p164 = scmp.eq.s32.totalorder %s32, 1
      %p165 = por %p163, %p164
      %p167 = scmp.ne.s32.totalorder %s152, %s166
      %p168 = scmp.eq.s32.totalorder %s32, 0
      %p169 = por %p167, %p168
      %s171 = sadd.s32 %s170, 1
      %p174 = scmp.eq.s32.totalorder %s26, 1
      %p175 = scmp.ne.s32.totalorder %s170, %s172
      %p176 = scmp.eq.s32.totalorder %s26, 0
      %p177 = por %p175, %p176
      %p178 = scmp.ne.s32.totalorder %s170, %s172
      %p179 = scmp.eq.s32.totalorder %s31, 1
      %p180 = por %p178, %p179
      %p181 = scmp.ne.s32.totalorder %s172, %s173
      %p182 = scmp.eq.s32.totalorder %s31, 0
      %p183 = por %p181, %p182
      %p184 = scmp.ne.s32.totalorder %s172, %s173
      %p185 = scmp.eq.s32.totalorder %s32, 1
      %p186 = por %p184, %p185
      %p188 = scmp.ne.s32.totalorder %s173, %s187
      %p189 = scmp.eq.s32.totalorder %s32, 0
      %p190 = por %p188, %p189
      %s192 = sadd.s32 %s191, 1
      %p195 = scmp.eq.s32.totalorder %s26, 1
      %p196 = scmp.ne.s32.totalorder %s191, %s193
      %p197 = scmp.eq.s32.totalorder %s26, 0
      %p198 = por %p196, %p197
      %p199 = scmp.ne.s32.totalorder %s191, %s193
      %p200 = scmp.eq.s32.totalorder %s31, 1
      %p201 = por %p199, %p200
      %p202 = scmp.ne.s32.totalorder %s193, %s194
      %p203 = scmp.eq.s32.totalorder %s31, 0
      %p204 = por %p202, %p203
      %p205 = scmp.ne.s32.totalorder %s193, %s194
      %p206 = scmp.eq.s32.totalorder %s32, 1
      %p207 = por %p205, %p206
      %p209 = scmp.ne.s32.totalorder %s194, %s208
      %p210 = scmp.eq.s32.totalorder %s32, 0
      %p211 = por %p209, %p210
      %s213 = sadd.s32 %s212, 1
      %p216 = scmp.eq.s32.totalorder %s26, 1
      %p217 = scmp.ne.s32.totalorder %s212, %s214
      %p218 = scmp.eq.s32.totalorder %s26, 0
      %p219 = por %p217, %p218
      %p220 = scmp.ne.s32.totalorder %s212, %s214
      %p221 = scmp.eq.s32.totalorder %s31, 1
      %p222 = por %p220, %p221
      %p223 = scmp.ne.s32.totalorder %s214, %s215
      %p224 = scmp.eq.s32.totalorder %s31, 0
      %p225 = por %p223, %p224
      %p226 = scmp.ne.s32.totalorder %s214, %s215
      %p227 = scmp.eq.s32.totalorder %s32, 1
      %p228 = por %p226, %p227
      %p230 = scmp.ne.s32.totalorder %s215, %s229
      %p231 = scmp.eq.s32.totalorder %s32, 0
      %p232 = por %p230, %p231
      %s234 = sadd.s32 %s233, 1
      %p237 = scmp.eq.s32.totalorder %s26, 1
      %p238 = scmp.ne.s32.totalorder %s233, %s235
      %p239 = scmp.eq.s32.totalorder %s26, 0
      %p240 = por %p238, %p239
      %p241 = scmp.ne.s32.totalorder %s233, %s235
      %p242 = scmp.eq.s32.totalorder %s31, 1
      %p243 = por %p241, %p242
      %p244 = scmp.ne.s32.totalorder %s235, %s236
      %p245 = scmp.eq.s32.totalorder %s31, 0
      %p246 = por %p244, %p245
      %p247 = scmp.ne.s32.totalorder %s235, %s236
      %p248 = scmp.eq.s32.totalorder %s32, 1
      %p249 = por %p247, %p248
      %p251 = scmp.ne.s32.totalorder %s236, %s250
      %p252 = scmp.eq.s32.totalorder %s32, 0
      %p253 = por %p251, %p252
      %s255 = sadd.s32 %s254, 1
      %p258 = scmp.eq.s32.totalorder %s26, 1
      %p259 = scmp.ne.s32.totalorder %s254, %s256
      %p260 = scmp.eq.s32.totalorder %s26, 0
      %p261 = por %p259, %p260
      %p262 = scmp.ne.s32.totalorder %s254, %s256
      %p263 = scmp.eq.s32.totalorder %s31, 1
      %p264 = por %p262, %p263
      %p265 = scmp.ne.s32.totalorder %s256, %s257
      %p266 = scmp.eq.s32.totalorder %s31, 0
      %p267 = por %p265, %p266
      %p268 = scmp.ne.s32.totalorder %s256, %s257
      %p269 = scmp.eq.s32.totalorder %s32, 1
      %p270 = por %p268, %p269
      %p272 = scmp.ne.s32.totalorder %s257, %s271
      %p273 = scmp.eq.s32.totalorder %s32, 0
      %p274 = por %p272, %p273
      %s275 = ssub.s32 %s26, %s33
      %p276 = scmp.eq.s32.totalorder %s275, 0
      %s278 = sadd.s32 %s277, 1
      %s279 = scalar_select %p276, %s277, %s278
      %p282 = pneg %p276
      %p283 = scmp.eq.s32.totalorder %s26, 1
      %p284 = por %p282, %p283
      %p285 = scmp.ne.s32.totalorder %s277, %s280
      %p286 = scmp.eq.s32.totalorder %s26, 0
      %p287 = por %p285, %p286
      %p288 = scmp.ne.s32.totalorder %s277, %s280
      %p289 = scmp.eq.s32.totalorder %s31, 1
      %p290 = por %p288, %p289
      %p291 = scmp.ne.s32.totalorder %s280, %s281
      %p292 = scmp.eq.s32.totalorder %s31, 0
      %p293 = por %p291, %p292
      %p294 = scmp.ne.s32.totalorder %s280, %s281
      %p295 = scmp.eq.s32.totalorder %s32, 1
      %p296 = por %p294, %p295
      %p298 = scmp.ne.s32.totalorder %s281, %s297
      %p299 = scmp.eq.s32.totalorder %s32, 0
      %p300 = por %p298, %p299
      %p301 = scmp.le.s32.totalorder 1, %s26
      %p302 = scmp.lt.s32.totalorder %s26, 3
      %p303 = pnand %p301, %p302
      %p304 = pneg %p303
      // Predicated region
      $region9: #{tpu_custom_call.1} parent=5 // pred_check
        _
      $region10: #{tpu_custom_call.1} parent=5 // pred_check_branch
        %306 = sbr.rel (%p303) target = $region12
      $region11: #{tpu_custom_call.1} parent=5 // pred_region
        %s307 = ssub.s32 %s26, 1
        // Predicated region
        $region13: #{tpu_custom_call.1} parent=11 // pred_check
          %p308 = pneg %p99
        $region14: #{tpu_custom_call.1} parent=11 // pred_check_branch
          %310 = sbr.rel (%p308) target = $region16
        $region15: #{tpu_custom_call.1} parent=11 // pred_region
          _
        $region16: #{tpu_custom_call.1} parent=11 // pred_fallthru
          _
        // Predicated region
        $region17: #{tpu_custom_call.1} parent=11 // pred_check
          %p311 = pneg %p120
        $region18: #{tpu_custom_call.1} parent=11 // pred_check_branch
          %313 = sbr.rel (%p311) target = $region20
        $region19: #{tpu_custom_call.1} parent=11 // pred_region
          _
        $region20: #{tpu_custom_call.1} parent=11 // pred_fallthru
          _
        // Predicated region
        $region21: #{tpu_custom_call.1} parent=11 // pred_check
          %p314 = pneg %p141
        $region22: #{tpu_custom_call.1} parent=11 // pred_check_branch
          %316 = sbr.rel (%p314) target = $region24
        $region23: #{tpu_custom_call.1} parent=11 // pred_region
          _
        $region24: #{tpu_custom_call.1} parent=11 // pred_fallthru
          _
        // Predicated region
        $region25: #{tpu_custom_call.1} parent=11 // pred_check
          %p317 = pneg %p162
        $region26: #{tpu_custom_call.1} parent=11 // pred_check_branch
          %319 = sbr.rel (%p317) target = $region28
        $region27: #{tpu_custom_call.1} parent=11 // pred_region
          _
        $region28: #{tpu_custom_call.1} parent=11 // pred_fallthru
          _
        // Predicated region
        $region29: #{tpu_custom_call.1} parent=11 // pred_check
          %p320 = pneg %p183
        $region30: #{tpu_custom_call.1} parent=11 // pred_check_branch
          %322 = sbr.rel (%p320) target = $region32
        $region31: #{tpu_custom_call.1} parent=11 // pred_region
          _
        $region32: #{tpu_custom_call.1} parent=11 // pred_fallthru
          _
        // Predicated region
        $region33: #{tpu_custom_call.1} parent=11 // pred_check
          %p323 = pneg %p204
        $region34: #{tpu_custom_call.1} parent=11 // pred_check_branch
          %325 = sbr.rel (%p323) target = $region36
        $region35: #{tpu_custom_call.1} parent=11 // pred_region
          _
        $region36: #{tpu_custom_call.1} parent=11 // pred_fallthru
          _
        // Predicated region
        $region37: #{tpu_custom_call.1} parent=11 // pred_check
          %p326 = pneg %p225
        $region38: #{tpu_custom_call.1} parent=11 // pred_check_branch
          %328 = sbr.rel (%p326) target = $region40
        $region39: #{tpu_custom_call.1} parent=11 // pred_region
          _
        $region40: #{tpu_custom_call.1} parent=11 // pred_fallthru
          _
        // Predicated region
        $region41: #{tpu_custom_call.1} parent=11 // pred_check
          %p329 = pneg %p246
        $region42: #{tpu_custom_call.1} parent=11 // pred_check_branch
          %331 = sbr.rel (%p329) target = $region44
        $region43: #{tpu_custom_call.1} parent=11 // pred_region
          _
        $region44: #{tpu_custom_call.1} parent=11 // pred_fallthru
          _
        // Predicated region
        $region45: #{tpu_custom_call.1} parent=11 // pred_check
          %p332 = pneg %p267
        $region46: #{tpu_custom_call.1} parent=11 // pred_check_branch
          %334 = sbr.rel (%p332) target = $region48
        $region47: #{tpu_custom_call.1} parent=11 // pred_region
          _
        $region48: #{tpu_custom_call.1} parent=11 // pred_fallthru
          _
      $region12: #{tpu_custom_call.1} parent=5 // pred_fallthru
        _
      %p335 = scmp.lt.s32.totalorder %s26, 2
      // Predicated region
      $region49: #{tpu_custom_call.1} parent=5 // pred_check
        %p336 = pneg %p335
      $region50: #{tpu_custom_call.1} parent=5 // pred_check_branch
        %338 = sbr.rel (%p336) target = $region52
      $region51: #{tpu_custom_call.1} parent=5 // pred_region
        // Predicated region
        $region53: #{tpu_custom_call.1} parent=51 // pred_check
          %p339 = pneg %p46
        $region54: #{tpu_custom_call.1} parent=51 // pred_check_branch
          %341 = sbr.rel (%p339) target = $region56
        $region55: #{tpu_custom_call.1} parent=51 // pred_region
          %s342 = sand.u32 %s36, 1
          %s343 = scalar_lea.sflag [#allocation3], %s342
          %s344 = sand.u32 %s36, 1
          %s345 = smul.addr %s344, 80
          %s346 = scalar_lea.vmem [#allocation2], %s345
          %s348 = ssub.s32 1280, 1280
          %349 = vsyncadd %s343, %s348
          %s350 = smul.addr %s26, 10
          %s351 = smul.addr %s350, 128
          %s352 = scalar_lea.hbm %s0, %s351
          %s353 = sshll.u32 %s346, 4
          %s354 = int_to_ptr.vmem [resolvable:$true] %s353
          %359 = dma.hbm_to_vmem [thread:$0]  %s352, 1280, %s354, %s343, 640, 640, 40
        $region56: #{tpu_custom_call.1} parent=51 // pred_fallthru
          _
        // Predicated region
        $region57: #{tpu_custom_call.1} parent=51 // pred_check
          %p360 = pneg %p72
        $region58: #{tpu_custom_call.1} parent=51 // pred_check_branch
          %362 = sbr.rel (%p360) target = $region60
        $region59: #{tpu_custom_call.1} parent=51 // pred_region
          %s363 = sand.u32 %s62, 1
          %s364 = scalar_lea.sflag [#allocation6], %s363
          %s365 = sand.u32 %s62, 1
          %s366 = smul.addr %s365, 80
          %s367 = scalar_lea.vmem [#allocation5], %s366
          %s369 = ssub.s32 1280, 1280
          %370 = vsyncadd %s364, %s369
          %s371 = smul.addr %s26, 10
          %s372 = smul.addr %s371, 128
          %s373 = scalar_lea.hbm %s1, %s372
          %s374 = sshll.u32 %s367, 4
          %s375 = int_to_ptr.vmem [resolvable:$true] %s374
          %380 = dma.hbm_to_vmem [thread:$0]  %s373, 1280, %s375, %s364, 640, 640, 40
        $region60: #{tpu_custom_call.1} parent=51 // pred_fallthru
          _
      $region52: #{tpu_custom_call.1} parent=5 // pred_fallthru
        _
      %p381 = scmp.le.s32.totalorder 1, %s26
      %p382 = scmp.lt.s32.totalorder %s26, 3
      %p383 = pnand %p381, %p382
      %p384 = pneg %p383
      // Predicated region
      $region61: #{tpu_custom_call.1} parent=5 // pred_check
        _
      $region62: #{tpu_custom_call.1} parent=5 // pred_check_branch
        %386 = sbr.rel (%p383) target = $region64
      $region63: #{tpu_custom_call.1} parent=5 // pred_region
        %s387 = ssub.s32 %s26, 1
        %s388 = sand.u32 %s39, 1
        %s389 = scalar_lea.sflag [#allocation3], %s388
        %s390 = sand.u32 %s39, 1
        %s391 = smul.addr %s390, 80
        %s392 = scalar_lea.vmem [#allocation2], %s391
        // Predicated region
        $region65: #{tpu_custom_call.1} parent=63 // pred_check
          %p393 = pneg %p52
        $region66: #{tpu_custom_call.1} parent=63 // pred_check_branch
          %395 = sbr.rel (%p393) target = $region68
        $region67: #{tpu_custom_call.1} parent=63 // pred_region
          %396 = dma.done %s389, 1280
        $region68: #{tpu_custom_call.1} parent=63 // pred_fallthru
          _
        %s397 = sand.u32 %s65, 1
        %s398 = scalar_lea.sflag [#allocation6], %s397
        %s399 = sand.u32 %s65, 1
        %s400 = smul.addr %s399, 80
        %s401 = scalar_lea.vmem [#allocation5], %s400
        // Predicated region
        $region69: #{tpu_custom_call.1} parent=63 // pred_check
          %p402 = pneg %p78
        $region70: #{tpu_custom_call.1} parent=63 // pred_check_branch
          %404 = sbr.rel (%p402) target = $region72
        $region71: #{tpu_custom_call.1} parent=63 // pred_region
          %405 = dma.done %s398, 1280
        $region72: #{tpu_custom_call.1} parent=63 // pred_fallthru
          _
        %s406 = sand.u32 %s39, 1
        %s407 = scalar_lea.sflag [#allocation3], %s406
        %s408 = sand.u32 %s39, 1
        %s409 = smul.addr %s408, 80
        %s410 = scalar_lea.vmem [#allocation2], %s409
        %p411 = pneg %p52
        %p412 = pneg %p49
        %s413 = sand.u32 %s65, 1
        %s414 = scalar_lea.sflag [#allocation6], %s413
        %s415 = sand.u32 %s65, 1
        %s416 = smul.addr %s415, 80
        %s417 = scalar_lea.vmem [#allocation5], %s416
        %p418 = pneg %p78
        %p419 = pneg %p75
        %p420 = pneg %p99
        %p421 = pneg %p96
        %p422 = pneg %p120
        %p423 = pneg %p117
        %p424 = pneg %p141
        %p425 = pneg %p138
        %p426 = pneg %p162
        %p427 = pneg %p159
        %p428 = pneg %p183
        %p429 = pneg %p180
        %p430 = pneg %p204
        %p431 = pneg %p201
        %p432 = pneg %p225
        %p433 = pneg %p222
        %p434 = pneg %p246
        %p435 = pneg %p243
        %p436 = pneg %p267
        %p437 = pneg %p264
        %p438 = pneg %p293
        %p439 = pneg %p290
        %s440 = sand.u32 %s280, 1
        %s441 = scalar_lea.sflag [#allocation4], %s440
        %s442 = sand.u32 %s280, 1
        %s443 = smul.addr %s442, 40
        %s444 = scalar_lea.vmem [#allocation7], %s443
        %v445 = vld [vmem:[%s2] sm:$0x1f]
        %v446 = vld [vmem:[%s3] sm:$0xff]
        %v447 = vld [vmem:[%s4] sm:$0xff]
        %v448 = vld [vmem:[%s392] sm:$0xff]
        %v449 = vld [vmem:[%s392 + $0x8] sm:$0xff]
        %v450 = vld [vmem:[%s392 + $0x10] sm:$0xff]
        %v451 = vld [vmem:[%s392 + $0x18] sm:$0xff]
        %v452 = vld [vmem:[%s392 + $0x20] sm:$0xff]
        %v453 = vld [vmem:[%s392 + $0x28] sm:$0xff]
        %v454 = vld [vmem:[%s392 + $0x30] sm:$0xff]
        %v455 = vld [vmem:[%s392 + $0x38] sm:$0xff]
        %v456 = vld [vmem:[%s392 + $0x40] sm:$0xff]
        %v457 = vld [vmem:[%s392 + $0x48] sm:$0xff]
        %459 = vset.pattern.permute.xlu0 0
        %460 = vperm.xlu0 %459, %v447
        %v461 = vpop.permute.xlu0 %460
        %vm463 = vcmask 130048
        %v465 = vsel %vm463, %v446, 0
        %467 = vmatprep.subr.mxu0 0.0
        %468 = vmatpush1.msra.mxu0 0.0
        %469 = vmatprep.subr.mxu0 0.0
        %470 = vmatpush1.msra.mxu0 0.0
        %471 = vmatprep.subr.mxu0 0.0
        %472 = vmatpush1.msra.mxu0 0.0
        %473 = vmatprep.subr.mxu0 0.0
        %474 = vmatpush1.msra.mxu0 0.0
        %475 = vmatprep.subr.mxu0 0.0
        %476 = vmatpush1.msra.mxu0 0.0
        %477 = vmatprep.subr.mxu0 0.0
        %478 = vmatpush1.msra.mxu0 0.0
        %479 = vmatprep.subr.mxu0 0.0
        %480 = vmatpush1.msra.mxu0 0.0
        %481 = vmatprep.subr.mxu0 0.0
        %482 = vmatpush1.msra.mxu0 0.0
        %483 = vmatprep.subr.mxu0 0.0
        %484 = vmatpush1.msra.mxu0 0.0
        %485 = vmatprep.subr.mxu0 0.0
        %486 = vmatpush1.msra.mxu0 0.0
        %487 = vmatprep.subr.mxu0 0.0
        %488 = vmatpush1.msra.mxu0 0.0
        %489 = vmatprep.subr.mxu0 0.0
        %490 = vmatpush1.msra.mxu0 0.0
        %491 = vmatprep.subr.mxu0 0.0
        %492 = vmatpush1.msra.mxu0 0.0
        %493 = vmatprep.subr.mxu0 0.0
        %494 = vmatpush1.msra.mxu0 0.0
        %495 = vmatprep.subr.mxu0 %v454
        %496 = vmatpush1.msra.mxu0 %v453
        %497 = vmatprep.subr.mxu0 %v449
        %498 = vmatpush1.msra.mxu0 %v448
        %499 = vmatprep.subr.mxu0 0.0
        %500 = vmatpush2.msra.mxu0 0.0
        %501 = vmatprep.subr.mxu0 0.0
        %502 = vmatpush2.msra.mxu0 0.0
        %503 = vmatprep.subr.mxu0 0.0
        %504 = vmatpush2.msra.mxu0 0.0
        %505 = vmatprep.subr.mxu0 0.0
        %506 = vmatpush2.msra.mxu0 0.0
        %507 = vmatprep.subr.mxu0 0.0
        %508 = vmatpush2.msra.mxu0 0.0
        %509 = vmatprep.subr.mxu0 0.0
        %510 = vmatpush2.msra.mxu0 0.0
        %511 = vmatprep.subr.mxu0 0.0
        %512 = vmatpush2.msra.mxu0 0.0
        %513 = vmatprep.subr.mxu0 0.0
        %514 = vmatpush2.msra.mxu0 0.0
        %515 = vmatprep.subr.mxu0 0.0
        %516 = vmatpush2.msra.mxu0 0.0
        %517 = vmatprep.subr.mxu0 0.0
        %518 = vmatpush2.msra.mxu0 0.0
        %519 = vmatprep.subr.mxu0 0.0
        %520 = vmatpush2.msra.mxu0 0.0
        %521 = vmatprep.subr.mxu0 0.0
        %522 = vmatpush2.msra.mxu0 0.0
        %523 = vmatprep.subr.mxu0 0.0
        %524 = vmatpush2.msra.mxu0 0.0
        %525 = vmatprep.subr.mxu0 0.0
        %526 = vmatpush2.msra.mxu0 0.0
        %527 = vmatprep.subr.mxu0 0.0
        %528 = vmatpush2.msra.mxu0 0.0
        %529 = vmatprep.subr.mxu0 0.0
        %530 = vmatpush2.msra.mxu0 0.0
        %531 = vmatprep.mubr.f32.mxu0 0.0
        %532 = vmatmul.mubr.f32.gmra.mxu0 %v465
        %v533 = vpop.f32.mrf.mxu0
        %v534 = vadd.f32 %v461, %v533
        %v535 = vpop.f32.mrf.mxu0
        %v536 = vadd.f32 %v461, %v535
        %537 = vdwg.mxu0
        %538 = vmatprep.subr.mxu0 0.0
        %539 = vmatpush1.msra.mxu0 0.0
        %540 = vmatprep.subr.mxu0 0.0
        %541 = vmatpush1.msra.mxu0 0.0
        %542 = vmatprep.subr.mxu0 0.0
        %543 = vmatpush1.msra.mxu0 0.0
        %544 = vmatprep.subr.mxu0 0.0
        %545 = vmatpush1.msra.mxu0 0.0
        %546 = vmatprep.subr.mxu0 0.0
        %547 = vmatpush1.msra.mxu0 0.0
        %548 = vmatprep.subr.mxu0 0.0
        %549 = vmatpush1.msra.mxu0 0.0
        %550 = vmatprep.subr.mxu0 0.0
        %551 = vmatpush1.msra.mxu0 0.0
        %552 = vmatprep.subr.mxu0 0.0
        %553 = vmatpush1.msra.mxu0 0.0
        %554 = vmatprep.subr.mxu0 0.0
        %555 = vmatpush1.msra.mxu0 0.0
        %556 = vmatprep.subr.mxu0 0.0
        %557 = vmatpush1.msra.mxu0 0.0
        %558 = vmatprep.subr.mxu0 0.0
        %559 = vmatpush1.msra.mxu0 0.0
        %560 = vmatprep.subr.mxu0 0.0
        %561 = vmatpush1.msra.mxu0 0.0
        %562 = vmatprep.subr.mxu0 0.0
        %563 = vmatpush1.msra.mxu0 0.0
        %564 = vmatprep.subr.mxu0 0.0
        %565 = vmatpush1.msra.mxu0 0.0
        %566 = vmatprep.subr.mxu0 %v456
        %567 = vmatpush1.msra.mxu0 %v455
        %568 = vmatprep.subr.mxu0 %v451
        %569 = vmatpush1.msra.mxu0 %v450
        %570 = vmatprep.subr.mxu0 0.0
        %571 = vmatpush2.msra.mxu0 0.0
        %572 = vmatprep.subr.mxu0 0.0
        %573 = vmatpush2.msra.mxu0 0.0
        %574 = vmatprep.subr.mxu0 0.0
        %575 = vmatpush2.msra.mxu0 0.0
        %576 = vmatprep.subr.mxu0 0.0
        %577 = vmatpush2.msra.mxu0 0.0
        %578 = vmatprep.subr.mxu0 0.0
        %579 = vmatpush2.msra.mxu0 0.0
        %580 = vmatprep.subr.mxu0 0.0
        %581 = vmatpush2.msra.mxu0 0.0
        %582 = vmatprep.subr.mxu0 0.0
        %583 = vmatpush2.msra.mxu0 0.0
        %584 = vmatprep.subr.mxu0 0.0
        %585 = vmatpush2.msra.mxu0 0.0
        %586 = vmatprep.subr.mxu0 0.0
        %587 = vmatpush2.msra.mxu0 0.0
        %588 = vmatprep.subr.mxu0 0.0
        %589 = vmatpush2.msra.mxu0 0.0
        %590 = vmatprep.subr.mxu0 0.0
        %591 = vmatpush2.msra.mxu0 0.0
        %592 = vmatprep.subr.mxu0 0.0
        %593 = vmatpush2.msra.mxu0 0.0
        %594 = vmatprep.subr.mxu0 0.0
        %595 = vmatpush2.msra.mxu0 0.0
        %596 = vmatprep.subr.mxu0 0.0
        %597 = vmatpush2.msra.mxu0 0.0
        %598 = vmatprep.subr.mxu0 0.0
        %599 = vmatpush2.msra.mxu0 0.0
        %600 = vmatprep.subr.mxu0 0.0
        %601 = vmatpush2.msra.mxu0 0.0
        %602 = vmatprep.mubr.f32.mxu0 0.0
        %603 = vmatmul.mubr.f32.gmra.mxu0 %v465
        %v604 = vpop.f32.mrf.mxu0
        %v605 = vadd.f32 %v461, %v604
        %v606 = vpop.f32.mrf.mxu0
        %v607 = vadd.f32 %v461, %v606
        %608 = vdwg.mxu0
        %609 = vmatprep.subr.mxu0 0.0
        %610 = vmatpush1.msra.mxu0 0.0
        %611 = vmatprep.subr.mxu0 0.0
        %612 = vmatpush1.msra.mxu0 0.0
        %613 = vmatprep.subr.mxu0 0.0
        %614 = vmatpush1.msra.mxu0 0.0
        %615 = vmatprep.subr.mxu0 0.0
        %616 = vmatpush1.msra.mxu0 0.0
        %617 = vmatprep.subr.mxu0 0.0
        %618 = vmatpush1.msra.mxu0 0.0
        %619 = vmatprep.subr.mxu0 0.0
        %620 = vmatpush1.msra.mxu0 0.0
        %621 = vmatprep.subr.mxu0 0.0
        %622 = vmatpush1.msra.mxu0 0.0
        %623 = vmatprep.subr.mxu0 0.0
        %624 = vmatpush1.msra.mxu0 0.0
        %625 = vmatprep.subr.mxu0 0.0
        %626 = vmatpush1.msra.mxu0 0.0
        %627 = vmatprep.subr.mxu0 0.0
        %628 = vmatpush1.msra.mxu0 0.0
        %629 = vmatprep.subr.mxu0 0.0
        %630 = vmatpush1.msra.mxu0 0.0
        %631 = vmatprep.subr.mxu0 0.0
        %632 = vmatpush1.msra.mxu0 0.0
        %633 = vmatprep.subr.mxu0 0.0
        %634 = vmatpush1.msra.mxu0 0.0
        %635 = vmatprep.subr.mxu0 0.0
        %636 = vmatpush1.msra.mxu0 0.0
        %637 = vmatprep.subr.mxu0 0.0
        %638 = vmatpush1.msra.mxu0 %v457
        %639 = vmatprep.subr.mxu0 0.0
        %640 = vmatpush1.msra.mxu0 %v452
        %641 = vmatprep.subr.mxu0 0.0
        %642 = vmatpush2.msra.mxu0 0.0
        %643 = vmatprep.subr.mxu0 0.0
        %644 = vmatpush2.msra.mxu0 0.0
        %645 = vmatprep.subr.mxu0 0.0
        %646 = vmatpush2.msra.mxu0 0.0
        %647 = vmatprep.subr.mxu0 0.0
        %648 = vmatpush2.msra.mxu0 0.0
        %649 = vmatprep.subr.mxu0 0.0
        %650 = vmatpush2.msra.mxu0 0.0
        %651 = vmatprep.subr.mxu0 0.0
        %652 = vmatpush2.msra.mxu0 0.0
        %653 = vmatprep.subr.mxu0 0.0
        %654 = vmatpush2.msra.mxu0 0.0
        %655 = vmatprep.subr.mxu0 0.0
        %656 = vmatpush2.msra.mxu0 0.0
        %657 = vmatprep.subr.mxu0 0.0
        %658 = vmatpush2.msra.mxu0 0.0
        %659 = vmatprep.subr.mxu0 0.0
        %660 = vmatpush2.msra.mxu0 0.0
        %661 = vmatprep.subr.mxu0 0.0
        %662 = vmatpush2.msra.mxu0 0.0
        %663 = vmatprep.subr.mxu0 0.0
        %664 = vmatpush2.msra.mxu0 0.0
        %665 = vmatprep.subr.mxu0 0.0
        %666 = vmatpush2.msra.mxu0 0.0
        %667 = vmatprep.subr.mxu0 0.0
        %668 = vmatpush2.msra.mxu0 0.0
        %669 = vmatprep.subr.mxu0 0.0
        %670 = vmatpush2.msra.mxu0 0.0
        %671 = vmatprep.subr.mxu0 0.0
        %672 = vmatpush2.msra.mxu0 0.0
        %673 = vmatprep.mubr.f32.mxu0 0.0
        %674 = vmatmul.mubr.f32.gmra.mxu0 %v465
        %v675 = vpop.f32.mrf.mxu0
        %v676 = vadd.f32 %v461, %v675
        %v677 = vpop.f32.mrf.mxu0
        %678 = vdwg.mxu0
        %v680 = vlaneseq
        %v681 = vshrl.u32 %v680, 7
        %v682 = vsub.s32 0, %v681
        %v683 = vrot.slane %v445, %v682
        %v684 = vlaneseq
        %v685 = vshrl.u32 %v684, 7
        %v686 = vsub.s32 1, %v685
        %v687 = vrot.slane %v445, %v686
        %v688 = vlaneseq
        %v689 = vshrl.u32 %v688, 7
        %v690 = vsub.s32 2, %v689
        %v691 = vrot.slane %v445, %v690
        %v692 = vlaneseq
        %v693 = vshrl.u32 %v692, 7
        %v694 = vsub.s32 3, %v693
        %v695 = vrot.slane %v445, %v694
        %v696 = vlaneseq
        %v697 = vshrl.u32 %v696, 7
        %v698 = vsub.s32 4, %v697
        %v699 = vrot.slane %v445, %v698
        %v705 = vmul.f32 %v534, %v683
        %v706 = vmul.f32 %v536, %v687
        %v707 = vmul.f32 %v605, %v691
        %v708 = vmul.f32 %v607, %v695
        %v709 = vmul.f32 %v676, %v699
        %v710 = vld [vmem:[%s401] sm:$0xff]
        %v711 = vld [vmem:[%s401 + $0x8] sm:$0xff]
        %v712 = vld [vmem:[%s401 + $0x10] sm:$0xff]
        %v713 = vld [vmem:[%s401 + $0x18] sm:$0xff]
        %v714 = vld [vmem:[%s401 + $0x20] sm:$0xff]
        %v715 = vld [vmem:[%s401 + $0x28] sm:$0xff]
        %v716 = vld [vmem:[%s401 + $0x30] sm:$0xff]
        %v717 = vld [vmem:[%s401 + $0x38] sm:$0xff]
        %v718 = vld [vmem:[%s401 + $0x40] sm:$0xff]
        %v719 = vld [vmem:[%s401 + $0x48] sm:$0xff]
        %720 = vmatprep.subr.mxu0 0.0
        %721 = vmatpush1.msra.mxu0 0.0
        %722 = vmatprep.subr.mxu0 0.0
        %723 = vmatpush1.msra.mxu0 0.0
        %724 = vmatprep.subr.mxu0 0.0
        %725 = vmatpush1.msra.mxu0 0.0
        %726 = vmatprep.subr.mxu0 0.0
        %727 = vmatpush1.msra.mxu0 0.0
        %728 = vmatprep.subr.mxu0 0.0
        %729 = vmatpush1.msra.mxu0 0.0
        %730 = vmatprep.subr.mxu0 0.0
        %731 = vmatpush1.msra.mxu0 0.0
        %732 = vmatprep.subr.mxu0 0.0
        %733 = vmatpush1.msra.mxu0 0.0
        %734 = vmatprep.subr.mxu0 0.0
        %735 = vmatpush1.msra.mxu0 0.0
        %736 = vmatprep.subr.mxu0 0.0
        %737 = vmatpush1.msra.mxu0 0.0
        %738 = vmatprep.subr.mxu0 0.0
        %739 = vmatpush1.msra.mxu0 0.0
        %740 = vmatprep.subr.mxu0 0.0
        %741 = vmatpush1.msra.mxu0 0.0
        %742 = vmatprep.subr.mxu0 0.0
        %743 = vmatpush1.msra.mxu0 0.0
        %744 = vmatprep.subr.mxu0 0.0
        %745 = vmatpush1.msra.mxu0 0.0
        %746 = vmatprep.subr.mxu0 0.0
        %747 = vmatpush1.msra.mxu0 0.0
        %748 = vmatprep.subr.mxu0 %v716
        %749 = vmatpush1.msra.mxu0 %v715
        %750 = vmatprep.subr.mxu0 %v711
        %751 = vmatpush1.msra.mxu0 %v710
        %752 = vmatprep.subr.mxu0 0.0
        %753 = vmatpush2.msra.mxu0 0.0
        %754 = vmatprep.subr.mxu0 0.0
        %755 = vmatpush2.msra.mxu0 0.0
        %756 = vmatprep.subr.mxu0 0.0
        %757 = vmatpush2.msra.mxu0 0.0
        %758 = vmatprep.subr.mxu0 0.0
        %759 = vmatpush2.msra.mxu0 0.0
        %760 = vmatprep.subr.mxu0 0.0
        %761 = vmatpush2.msra.mxu0 0.0
        %762 = vmatprep.subr.mxu0 0.0
        %763 = vmatpush2.msra.mxu0 0.0
        %764 = vmatprep.subr.mxu0 0.0
        %765 = vmatpush2.msra.mxu0 0.0
        %766 = vmatprep.subr.mxu0 0.0
        %767 = vmatpush2.msra.mxu0 0.0
        %768 = vmatprep.subr.mxu0 0.0
        %769 = vmatpush2.msra.mxu0 0.0
        %770 = vmatprep.subr.mxu0 0.0
        %771 = vmatpush2.msra.mxu0 0.0
        %772 = vmatprep.subr.mxu0 0.0
        %773 = vmatpush2.msra.mxu0 0.0
        %774 = vmatprep.subr.mxu0 0.0
        %775 = vmatpush2.msra.mxu0 0.0
        %776 = vmatprep.subr.mxu0 0.0
        %777 = vmatpush2.msra.mxu0 0.0
        %778 = vmatprep.subr.mxu0 0.0
        %779 = vmatpush2.msra.mxu0 0.0
        %780 = vmatprep.subr.mxu0 0.0
        %781 = vmatpush2.msra.mxu0 0.0
        %782 = vmatprep.subr.mxu0 0.0
        %783 = vmatpush2.msra.mxu0 0.0
        %784 = vmatprep.mubr.f32.mxu0 0.0
        %785 = vmatmul.mubr.f32.gmra.mxu0 %v465
        %v786 = vpop.f32.mrf.mxu0
        %v787 = vadd.f32 %v461, %v786
        %v788 = vpop.f32.mrf.mxu0
        %v789 = vadd.f32 %v461, %v788
        %790 = vdwg.mxu0
        %791 = vmatprep.subr.mxu0 0.0
        %792 = vmatpush1.msra.mxu0 0.0
        %793 = vmatprep.subr.mxu0 0.0
        %794 = vmatpush1.msra.mxu0 0.0
        %795 = vmatprep.subr.mxu0 0.0
        %796 = vmatpush1.msra.mxu0 0.0
        %797 = vmatprep.subr.mxu0 0.0
        %798 = vmatpush1.msra.mxu0 0.0
        %799 = vmatprep.subr.mxu0 0.0
        %800 = vmatpush1.msra.mxu0 0.0
        %801 = vmatprep.subr.mxu0 0.0
        %802 = vmatpush1.msra.mxu0 0.0
        %803 = vmatprep.subr.mxu0 0.0
        %804 = vmatpush1.msra.mxu0 0.0
        %805 = vmatprep.subr.mxu0 0.0
        %806 = vmatpush1.msra.mxu0 0.0
        %807 = vmatprep.subr.mxu0 0.0
        %808 = vmatpush1.msra.mxu0 0.0
        %809 = vmatprep.subr.mxu0 0.0
        %810 = vmatpush1.msra.mxu0 0.0
        %811 = vmatprep.subr.mxu0 0.0
        %812 = vmatpush1.msra.mxu0 0.0
        %813 = vmatprep.subr.mxu0 0.0
        %814 = vmatpush1.msra.mxu0 0.0
        %815 = vmatprep.subr.mxu0 0.0
        %816 = vmatpush1.msra.mxu0 0.0
        %817 = vmatprep.subr.mxu0 0.0
        %818 = vmatpush1.msra.mxu0 0.0
        %819 = vmatprep.subr.mxu0 %v718
        %820 = vmatpush1.msra.mxu0 %v717
        %821 = vmatprep.subr.mxu0 %v713
        %822 = vmatpush1.msra.mxu0 %v712
        %823 = vmatprep.subr.mxu0 0.0
        %824 = vmatpush2.msra.mxu0 0.0
        %825 = vmatprep.subr.mxu0 0.0
        %826 = vmatpush2.msra.mxu0 0.0
        %827 = vmatprep.subr.mxu0 0.0
        %828 = vmatpush2.msra.mxu0 0.0
        %829 = vmatprep.subr.mxu0 0.0
        %830 = vmatpush2.msra.mxu0 0.0
        %831 = vmatprep.subr.mxu0 0.0
        %832 = vmatpush2.msra.mxu0 0.0
        %833 = vmatprep.subr.mxu0 0.0
        %834 = vmatpush2.msra.mxu0 0.0
        %835 = vmatprep.subr.mxu0 0.0
        %836 = vmatpush2.msra.mxu0 0.0
        %837 = vmatprep.subr.mxu0 0.0
        %838 = vmatpush2.msra.mxu0 0.0
        %839 = vmatprep.subr.mxu0 0.0
        %840 = vmatpush2.msra.mxu0 0.0
        %841 = vmatprep.subr.mxu0 0.0
        %842 = vmatpush2.msra.mxu0 0.0
        %843 = vmatprep.subr.mxu0 0.0
        %844 = vmatpush2.msra.mxu0 0.0
        %845 = vmatprep.subr.mxu0 0.0
        %846 = vmatpush2.msra.mxu0 0.0
        %847 = vmatprep.subr.mxu0 0.0
        %848 = vmatpush2.msra.mxu0 0.0
        %849 = vmatprep.subr.mxu0 0.0
        %850 = vmatpush2.msra.mxu0 0.0
        %851 = vmatprep.subr.mxu0 0.0
        %852 = vmatpush2.msra.mxu0 0.0
        %853 = vmatprep.subr.mxu0 0.0
        %854 = vmatpush2.msra.mxu0 0.0
        %855 = vmatprep.mubr.f32.mxu0 0.0
        %856 = vmatmul.mubr.f32.gmra.mxu0 %v465
        %v857 = vpop.f32.mrf.mxu0
        %v858 = vadd.f32 %v461, %v857
        %v859 = vpop.f32.mrf.mxu0
        %v860 = vadd.f32 %v461, %v859
        %861 = vdwg.mxu0
        %862 = vmatprep.subr.mxu0 0.0
        %863 = vmatpush1.msra.mxu0 0.0
        %864 = vmatprep.subr.mxu0 0.0
        %865 = vmatpush1.msra.mxu0 0.0
        %866 = vmatprep.subr.mxu0 0.0
        %867 = vmatpush1.msra.mxu0 0.0
        %868 = vmatprep.subr.mxu0 0.0
        %869 = vmatpush1.msra.mxu0 0.0
        %870 = vmatprep.subr.mxu0 0.0
        %871 = vmatpush1.msra.mxu0 0.0
        %872 = vmatprep.subr.mxu0 0.0
        %873 = vmatpush1.msra.mxu0 0.0
        %874 = vmatprep.subr.mxu0 0.0
        %875 = vmatpush1.msra.mxu0 0.0
        %876 = vmatprep.subr.mxu0 0.0
        %877 = vmatpush1.msra.mxu0 0.0
        %878 = vmatprep.subr.mxu0 0.0
        %879 = vmatpush1.msra.mxu0 0.0
        %880 = vmatprep.subr.mxu0 0.0
        %881 = vmatpush1.msra.mxu0 0.0
        %882 = vmatprep.subr.mxu0 0.0
        %883 = vmatpush1.msra.mxu0 0.0
        %884 = vmatprep.subr.mxu0 0.0
        %885 = vmatpush1.msra.mxu0 0.0
        %886 = vmatprep.subr.mxu0 0.0
        %887 = vmatpush1.msra.mxu0 0.0
        %888 = vmatprep.subr.mxu0 0.0
        %889 = vmatpush1.msra.mxu0 0.0
        %890 = vmatprep.subr.mxu0 0.0
        %891 = vmatpush1.msra.mxu0 %v719
        %892 = vmatprep.subr.mxu0 0.0
        %893 = vmatpush1.msra.mxu0 %v714
        %894 = vmatprep.subr.mxu0 0.0
        %895 = vmatpush2.msra.mxu0 0.0
        %896 = vmatprep.subr.mxu0 0.0
        %897 = vmatpush2.msra.mxu0 0.0
        %898 = vmatprep.subr.mxu0 0.0
        %899 = vmatpush2.msra.mxu0 0.0
        %900 = vmatprep.subr.mxu0 0.0
        %901 = vmatpush2.msra.mxu0 0.0
        %902 = vmatprep.subr.mxu0 0.0
        %903 = vmatpush2.msra.mxu0 0.0
        %904 = vmatprep.subr.mxu0 0.0
        %905 = vmatpush2.msra.mxu0 0.0
        %906 = vmatprep.subr.mxu0 0.0
        %907 = vmatpush2.msra.mxu0 0.0
        %908 = vmatprep.subr.mxu0 0.0
        %909 = vmatpush2.msra.mxu0 0.0
        %910 = vmatprep.subr.mxu0 0.0
        %911 = vmatpush2.msra.mxu0 0.0
        %912 = vmatprep.subr.mxu0 0.0
        %913 = vmatpush2.msra.mxu0 0.0
        %914 = vmatprep.subr.mxu0 0.0
        %915 = vmatpush2.msra.mxu0 0.0
        %916 = vmatprep.subr.mxu0 0.0
        %917 = vmatpush2.msra.mxu0 0.0
        %918 = vmatprep.subr.mxu0 0.0
        %919 = vmatpush2.msra.mxu0 0.0
        %920 = vmatprep.subr.mxu0 0.0
        %921 = vmatpush2.msra.mxu0 0.0
        %922 = vmatprep.subr.mxu0 0.0
        %923 = vmatpush2.msra.mxu0 0.0
        %924 = vmatprep.subr.mxu0 0.0
        %925 = vmatpush2.msra.mxu0 0.0
        %926 = vmatprep.mubr.f32.mxu0 0.0
        %927 = vmatmul.mubr.f32.gmra.mxu0 %v465
        %v928 = vpop.f32.mrf.mxu0
        %v929 = vadd.f32 %v461, %v928
        %v930 = vpop.f32.mrf.mxu0
        %931 = vdwg.mxu0
        %v932 = vmul.f32 %v787, %v683
        %v933 = vmul.f32 %v789, %v687
        %v934 = vmul.f32 %v858, %v691
        %v935 = vmul.f32 %v860, %v695
        %v936 = vmul.f32 %v929, %v699
        %v937 = vld [vmem:[%s5] sm:$0xff]
        %943 = vrot.lane.b32.xlu0 %v705, 100
        %v944 = vpop.permute.xlu0 %943
        %945 = vrot.lane.b32.xlu0 %v706, 100
        %v946 = vpop.permute.xlu0 %945
        %947 = vrot.lane.b32.xlu0 %v707, 100
        %v948 = vpop.permute.xlu0 %947
        %949 = vrot.lane.b32.xlu0 %v708, 100
        %v950 = vpop.permute.xlu0 %949
        %951 = vrot.lane.b32.xlu0 %v709, 100
        %v952 = vpop.permute.xlu0 %951
        %vm953 = vcmask 818176
        %v954 = vsel %vm953, %v944, %v946
        %v955 = vsel %vm953, %v946, %v948
        %v956 = vsel %vm953, %v948, %v950
        %v957 = vsel %vm953, %v950, %v952
        %v960 = vsel %vm953, 0.0, %v944
        %vm961 = vcmask 293888
        %v962 = vsel %vm961, %v952, 0.0
        %965 = vrot.lane.b32.xlu0 %v960, 127
        %v966 = vpop.permute.xlu0 %965
        %967 = vrot.lane.b32.xlu0 %v954, 127
        %v968 = vpop.permute.xlu0 %967
        %969 = vrot.lane.b32.xlu0 %v955, 127
        %v970 = vpop.permute.xlu0 %969
        %971 = vrot.lane.b32.xlu0 %v956, 127
        %v972 = vpop.permute.xlu0 %971
        %973 = vrot.lane.b32.xlu0 %v957, 127
        %v974 = vpop.permute.xlu0 %973
        %975 = vrot.lane.b32.xlu0 %v962, 127
        %v976 = vpop.permute.xlu0 %975
        %vm977 = vcmask 1039360
        %v978 = vsel %vm977, %v966, %v968
        %v979 = vsel %vm977, %v968, %v970
        %v980 = vsel %vm977, %v970, %v972
        %v981 = vsel %vm977, %v972, %v974
        %v982 = vsel %vm977, %v974, %v976
        %983 = vrot.lane.b32.xlu0 %v960, 126
        %v984 = vpop.permute.xlu0 %983
        %985 = vrot.lane.b32.xlu0 %v954, 126
        %v986 = vpop.permute.xlu0 %985
        %987 = vrot.lane.b32.xlu0 %v955, 126
        %v988 = vpop.permute.xlu0 %987
        %989 = vrot.lane.b32.xlu0 %v956, 126
        %v990 = vpop.permute.xlu0 %989
        %991 = vrot.lane.b32.xlu0 %v957, 126
        %v992 = vpop.permute.xlu0 %991
        %993 = vrot.lane.b32.xlu0 %v962, 126
        %v994 = vpop.permute.xlu0 %993
        %vm995 = vcmask 1031168
        %v996 = vsel %vm995, %v984, %v986
        %v997 = vsel %vm995, %v986, %v988
        %v998 = vsel %vm995, %v988, %v990
        %v999 = vsel %vm995, %v990, %v992
        %v1000 = vsel %vm995, %v992, %v994
        %1001 = vrot.lane.b32.xlu0 %v960, 104
        %v1002 = vpop.permute.xlu0 %1001
        %1003 = vrot.lane.b32.xlu0 %v954, 104
        %v1004 = vpop.permute.xlu0 %1003
        %1005 = vrot.lane.b32.xlu0 %v955, 104
        %v1006 = vpop.permute.xlu0 %1005
        %1007 = vrot.lane.b32.xlu0 %v956, 104
        %v1008 = vpop.permute.xlu0 %1007
        %1009 = vrot.lane.b32.xlu0 %v957, 104
        %v1010 = vpop.permute.xlu0 %1009
        %1011 = vrot.lane.b32.xlu0 %v962, 104
        %v1012 = vpop.permute.xlu0 %1011
        %vm1013 = vcmask 850944
        %v1014 = vsel %vm1013, %v1002, %v1004
        %v1015 = vsel %vm1013, %v1004, %v1006
        %v1016 = vsel %vm1013, %v1006, %v1008
        %v1017 = vsel %vm1013, %v1008, %v1010
        %v1018 = vsel %vm1013, %v1010, %v1012
        %1019 = vrot.lane.b32.xlu0 %v960, 103
        %v1020 = vpop.permute.xlu0 %1019
        %1021 = vrot.lane.b32.xlu0 %v954, 103
        %v1022 = vpop.permute.xlu0 %1021
        %1023 = vrot.lane.b32.xlu0 %v955, 103
        %v1024 = vpop.permute.xlu0 %1023
        %1025 = vrot.lane.b32.xlu0 %v956, 103
        %v1026 = vpop.permute.xlu0 %1025
        %1027 = vrot.lane.b32.xlu0 %v957, 103
        %v1028 = vpop.permute.xlu0 %1027
        %1029 = vrot.lane.b32.xlu0 %v962, 103
        %v1030 = vpop.permute.xlu0 %1029
        %vm1031 = vcmask 842752
        %v1032 = vsel %vm1031, %v1020, %v1022
        %v1033 = vsel %vm1031, %v1022, %v1024
        %v1034 = vsel %vm1031, %v1024, %v1026
        %v1035 = vsel %vm1031, %v1026, %v1028
        %v1036 = vsel %vm1031, %v1028, %v1030
        %1037 = vrot.lane.b32.xlu0 %v960, 102
        %v1038 = vpop.permute.xlu0 %1037
        %1039 = vrot.lane.b32.xlu0 %v954, 102
        %v1040 = vpop.permute.xlu0 %1039
        %1041 = vrot.lane.b32.xlu0 %v955, 102
        %v1042 = vpop.permute.xlu0 %1041
        %1043 = vrot.lane.b32.xlu0 %v956, 102
        %v1044 = vpop.permute.xlu0 %1043
        %1045 = vrot.lane.b32.xlu0 %v957, 102
        %v1046 = vpop.permute.xlu0 %1045
        %1047 = vrot.lane.b32.xlu0 %v962, 102
        %v1048 = vpop.permute.xlu0 %1047
        %vm1049 = vcmask 834560
        %v1050 = vsel %vm1049, %v1038, %v1040
        %v1051 = vsel %vm1049, %v1040, %v1042
        %v1052 = vsel %vm1049, %v1042, %v1044
        %v1053 = vsel %vm1049, %v1044, %v1046
        %v1054 = vsel %vm1049, %v1046, %v1048
        %1055 = vrot.lane.b32.xlu0 %v960, 80
        %v1056 = vpop.permute.xlu0 %1055
        %1057 = vrot.lane.b32.xlu0 %v954, 80
        %v1058 = vpop.permute.xlu0 %1057
        %1059 = vrot.lane.b32.xlu0 %v955, 80
        %v1060 = vpop.permute.xlu0 %1059
        %1061 = vrot.lane.b32.xlu0 %v956, 80
        %v1062 = vpop.permute.xlu0 %1061
        %1063 = vrot.lane.b32.xlu0 %v957, 80
        %v1064 = vpop.permute.xlu0 %1063
        %1065 = vrot.lane.b32.xlu0 %v962, 80
        %v1066 = vpop.permute.xlu0 %1065
        %vm1067 = vcmask 654336
        %v1068 = vsel %vm1067, %v1056, %v1058
        %v1069 = vsel %vm1067, %v1058, %v1060
        %v1070 = vsel %vm1067, %v1060, %v1062
        %v1071 = vsel %vm1067, %v1062, %v1064
        %v1072 = vsel %vm1067, %v1064, %v1066
        %1073 = vrot.lane.b32.xlu0 %v960, 79
        %v1074 = vpop.permute.xlu0 %1073
        %1075 = vrot.lane.b32.xlu0 %v954, 79
        %v1076 = vpop.permute.xlu0 %1075
        %1077 = vrot.lane.b32.xlu0 %v955, 79
        %v1078 = vpop.permute.xlu0 %1077
        %1079 = vrot.lane.b32.xlu0 %v956, 79
        %v1080 = vpop.permute.xlu0 %1079
        %1081 = vrot.lane.b32.xlu0 %v957, 79
        %v1082 = vpop.permute.xlu0 %1081
        %1083 = vrot.lane.b32.xlu0 %v962, 79
        %v1084 = vpop.permute.xlu0 %1083
        %vm1085 = vcmask 646144
        %v1086 = vsel %vm1085, %v1074, %v1076
        %v1087 = vsel %vm1085, %v1076, %v1078
        %v1088 = vsel %vm1085, %v1078, %v1080
        %v1089 = vsel %vm1085, %v1080, %v1082
        %v1090 = vsel %vm1085, %v1082, %v1084
        %1091 = vrot.lane.b32.xlu0 %v960, 78
        %v1092 = vpop.permute.xlu0 %1091
        %1093 = vrot.lane.b32.xlu0 %v954, 78
        %v1094 = vpop.permute.xlu0 %1093
        %1095 = vrot.lane.b32.xlu0 %v955, 78
        %v1096 = vpop.permute.xlu0 %1095
        %1097 = vrot.lane.b32.xlu0 %v956, 78
        %v1098 = vpop.permute.xlu0 %1097
        %1099 = vrot.lane.b32.xlu0 %v957, 78
        %v1100 = vpop.permute.xlu0 %1099
        %1101 = vrot.lane.b32.xlu0 %v962, 78
        %v1102 = vpop.permute.xlu0 %1101
        %vm1103 = vcmask 637952
        %v1104 = vsel %vm1103, %v1092, %v1094
        %v1105 = vsel %vm1103, %v1094, %v1096
        %v1106 = vsel %vm1103, %v1096, %v1098
        %v1107 = vsel %vm1103, %v1098, %v1100
        %v1108 = vsel %vm1103, %v1100, %v1102
        %v1109 = vld [vmem:[%s6] sm:$0xff]
        %1115 = vrot.lane.b32.xlu0 %v932, 100
        %v1116 = vpop.permute.xlu0 %1115
        %1117 = vrot.lane.b32.xlu0 %v933, 100
        %v1118 = vpop.permute.xlu0 %1117
        %1119 = vrot.lane.b32.xlu0 %v934, 100
        %v1120 = vpop.permute.xlu0 %1119
        %1121 = vrot.lane.b32.xlu0 %v935, 100
        %v1122 = vpop.permute.xlu0 %1121
        %1123 = vrot.lane.b32.xlu0 %v936, 100
        %v1124 = vpop.permute.xlu0 %1123
        %v1125 = vsel %vm953, %v1116, %v1118
        %v1126 = vsel %vm953, %v1118, %v1120
        %v1127 = vsel %vm953, %v1120, %v1122
        %v1128 = vsel %vm953, %v1122, %v1124
        %v1131 = vsel %vm953, 0.0, %v1116
        %v1132 = vsel %vm961, %v1124, 0.0
        %1135 = vrot.lane.b32.xlu0 %v1131, 127
        %v1136 = vpop.permute.xlu0 %1135
        %1137 = vrot.lane.b32.xlu0 %v1125, 127
        %v1138 = vpop.permute.xlu0 %1137
        %1139 = vrot.lane.b32.xlu0 %v1126, 127
        %v1140 = vpop.permute.xlu0 %1139
        %1141 = vrot.lane.b32.xlu0 %v1127, 127
        %v1142 = vpop.permute.xlu0 %1141
        %1143 = vrot.lane.b32.xlu0 %v1128, 127
        %v1144 = vpop.permute.xlu0 %1143
        %1145 = vrot.lane.b32.xlu0 %v1132, 127
        %v1146 = vpop.permute.xlu0 %1145
        %v1147 = vsel %vm977, %v1136, %v1138
        %v1148 = vsel %vm977, %v1138, %v1140
        %v1149 = vsel %vm977, %v1140, %v1142
        %v1150 = vsel %vm977, %v1142, %v1144
        %v1151 = vsel %vm977, %v1144, %v1146
        %1152 = vrot.lane.b32.xlu0 %v1131, 126
        %v1153 = vpop.permute.xlu0 %1152
        %1154 = vrot.lane.b32.xlu0 %v1125, 126
        %v1155 = vpop.permute.xlu0 %1154
        %1156 = vrot.lane.b32.xlu0 %v1126, 126
        %v1157 = vpop.permute.xlu0 %1156
        %1158 = vrot.lane.b32.xlu0 %v1127, 126
        %v1159 = vpop.permute.xlu0 %1158
        %1160 = vrot.lane.b32.xlu0 %v1128, 126
        %v1161 = vpop.permute.xlu0 %1160
        %1162 = vrot.lane.b32.xlu0 %v1132, 126
        %v1163 = vpop.permute.xlu0 %1162
        %v1164 = vsel %vm995, %v1153, %v1155
        %v1165 = vsel %vm995, %v1155, %v1157
        %v1166 = vsel %vm995, %v1157, %v1159
        %v1167 = vsel %vm995, %v1159, %v1161
        %v1168 = vsel %vm995, %v1161, %v1163
        %1169 = vrot.lane.b32.xlu0 %v1131, 104
        %v1170 = vpop.permute.xlu0 %1169
        %1171 = vrot.lane.b32.xlu0 %v1125, 104
        %v1172 = vpop.permute.xlu0 %1171
        %1173 = vrot.lane.b32.xlu0 %v1126, 104
        %v1174 = vpop.permute.xlu0 %1173
        %1175 = vrot.lane.b32.xlu0 %v1127, 104
        %v1176 = vpop.permute.xlu0 %1175
        %1177 = vrot.lane.b32.xlu0 %v1128, 104
        %v1178 = vpop.permute.xlu0 %1177
        %1179 = vrot.lane.b32.xlu0 %v1132, 104
        %v1180 = vpop.permute.xlu0 %1179
        %v1181 = vsel %vm1013, %v1170, %v1172
        %v1182 = vsel %vm1013, %v1172, %v1174
        %v1183 = vsel %vm1013, %v1174, %v1176
        %v1184 = vsel %vm1013, %v1176, %v1178
        %v1185 = vsel %vm1013, %v1178, %v1180
        %1186 = vrot.lane.b32.xlu0 %v1131, 103
        %v1187 = vpop.permute.xlu0 %1186
        %1188 = vrot.lane.b32.xlu0 %v1125, 103
        %v1189 = vpop.permute.xlu0 %1188
        %1190 = vrot.lane.b32.xlu0 %v1126, 103
        %v1191 = vpop.permute.xlu0 %1190
        %1192 = vrot.lane.b32.xlu0 %v1127, 103
        %v1193 = vpop.permute.xlu0 %1192
        %1194 = vrot.lane.b32.xlu0 %v1128, 103
        %v1195 = vpop.permute.xlu0 %1194
        %1196 = vrot.lane.b32.xlu0 %v1132, 103
        %v1197 = vpop.permute.xlu0 %1196
        %v1198 = vsel %vm1031, %v1187, %v1189
        %v1199 = vsel %vm1031, %v1189, %v1191
        %v1200 = vsel %vm1031, %v1191, %v1193
        %v1201 = vsel %vm1031, %v1193, %v1195
        %v1202 = vsel %vm1031, %v1195, %v1197
        %1203 = vrot.lane.b32.xlu0 %v1131, 102
        %v1204 = vpop.permute.xlu0 %1203
        %1205 = vrot.lane.b32.xlu0 %v1125, 102
        %v1206 = vpop.permute.xlu0 %1205
        %1207 = vrot.lane.b32.xlu0 %v1126, 102
        %v1208 = vpop.permute.xlu0 %1207
        %1209 = vrot.lane.b32.xlu0 %v1127, 102
        %v1210 = vpop.permute.xlu0 %1209
        %1211 = vrot.lane.b32.xlu0 %v1128, 102
        %v1212 = vpop.permute.xlu0 %1211
        %1213 = vrot.lane.b32.xlu0 %v1132, 102
        %v1214 = vpop.permute.xlu0 %1213
        %v1215 = vsel %vm1049, %v1204, %v1206
        %v1216 = vsel %vm1049, %v1206, %v1208
        %v1217 = vsel %vm1049, %v1208, %v1210
        %v1218 = vsel %vm1049, %v1210, %v1212
        %v1219 = vsel %vm1049, %v1212, %v1214
        %1220 = vrot.lane.b32.xlu0 %v1131, 80
        %v1221 = vpop.permute.xlu0 %1220
        %1222 = vrot.lane.b32.xlu0 %v1125, 80
        %v1223 = vpop.permute.xlu0 %1222
        %1224 = vrot.lane.b32.xlu0 %v1126, 80
        %v1225 = vpop.permute.xlu0 %1224
        %1226 = vrot.lane.b32.xlu0 %v1127, 80
        %v1227 = vpop.permute.xlu0 %1226
        %1228 = vrot.lane.b32.xlu0 %v1128, 80
        %v1229 = vpop.permute.xlu0 %1228
        %1230 = vrot.lane.b32.xlu0 %v1132, 80
        %v1231 = vpop.permute.xlu0 %1230
        %v1232 = vsel %vm1067, %v1221, %v1223
        %v1233 = vsel %vm1067, %v1223, %v1225
        %v1234 = vsel %vm1067, %v1225, %v1227
        %v1235 = vsel %vm1067, %v1227, %v1229
        %v1236 = vsel %vm1067, %v1229, %v1231
        %1237 = vrot.lane.b32.xlu0 %v1131, 79
        %v1238 = vpop.permute.xlu0 %1237
        %1239 = vrot.lane.b32.xlu0 %v1125, 79
        %v1240 = vpop.permute.xlu0 %1239
        %1241 = vrot.lane.b32.xlu0 %v1126, 79
        %v1242 = vpop.permute.xlu0 %1241
        %1243 = vrot.lane.b32.xlu0 %v1127, 79
        %v1244 = vpop.permute.xlu0 %1243
        %1245 = vrot.lane.b32.xlu0 %v1128, 79
        %v1246 = vpop.permute.xlu0 %1245
        %1247 = vrot.lane.b32.xlu0 %v1132, 79
        %v1248 = vpop.permute.xlu0 %1247
        %v1249 = vsel %vm1085, %v1238, %v1240
        %v1250 = vsel %vm1085, %v1240, %v1242
        %v1251 = vsel %vm1085, %v1242, %v1244
        %v1252 = vsel %vm1085, %v1244, %v1246
        %v1253 = vsel %vm1085, %v1246, %v1248
        %1254 = vrot.lane.b32.xlu0 %v1131, 78
        %v1255 = vpop.permute.xlu0 %1254
        %1256 = vrot.lane.b32.xlu0 %v1125, 78
        %v1257 = vpop.permute.xlu0 %1256
        %1258 = vrot.lane.b32.xlu0 %v1126, 78
        %v1259 = vpop.permute.xlu0 %1258
        %1260 = vrot.lane.b32.xlu0 %v1127, 78
        %v1261 = vpop.permute.xlu0 %1260
        %1262 = vrot.lane.b32.xlu0 %v1128, 78
        %v1263 = vpop.permute.xlu0 %1262
        %1264 = vrot.lane.b32.xlu0 %v1132, 78
        %v1265 = vpop.permute.xlu0 %1264
        %v1266 = vsel %vm1103, %v1255, %v1257
        %v1267 = vsel %vm1103, %v1257, %v1259
        %v1268 = vsel %vm1103, %v1259, %v1261
        %v1269 = vsel %vm1103, %v1261, %v1263
        %v1270 = vsel %vm1103, %v1263, %v1265
        %1271 = vrot.lane.b32.xlu0 %v1131, 53
        %v1272 = vpop.permute.xlu0 %1271
        %1273 = vrot.lane.b32.xlu0 %v1125, 53
        %v1274 = vpop.permute.xlu0 %1273
        %1275 = vrot.lane.b32.xlu0 %v1126, 53
        %v1276 = vpop.permute.xlu0 %1275
        %1277 = vrot.lane.b32.xlu0 %v1127, 53
        %v1278 = vpop.permute.xlu0 %1277
        %1279 = vrot.lane.b32.xlu0 %v1128, 53
        %v1280 = vpop.permute.xlu0 %1279
        %1281 = vrot.lane.b32.xlu0 %v1132, 53
        %v1282 = vpop.permute.xlu0 %1281
        %1283 = vrot.lane.b32.xlu0 %v1147, 53
        %v1284 = vpop.permute.xlu0 %1283
        %1285 = vrot.lane.b32.xlu0 %v1148, 53
        %v1286 = vpop.permute.xlu0 %1285
        %1287 = vrot.lane.b32.xlu0 %v1149, 53
        %v1288 = vpop.permute.xlu0 %1287
        %1289 = vrot.lane.b32.xlu0 %v1150, 53
        %v1290 = vpop.permute.xlu0 %1289
        %1291 = vrot.lane.b32.xlu0 %v1151, 53
        %v1292 = vpop.permute.xlu0 %1291
        %1293 = vrot.lane.b32.xlu0 %v1146, 53
        %v1294 = vpop.permute.xlu0 %1293
        %1295 = vrot.lane.b32.xlu0 %v1164, 53
        %v1296 = vpop.permute.xlu0 %1295
        %1297 = vrot.lane.b32.xlu0 %v1165, 53
        %v1298 = vpop.permute.xlu0 %1297
        %1299 = vrot.lane.b32.xlu0 %v1166, 53
        %v1300 = vpop.permute.xlu0 %1299
        %1301 = vrot.lane.b32.xlu0 %v1167, 53
        %v1302 = vpop.permute.xlu0 %1301
        %1303 = vrot.lane.b32.xlu0 %v1168, 53
        %v1304 = vpop.permute.xlu0 %1303
        %1305 = vrot.lane.b32.xlu0 %v1163, 53
        %v1306 = vpop.permute.xlu0 %1305
        %1307 = vrot.lane.b32.xlu0 %v1181, 53
        %v1308 = vpop.permute.xlu0 %1307
        %1309 = vrot.lane.b32.xlu0 %v1182, 53
        %v1310 = vpop.permute.xlu0 %1309
        %1311 = vrot.lane.b32.xlu0 %v1183, 53
        %v1312 = vpop.permute.xlu0 %1311
        %1313 = vrot.lane.b32.xlu0 %v1184, 53
        %v1314 = vpop.permute.xlu0 %1313
        %1315 = vrot.lane.b32.xlu0 %v1185, 53
        %v1316 = vpop.permute.xlu0 %1315
        %1317 = vrot.lane.b32.xlu0 %v1180, 53
        %v1318 = vpop.permute.xlu0 %1317
        %1319 = vrot.lane.b32.xlu0 %v1198, 53
        %v1320 = vpop.permute.xlu0 %1319
        %1321 = vrot.lane.b32.xlu0 %v1199, 53
        %v1322 = vpop.permute.xlu0 %1321
        %1323 = vrot.lane.b32.xlu0 %v1200, 53
        %v1324 = vpop.permute.xlu0 %1323
        %1325 = vrot.lane.b32.xlu0 %v1201, 53
        %v1326 = vpop.permute.xlu0 %1325
        %1327 = vrot.lane.b32.xlu0 %v1202, 53
        %v1328 = vpop.permute.xlu0 %1327
        %1329 = vrot.lane.b32.xlu0 %v1197, 53
        %v1330 = vpop.permute.xlu0 %1329
        %1331 = vrot.lane.b32.xlu0 %v1215, 53
        %v1332 = vpop.permute.xlu0 %1331
        %1333 = vrot.lane.b32.xlu0 %v1216, 53
        %v1334 = vpop.permute.xlu0 %1333
        %1335 = vrot.lane.b32.xlu0 %v1217, 53
        %v1336 = vpop.permute.xlu0 %1335
        %1337 = vrot.lane.b32.xlu0 %v1218, 53
        %v1338 = vpop.permute.xlu0 %1337
        %1339 = vrot.lane.b32.xlu0 %v1219, 53
        %v1340 = vpop.permute.xlu0 %1339
        %1341 = vrot.lane.b32.xlu0 %v1214, 53
        %v1342 = vpop.permute.xlu0 %1341
        %1343 = vrot.lane.b32.xlu0 %v1232, 53
        %v1344 = vpop.permute.xlu0 %1343
        %1345 = vrot.lane.b32.xlu0 %v1233, 53
        %v1346 = vpop.permute.xlu0 %1345
        %1347 = vrot.lane.b32.xlu0 %v1234, 53
        %v1348 = vpop.permute.xlu0 %1347
        %1349 = vrot.lane.b32.xlu0 %v1235, 53
        %v1350 = vpop.permute.xlu0 %1349
        %1351 = vrot.lane.b32.xlu0 %v1236, 53
        %v1352 = vpop.permute.xlu0 %1351
        %1353 = vrot.lane.b32.xlu0 %v1231, 53
        %v1354 = vpop.permute.xlu0 %1353
        %1355 = vrot.lane.b32.xlu0 %v1249, 53
        %v1356 = vpop.permute.xlu0 %1355
        %1357 = vrot.lane.b32.xlu0 %v1250, 53
        %v1358 = vpop.permute.xlu0 %1357
        %1359 = vrot.lane.b32.xlu0 %v1251, 53
        %v1360 = vpop.permute.xlu0 %1359
        %1361 = vrot.lane.b32.xlu0 %v1252, 53
        %v1362 = vpop.permute.xlu0 %1361
        %1363 = vrot.lane.b32.xlu0 %v1253, 53
        %v1364 = vpop.permute.xlu0 %1363
        %1365 = vrot.lane.b32.xlu0 %v1248, 53
        %v1366 = vpop.permute.xlu0 %1365
        %1367 = vrot.lane.b32.xlu0 %v1266, 53
        %v1368 = vpop.permute.xlu0 %1367
        %1369 = vrot.lane.b32.xlu0 %v1267, 53
        %v1370 = vpop.permute.xlu0 %1369
        %1371 = vrot.lane.b32.xlu0 %v1268, 53
        %v1372 = vpop.permute.xlu0 %1371
        %1373 = vrot.lane.b32.xlu0 %v1269, 53
        %v1374 = vpop.permute.xlu0 %1373
        %1375 = vrot.lane.b32.xlu0 %v1270, 53
        %v1376 = vpop.permute.xlu0 %1375
        %1377 = vrot.lane.b32.xlu0 %v1265, 53
        %v1378 = vpop.permute.xlu0 %1377
        %vm1379 = vcmask 433152
        %v1380 = vsel %vm1379, %v1272, %v1274
        %v1381 = vsel %vm1379, %v1274, %v1276
        %v1382 = vsel %vm1379, %v1276, %v1278
        %v1383 = vsel %vm1379, %v1278, %v1280
        %v1384 = vsel %vm1379, %v1280, %v1282
        %v1385 = vsel %vm1379, %v1284, %v1286
        %v1386 = vsel %vm1379, %v1286, %v1288
        %v1387 = vsel %vm1379, %v1288, %v1290
        %v1388 = vsel %vm1379, %v1290, %v1292
        %v1389 = vsel %vm1379, %v1292, %v1294
        %v1390 = vsel %vm1379, %v1296, %v1298
        %v1391 = vsel %vm1379, %v1298, %v1300
        %v1392 = vsel %vm1379, %v1300, %v1302
        %v1393 = vsel %vm1379, %v1302, %v1304
        %v1394 = vsel %vm1379, %v1304, %v1306
        %v1395 = vsel %vm1379, %v1308, %v1310
        %v1396 = vsel %vm1379, %v1310, %v1312
        %v1397 = vsel %vm1379, %v1312, %v1314
        %v1398 = vsel %vm1379, %v1314, %v1316
        %v1399 = vsel %vm1379, %v1316, %v1318
        %v1400 = vsel %vm1379, %v1320, %v1322
        %v1401 = vsel %vm1379, %v1322, %v1324
        %v1402 = vsel %vm1379, %v1324, %v1326
        %v1403 = vsel %vm1379, %v1326, %v1328
        %v1404 = vsel %vm1379, %v1328, %v1330
        %v1405 = vsel %vm1379, %v1332, %v1334
        %v1406 = vsel %vm1379, %v1334, %v1336
        %v1407 = vsel %vm1379, %v1336, %v1338
        %v1408 = vsel %vm1379, %v1338, %v1340
        %v1409 = vsel %vm1379, %v1340, %v1342
        %v1410 = vsel %vm1379, %v1344, %v1346
        %v1411 = vsel %vm1379, %v1346, %v1348
        %v1412 = vsel %vm1379, %v1348, %v1350
        %v1413 = vsel %vm1379, %v1350, %v1352
        %v1414 = vsel %vm1379, %v1352, %v1354
        %v1415 = vsel %vm1379, %v1356, %v1358
        %v1416 = vsel %vm1379, %v1358, %v1360
        %v1417 = vsel %vm1379, %v1360, %v1362
        %v1418 = vsel %vm1379, %v1362, %v1364
        %v1419 = vsel %vm1379, %v1364, %v1366
        %v1420 = vsel %vm1379, %v1368, %v1370
        %v1421 = vsel %vm1379, %v1370, %v1372
        %v1422 = vsel %vm1379, %v1372, %v1374
        %v1423 = vsel %vm1379, %v1374, %v1376
        %v1424 = vsel %vm1379, %v1376, %v1378
        %vm1470 = vcmask 588800
        %v1472 = vsel %vm1470, %v1109, 0
        %1474 = vmatprep.subr.mxu0 0.0
        %1475 = vmatpush1.msra.mxu0 0.0
        %1476 = vmatprep.subr.mxu0 0.0
        %1477 = vmatpush1.msra.mxu0 0.0
        %1478 = vmatprep.subr.mxu0 0.0
        %1479 = vmatpush1.msra.mxu0 0.0
        %1480 = vmatprep.subr.mxu0 0.0
        %1481 = vmatpush1.msra.mxu0 0.0
        %1482 = vmatprep.subr.mxu0 0.0
        %1483 = vmatpush1.msra.mxu0 0.0
        %1484 = vmatprep.subr.mxu0 0.0
        %1485 = vmatpush1.msra.mxu0 0.0
        %1486 = vmatprep.subr.mxu0 0.0
        %1487 = vmatpush1.msra.mxu0 0.0
        %1488 = vmatprep.subr.mxu0 %v1421
        %1489 = vmatpush1.msra.mxu0 %v1420
        %1490 = vmatprep.subr.mxu0 %v1416
        %1491 = vmatpush1.msra.mxu0 %v1415
        %1492 = vmatprep.subr.mxu0 %v1411
        %1493 = vmatpush1.msra.mxu0 %v1410
        %1494 = vmatprep.subr.mxu0 %v1406
        %1495 = vmatpush1.msra.mxu0 %v1405
        %1496 = vmatprep.subr.mxu0 %v1401
        %1497 = vmatpush1.msra.mxu0 %v1400
        %1498 = vmatprep.subr.mxu0 %v1396
        %1499 = vmatpush1.msra.mxu0 %v1395
        %1500 = vmatprep.subr.mxu0 %v1391
        %1501 = vmatpush1.msra.mxu0 %v1390
        %1502 = vmatprep.subr.mxu0 %v1386
        %1503 = vmatpush1.msra.mxu0 %v1385
        %1504 = vmatprep.subr.mxu0 %v1381
        %1505 = vmatpush1.msra.mxu0 %v1380
        %1506 = vmatprep.subr.mxu0 0.0
        %1507 = vmatpush2.msra.mxu0 0.0
        %1508 = vmatprep.subr.mxu0 0.0
        %1509 = vmatpush2.msra.mxu0 0.0
        %1510 = vmatprep.subr.mxu0 0.0
        %1511 = vmatpush2.msra.mxu0 0.0
        %1512 = vmatprep.subr.mxu0 0.0
        %1513 = vmatpush2.msra.mxu0 0.0
        %1514 = vmatprep.subr.mxu0 0.0
        %1515 = vmatpush2.msra.mxu0 0.0
        %1516 = vmatprep.subr.mxu0 0.0
        %1517 = vmatpush2.msra.mxu0 0.0
        %1518 = vmatprep.subr.mxu0 0.0
        %1519 = vmatpush2.msra.mxu0 0.0
        %1520 = vmatprep.subr.mxu0 0.0
        %1521 = vmatpush2.msra.mxu0 0.0
        %1522 = vmatprep.subr.mxu0 0.0
        %1523 = vmatpush2.msra.mxu0 0.0
        %1524 = vmatprep.subr.mxu0 0.0
        %1525 = vmatpush2.msra.mxu0 0.0
        %1526 = vmatprep.subr.mxu0 0.0
        %1527 = vmatpush2.msra.mxu0 0.0
        %1528 = vmatprep.subr.mxu0 0.0
        %1529 = vmatpush2.msra.mxu0 0.0
        %1530 = vmatprep.subr.mxu0 0.0
        %1531 = vmatpush2.msra.mxu0 0.0
        %1532 = vmatprep.subr.mxu0 0.0
        %1533 = vmatpush2.msra.mxu0 0.0
        %1534 = vmatprep.subr.mxu0 0.0
        %1535 = vmatpush2.msra.mxu0 0.0
        %1536 = vmatprep.subr.mxu0 0.0
        %1537 = vmatpush2.msra.mxu0 0.0
        %1538 = vmatprep.mubr.f32.mxu0 0.0
        %1539 = vmatmul.mubr.f32.gmra.mxu0 %v1472
        %v1540 = vpop.f32.mrf.mxu0
        %v1541 = vadd.f32 0.0, %v1540
        %v1542 = vpop.f32.mrf.mxu0
        %v1543 = vadd.f32 0.0, %v1542
        %1544 = vdwg.mxu0
        %1545 = vmatprep.subr.mxu0 0.0
        %1546 = vmatpush1.msra.mxu0 0.0
        %1547 = vmatprep.subr.mxu0 0.0
        %1548 = vmatpush1.msra.mxu0 0.0
        %1549 = vmatprep.subr.mxu0 0.0
        %1550 = vmatpush1.msra.mxu0 0.0
        %1551 = vmatprep.subr.mxu0 0.0
        %1552 = vmatpush1.msra.mxu0 0.0
        %1553 = vmatprep.subr.mxu0 0.0
        %1554 = vmatpush1.msra.mxu0 0.0
        %1555 = vmatprep.subr.mxu0 0.0
        %1556 = vmatpush1.msra.mxu0 0.0
        %1557 = vmatprep.subr.mxu0 0.0
        %1558 = vmatpush1.msra.mxu0 0.0
        %1559 = vmatprep.subr.mxu0 %v1423
        %1560 = vmatpush1.msra.mxu0 %v1422
        %1561 = vmatprep.subr.mxu0 %v1418
        %1562 = vmatpush1.msra.mxu0 %v1417
        %1563 = vmatprep.subr.mxu0 %v1413
        %1564 = vmatpush1.msra.mxu0 %v1412
        %1565 = vmatprep.subr.mxu0 %v1408
        %1566 = vmatpush1.msra.mxu0 %v1407
        %1567 = vmatprep.subr.mxu0 %v1403
        %1568 = vmatpush1.msra.mxu0 %v1402
        %1569 = vmatprep.subr.mxu0 %v1398
        %1570 = vmatpush1.msra.mxu0 %v1397
        %1571 = vmatprep.subr.mxu0 %v1393
        %1572 = vmatpush1.msra.mxu0 %v1392
        %1573 = vmatprep.subr.mxu0 %v1388
        %1574 = vmatpush1.msra.mxu0 %v1387
        %1575 = vmatprep.subr.mxu0 %v1383
        %1576 = vmatpush1.msra.mxu0 %v1382
        %1577 = vmatprep.subr.mxu0 0.0
        %1578 = vmatpush2.msra.mxu0 0.0
        %1579 = vmatprep.subr.mxu0 0.0
        %1580 = vmatpush2.msra.mxu0 0.0
        %1581 = vmatprep.subr.mxu0 0.0
        %1582 = vmatpush2.msra.mxu0 0.0
        %1583 = vmatprep.subr.mxu0 0.0
        %1584 = vmatpush2.msra.mxu0 0.0
        %1585 = vmatprep.subr.mxu0 0.0
        %1586 = vmatpush2.msra.mxu0 0.0
        %1587 = vmatprep.subr.mxu0 0.0
        %1588 = vmatpush2.msra.mxu0 0.0
        %1589 = vmatprep.subr.mxu0 0.0
        %1590 = vmatpush2.msra.mxu0 0.0
        %1591 = vmatprep.subr.mxu0 0.0
        %1592 = vmatpush2.msra.mxu0 0.0
        %1593 = vmatprep.subr.mxu0 0.0
        %1594 = vmatpush2.msra.mxu0 0.0
        %1595 = vmatprep.subr.mxu0 0.0
        %1596 = vmatpush2.msra.mxu0 0.0
        %1597 = vmatprep.subr.mxu0 0.0
        %1598 = vmatpush2.msra.mxu0 0.0
        %1599 = vmatprep.subr.mxu0 0.0
        %1600 = vmatpush2.msra.mxu0 0.0
        %1601 = vmatprep.subr.mxu0 0.0
        %1602 = vmatpush2.msra.mxu0 0.0
        %1603 = vmatprep.subr.mxu0 0.0
        %1604 = vmatpush2.msra.mxu0 0.0
        %1605 = vmatprep.subr.mxu0 0.0
        %1606 = vmatpush2.msra.mxu0 0.0
        %1607 = vmatprep.subr.mxu0 0.0
        %1608 = vmatpush2.msra.mxu0 0.0
        %1609 = vmatprep.mubr.f32.mxu0 0.0
        %1610 = vmatmul.mubr.f32.gmra.mxu0 %v1472
        %v1611 = vpop.f32.mrf.mxu0
        %v1612 = vadd.f32 0.0, %v1611
        %v1613 = vpop.f32.mrf.mxu0
        %v1614 = vadd.f32 0.0, %v1613
        %1615 = vdwg.mxu0
        %1616 = vmatprep.subr.mxu0 0.0
        %1617 = vmatpush1.msra.mxu0 0.0
        %1618 = vmatprep.subr.mxu0 0.0
        %1619 = vmatpush1.msra.mxu0 0.0
        %1620 = vmatprep.subr.mxu0 0.0
        %1621 = vmatpush1.msra.mxu0 0.0
        %1622 = vmatprep.subr.mxu0 0.0
        %1623 = vmatpush1.msra.mxu0 0.0
        %1624 = vmatprep.subr.mxu0 0.0
        %1625 = vmatpush1.msra.mxu0 0.0
        %1626 = vmatprep.subr.mxu0 0.0
        %1627 = vmatpush1.msra.mxu0 0.0
        %1628 = vmatprep.subr.mxu0 0.0
        %1629 = vmatpush1.msra.mxu0 0.0
        %1630 = vmatprep.subr.mxu0 0.0
        %1631 = vmatpush1.msra.mxu0 %v1424
        %1632 = vmatprep.subr.mxu0 0.0
        %1633 = vmatpush1.msra.mxu0 %v1419
        %1634 = vmatprep.subr.mxu0 0.0
        %1635 = vmatpush1.msra.mxu0 %v1414
        %1636 = vmatprep.subr.mxu0 0.0
        %1637 = vmatpush1.msra.mxu0 %v1409
        %1638 = vmatprep.subr.mxu0 0.0
        %1639 = vmatpush1.msra.mxu0 %v1404
        %1640 = vmatprep.subr.mxu0 0.0
        %1641 = vmatpush1.msra.mxu0 %v1399
        %1642 = vmatprep.subr.mxu0 0.0
        %1643 = vmatpush1.msra.mxu0 %v1394
        %1644 = vmatprep.subr.mxu0 0.0
        %1645 = vmatpush1.msra.mxu0 %v1389
        %1646 = vmatprep.subr.mxu0 0.0
        %1647 = vmatpush1.msra.mxu0 %v1384
        %1648 = vmatprep.subr.mxu0 0.0
        %1649 = vmatpush2.msra.mxu0 0.0
        %1650 = vmatprep.subr.mxu0 0.0
        %1651 = vmatpush2.msra.mxu0 0.0
        %1652 = vmatprep.subr.mxu0 0.0
        %1653 = vmatpush2.msra.mxu0 0.0
        %1654 = vmatprep.subr.mxu0 0.0
        %1655 = vmatpush2.msra.mxu0 0.0
        %1656 = vmatprep.subr.mxu0 0.0
        %1657 = vmatpush2.msra.mxu0 0.0
        %1658 = vmatprep.subr.mxu0 0.0
        %1659 = vmatpush2.msra.mxu0 0.0
        %1660 = vmatprep.subr.mxu0 0.0
        %1661 = vmatpush2.msra.mxu0 0.0
        %1662 = vmatprep.subr.mxu0 0.0
        %1663 = vmatpush2.msra.mxu0 0.0
        %1664 = vmatprep.subr.mxu0 0.0
        %1665 = vmatpush2.msra.mxu0 0.0
        %1666 = vmatprep.subr.mxu0 0.0
        %1667 = vmatpush2.msra.mxu0 0.0
        %1668 = vmatprep.subr.mxu0 0.0
        %1669 = vmatpush2.msra.mxu0 0.0
        %1670 = vmatprep.subr.mxu0 0.0
        %1671 = vmatpush2.msra.mxu0 0.0
        %1672 = vmatprep.subr.mxu0 0.0
        %1673 = vmatpush2.msra.mxu0 0.0
        %1674 = vmatprep.subr.mxu0 0.0
        %1675 = vmatpush2.msra.mxu0 0.0
        %1676 = vmatprep.subr.mxu0 0.0
        %1677 = vmatpush2.msra.mxu0 0.0
        %1678 = vmatprep.subr.mxu0 0.0
        %1679 = vmatpush2.msra.mxu0 0.0
        %1680 = vmatprep.mubr.f32.mxu0 0.0
        %1681 = vmatmul.mubr.f32.gmra.mxu0 %v1472
        %v1682 = vpop.f32.mrf.mxu0
        %v1683 = vadd.f32 0.0, %v1682
        %v1684 = vpop.f32.mrf.mxu0
        %1685 = vdwg.mxu0
        %1686 = vrot.lane.b32.xlu0 %v960, 53
        %v1687 = vpop.permute.xlu0 %1686
        %1688 = vrot.lane.b32.xlu0 %v954, 53
        %v1689 = vpop.permute.xlu0 %1688
        %1690 = vrot.lane.b32.xlu0 %v955, 53
        %v1691 = vpop.permute.xlu0 %1690
        %1692 = vrot.lane.b32.xlu0 %v956, 53
        %v1693 = vpop.permute.xlu0 %1692
        %1694 = vrot.lane.b32.xlu0 %v957, 53
        %v1695 = vpop.permute.xlu0 %1694
        %1696 = vrot.lane.b32.xlu0 %v962, 53
        %v1697 = vpop.permute.xlu0 %1696
        %1698 = vrot.lane.b32.xlu0 %v978, 53
        %v1699 = vpop.permute.xlu0 %1698
        %1700 = vrot.lane.b32.xlu0 %v979, 53
        %v1701 = vpop.permute.xlu0 %1700
        %1702 = vrot.lane.b32.xlu0 %v980, 53
        %v1703 = vpop.permute.xlu0 %1702
        %1704 = vrot.lane.b32.xlu0 %v981, 53
        %v1705 = vpop.permute.xlu0 %1704
        %1706 = vrot.lane.b32.xlu0 %v982, 53
        %v1707 = vpop.permute.xlu0 %1706
        %1708 = vrot.lane.b32.xlu0 %v976, 53
        %v1709 = vpop.permute.xlu0 %1708
        %1710 = vrot.lane.b32.xlu0 %v996, 53
        %v1711 = vpop.permute.xlu0 %1710
        %1712 = vrot.lane.b32.xlu0 %v997, 53
        %v1713 = vpop.permute.xlu0 %1712
        %1714 = vrot.lane.b32.xlu0 %v998, 53
        %v1715 = vpop.permute.xlu0 %1714
        %1716 = vrot.lane.b32.xlu0 %v999, 53
        %v1717 = vpop.permute.xlu0 %1716
        %1718 = vrot.lane.b32.xlu0 %v1000, 53
        %v1719 = vpop.permute.xlu0 %1718
        %1720 = vrot.lane.b32.xlu0 %v994, 53
        %v1721 = vpop.permute.xlu0 %1720
        %1722 = vrot.lane.b32.xlu0 %v1014, 53
        %v1723 = vpop.permute.xlu0 %1722
        %1724 = vrot.lane.b32.xlu0 %v1015, 53
        %v1725 = vpop.permute.xlu0 %1724
        %1726 = vrot.lane.b32.xlu0 %v1016, 53
        %v1727 = vpop.permute.xlu0 %1726
        %1728 = vrot.lane.b32.xlu0 %v1017, 53
        %v1729 = vpop.permute.xlu0 %1728
        %1730 = vrot.lane.b32.xlu0 %v1018, 53
        %v1731 = vpop.permute.xlu0 %1730
        %1732 = vrot.lane.b32.xlu0 %v1012, 53
        %v1733 = vpop.permute.xlu0 %1732
        %1734 = vrot.lane.b32.xlu0 %v1032, 53
        %v1735 = vpop.permute.xlu0 %1734
        %1736 = vrot.lane.b32.xlu0 %v1033, 53
        %v1737 = vpop.permute.xlu0 %1736
        %1738 = vrot.lane.b32.xlu0 %v1034, 53
        %v1739 = vpop.permute.xlu0 %1738
        %1740 = vrot.lane.b32.xlu0 %v1035, 53
        %v1741 = vpop.permute.xlu0 %1740
        %1742 = vrot.lane.b32.xlu0 %v1036, 53
        %v1743 = vpop.permute.xlu0 %1742
        %1744 = vrot.lane.b32.xlu0 %v1030, 53
        %v1745 = vpop.permute.xlu0 %1744
        %1746 = vrot.lane.b32.xlu0 %v1050, 53
        %v1747 = vpop.permute.xlu0 %1746
        %1748 = vrot.lane.b32.xlu0 %v1051, 53
        %v1749 = vpop.permute.xlu0 %1748
        %1750 = vrot.lane.b32.xlu0 %v1052, 53
        %v1751 = vpop.permute.xlu0 %1750
        %1752 = vrot.lane.b32.xlu0 %v1053, 53
        %v1753 = vpop.permute.xlu0 %1752
        %1754 = vrot.lane.b32.xlu0 %v1054, 53
        %v1755 = vpop.permute.xlu0 %1754
        %1756 = vrot.lane.b32.xlu0 %v1048, 53
        %v1757 = vpop.permute.xlu0 %1756
        %1758 = vrot.lane.b32.xlu0 %v1068, 53
        %v1759 = vpop.permute.xlu0 %1758
        %1760 = vrot.lane.b32.xlu0 %v1069, 53
        %v1761 = vpop.permute.xlu0 %1760
        %1762 = vrot.lane.b32.xlu0 %v1070, 53
        %v1763 = vpop.permute.xlu0 %1762
        %1764 = vrot.lane.b32.xlu0 %v1071, 53
        %v1765 = vpop.permute.xlu0 %1764
        %1766 = vrot.lane.b32.xlu0 %v1072, 53
        %v1767 = vpop.permute.xlu0 %1766
        %1768 = vrot.lane.b32.xlu0 %v1066, 53
        %v1769 = vpop.permute.xlu0 %1768
        %1770 = vrot.lane.b32.xlu0 %v1086, 53
        %v1771 = vpop.permute.xlu0 %1770
        %1772 = vrot.lane.b32.xlu0 %v1087, 53
        %v1773 = vpop.permute.xlu0 %1772
        %1774 = vrot.lane.b32.xlu0 %v1088, 53
        %v1775 = vpop.permute.xlu0 %1774
        %1776 = vrot.lane.b32.xlu0 %v1089, 53
        %v1777 = vpop.permute.xlu0 %1776
        %1778 = vrot.lane.b32.xlu0 %v1090, 53
        %v1779 = vpop.permute.xlu0 %1778
        %1780 = vrot.lane.b32.xlu0 %v1084, 53
        %v1781 = vpop.permute.xlu0 %1780
        %1782 = vrot.lane.b32.xlu0 %v1104, 53
        %v1783 = vpop.permute.xlu0 %1782
        %1784 = vrot.lane.b32.xlu0 %v1105, 53
        %v1785 = vpop.permute.xlu0 %1784
        %1786 = vrot.lane.b32.xlu0 %v1106, 53
        %v1787 = vpop.permute.xlu0 %1786
        %1788 = vrot.lane.b32.xlu0 %v1107, 53
        %v1789 = vpop.permute.xlu0 %1788
        %1790 = vrot.lane.b32.xlu0 %v1108, 53
        %v1791 = vpop.permute.xlu0 %1790
        %1792 = vrot.lane.b32.xlu0 %v1102, 53
        %v1793 = vpop.permute.xlu0 %1792
        %v1794 = vsel %vm1379, %v1687, %v1689
        %v1795 = vsel %vm1379, %v1689, %v1691
        %v1796 = vsel %vm1379, %v1691, %v1693
        %v1797 = vsel %vm1379, %v1693, %v1695
        %v1798 = vsel %vm1379, %v1695, %v1697
        %v1799 = vsel %vm1379, %v1699, %v1701
        %v1800 = vsel %vm1379, %v1701, %v1703
        %v1801 = vsel %vm1379, %v1703, %v1705
        %v1802 = vsel %vm1379, %v1705, %v1707
        %v1803 = vsel %vm1379, %v1707, %v1709
        %v1804 = vsel %vm1379, %v1711, %v1713
        %v1805 = vsel %vm1379, %v1713, %v1715
        %v1806 = vsel %vm1379, %v1715, %v1717
        %v1807 = vsel %vm1379, %v1717, %v1719
        %v1808 = vsel %vm1379, %v1719, %v1721
        %v1809 = vsel %vm1379, %v1723, %v1725
        %v1810 = vsel %vm1379, %v1725, %v1727
        %v1811 = vsel %vm1379, %v1727, %v1729
        %v1812 = vsel %vm1379, %v1729, %v1731
        %v1813 = vsel %vm1379, %v1731, %v1733
        %v1814 = vsel %vm1379, %v1735, %v1737
        %v1815 = vsel %vm1379, %v1737, %v1739
        %v1816 = vsel %vm1379, %v1739, %v1741
        %v1817 = vsel %vm1379, %v1741, %v1743
        %v1818 = vsel %vm1379, %v1743, %v1745
        %v1819 = vsel %vm1379, %v1747, %v1749
        %v1820 = vsel %vm1379, %v1749, %v1751
        %v1821 = vsel %vm1379, %v1751, %v1753
        %v1822 = vsel %vm1379, %v1753, %v1755
        %v1823 = vsel %vm1379, %v1755, %v1757
        %v1824 = vsel %vm1379, %v1759, %v1761
        %v1825 = vsel %vm1379, %v1761, %v1763
        %v1826 = vsel %vm1379, %v1763, %v1765
        %v1827 = vsel %vm1379, %v1765, %v1767
        %v1828 = vsel %vm1379, %v1767, %v1769
        %v1829 = vsel %vm1379, %v1771, %v1773
        %v1830 = vsel %vm1379, %v1773, %v1775
        %v1831 = vsel %vm1379, %v1775, %v1777
        %v1832 = vsel %vm1379, %v1777, %v1779
        %v1833 = vsel %vm1379, %v1779, %v1781
        %v1834 = vsel %vm1379, %v1783, %v1785
        %v1835 = vsel %vm1379, %v1785, %v1787
        %v1836 = vsel %vm1379, %v1787, %v1789
        %v1837 = vsel %vm1379, %v1789, %v1791
        %v1838 = vsel %vm1379, %v1791, %v1793
        %v1885 = vsel %vm1470, %v937, 0
        %1887 = vmatprep.subr.mxu0 0.0
        %1888 = vmatpush1.msra.mxu0 0.0
        %1889 = vmatprep.subr.mxu0 0.0
        %1890 = vmatpush1.msra.mxu0 0.0
        %1891 = vmatprep.subr.mxu0 0.0
        %1892 = vmatpush1.msra.mxu0 0.0
        %1893 = vmatprep.subr.mxu0 0.0
        %1894 = vmatpush1.msra.mxu0 0.0
        %1895 = vmatprep.subr.mxu0 0.0
        %1896 = vmatpush1.msra.mxu0 0.0
        %1897 = vmatprep.subr.mxu0 0.0
        %1898 = vmatpush1.msra.mxu0 0.0
        %1899 = vmatprep.subr.mxu0 0.0
        %1900 = vmatpush1.msra.mxu0 0.0
        %1901 = vmatprep.subr.mxu0 %v1835
        %1902 = vmatpush1.msra.mxu0 %v1834
        %1903 = vmatprep.subr.mxu0 %v1830
        %1904 = vmatpush1.msra.mxu0 %v1829
        %1905 = vmatprep.subr.mxu0 %v1825
        %1906 = vmatpush1.msra.mxu0 %v1824
        %1907 = vmatprep.subr.mxu0 %v1820
        %1908 = vmatpush1.msra.mxu0 %v1819
        %1909 = vmatprep.subr.mxu0 %v1815
        %1910 = vmatpush1.msra.mxu0 %v1814
        %1911 = vmatprep.subr.mxu0 %v1810
        %1912 = vmatpush1.msra.mxu0 %v1809
        %1913 = vmatprep.subr.mxu0 %v1805
        %1914 = vmatpush1.msra.mxu0 %v1804
        %1915 = vmatprep.subr.mxu0 %v1800
        %1916 = vmatpush1.msra.mxu0 %v1799
        %1917 = vmatprep.subr.mxu0 %v1795
        %1918 = vmatpush1.msra.mxu0 %v1794
        %1919 = vmatprep.subr.mxu0 0.0
        %1920 = vmatpush2.msra.mxu0 0.0
        %1921 = vmatprep.subr.mxu0 0.0
        %1922 = vmatpush2.msra.mxu0 0.0
        %1923 = vmatprep.subr.mxu0 0.0
        %1924 = vmatpush2.msra.mxu0 0.0
        %1925 = vmatprep.subr.mxu0 0.0
        %1926 = vmatpush2.msra.mxu0 0.0
        %1927 = vmatprep.subr.mxu0 0.0
        %1928 = vmatpush2.msra.mxu0 0.0
        %1929 = vmatprep.subr.mxu0 0.0
        %1930 = vmatpush2.msra.mxu0 0.0
        %1931 = vmatprep.subr.mxu0 0.0
        %1932 = vmatpush2.msra.mxu0 0.0
        %1933 = vmatprep.subr.mxu0 0.0
        %1934 = vmatpush2.msra.mxu0 0.0
        %1935 = vmatprep.subr.mxu0 0.0
        %1936 = vmatpush2.msra.mxu0 0.0
        %1937 = vmatprep.subr.mxu0 0.0
        %1938 = vmatpush2.msra.mxu0 0.0
        %1939 = vmatprep.subr.mxu0 0.0
        %1940 = vmatpush2.msra.mxu0 0.0
        %1941 = vmatprep.subr.mxu0 0.0
        %1942 = vmatpush2.msra.mxu0 0.0
        %1943 = vmatprep.subr.mxu0 0.0
        %1944 = vmatpush2.msra.mxu0 0.0
        %1945 = vmatprep.subr.mxu0 0.0
        %1946 = vmatpush2.msra.mxu0 0.0
        %1947 = vmatprep.subr.mxu0 0.0
        %1948 = vmatpush2.msra.mxu0 0.0
        %1949 = vmatprep.subr.mxu0 0.0
        %1950 = vmatpush2.msra.mxu0 0.0
        %1951 = vmatprep.mubr.f32.mxu0 0.0
        %1952 = vmatmul.mubr.f32.gmra.mxu0 %v1885
        %v1953 = vpop.f32.mrf.mxu0
        %v1954 = vadd.f32 %v1541, %v1953
        %v1955 = vpop.f32.mrf.mxu0
        %v1956 = vadd.f32 %v1543, %v1955
        %1957 = vdwg.mxu0
        %1958 = vmatprep.subr.mxu0 0.0
        %1959 = vmatpush1.msra.mxu0 0.0
        %1960 = vmatprep.subr.mxu0 0.0
        %1961 = vmatpush1.msra.mxu0 0.0
        %1962 = vmatprep.subr.mxu0 0.0
        %1963 = vmatpush1.msra.mxu0 0.0
        %1964 = vmatprep.subr.mxu0 0.0
        %1965 = vmatpush1.msra.mxu0 0.0
        %1966 = vmatprep.subr.mxu0 0.0
        %1967 = vmatpush1.msra.mxu0 0.0
        %1968 = vmatprep.subr.mxu0 0.0
        %1969 = vmatpush1.msra.mxu0 0.0
        %1970 = vmatprep.subr.mxu0 0.0
        %1971 = vmatpush1.msra.mxu0 0.0
        %1972 = vmatprep.subr.mxu0 %v1837
        %1973 = vmatpush1.msra.mxu0 %v1836
        %1974 = vmatprep.subr.mxu0 %v1832
        %1975 = vmatpush1.msra.mxu0 %v1831
        %1976 = vmatprep.subr.mxu0 %v1827
        %1977 = vmatpush1.msra.mxu0 %v1826
        %1978 = vmatprep.subr.mxu0 %v1822
        %1979 = vmatpush1.msra.mxu0 %v1821
        %1980 = vmatprep.subr.mxu0 %v1817
        %1981 = vmatpush1.msra.mxu0 %v1816
        %1982 = vmatprep.subr.mxu0 %v1812
        %1983 = vmatpush1.msra.mxu0 %v1811
        %1984 = vmatprep.subr.mxu0 %v1807
        %1985 = vmatpush1.msra.mxu0 %v1806
        %1986 = vmatprep.subr.mxu0 %v1802
        %1987 = vmatpush1.msra.mxu0 %v1801
        %1988 = vmatprep.subr.mxu0 %v1797
        %1989 = vmatpush1.msra.mxu0 %v1796
        %1990 = vmatprep.subr.mxu0 0.0
        %1991 = vmatpush2.msra.mxu0 0.0
        %1992 = vmatprep.subr.mxu0 0.0
        %1993 = vmatpush2.msra.mxu0 0.0
        %1994 = vmatprep.subr.mxu0 0.0
        %1995 = vmatpush2.msra.mxu0 0.0
        %1996 = vmatprep.subr.mxu0 0.0
        %1997 = vmatpush2.msra.mxu0 0.0
        %1998 = vmatprep.subr.mxu0 0.0
        %1999 = vmatpush2.msra.mxu0 0.0
        %2000 = vmatprep.subr.mxu0 0.0
        %2001 = vmatpush2.msra.mxu0 0.0
        %2002 = vmatprep.subr.mxu0 0.0
        %2003 = vmatpush2.msra.mxu0 0.0
        %2004 = vmatprep.subr.mxu0 0.0
        %2005 = vmatpush2.msra.mxu0 0.0
        %2006 = vmatprep.subr.mxu0 0.0
        %2007 = vmatpush2.msra.mxu0 0.0
        %2008 = vmatprep.subr.mxu0 0.0
        %2009 = vmatpush2.msra.mxu0 0.0
        %2010 = vmatprep.subr.mxu0 0.0
        %2011 = vmatpush2.msra.mxu0 0.0
        %2012 = vmatprep.subr.mxu0 0.0
        %2013 = vmatpush2.msra.mxu0 0.0
        %2014 = vmatprep.subr.mxu0 0.0
        %2015 = vmatpush2.msra.mxu0 0.0
        %2016 = vmatprep.subr.mxu0 0.0
        %2017 = vmatpush2.msra.mxu0 0.0
        %2018 = vmatprep.subr.mxu0 0.0
        %2019 = vmatpush2.msra.mxu0 0.0
        %2020 = vmatprep.subr.mxu0 0.0
        %2021 = vmatpush2.msra.mxu0 0.0
        %2022 = vmatprep.mubr.f32.mxu0 0.0
        %2023 = vmatmul.mubr.f32.gmra.mxu0 %v1885
        %v2024 = vpop.f32.mrf.mxu0
        %v2025 = vadd.f32 %v1612, %v2024
        %v2026 = vpop.f32.mrf.mxu0
        %v2027 = vadd.f32 %v1614, %v2026
        %2028 = vdwg.mxu0
        %2029 = vmatprep.subr.mxu0 0.0
        %2030 = vmatpush1.msra.mxu0 0.0
        %2031 = vmatprep.subr.mxu0 0.0
        %2032 = vmatpush1.msra.mxu0 0.0
        %2033 = vmatprep.subr.mxu0 0.0
        %2034 = vmatpush1.msra.mxu0 0.0
        %2035 = vmatprep.subr.mxu0 0.0
        %2036 = vmatpush1.msra.mxu0 0.0
        %2037 = vmatprep.subr.mxu0 0.0
        %2038 = vmatpush1.msra.mxu0 0.0
        %2039 = vmatprep.subr.mxu0 0.0
        %2040 = vmatpush1.msra.mxu0 0.0
        %2041 = vmatprep.subr.mxu0 0.0
        %2042 = vmatpush1.msra.mxu0 0.0
        %2043 = vmatprep.subr.mxu0 0.0
        %2044 = vmatpush1.msra.mxu0 %v1838
        %2045 = vmatprep.subr.mxu0 0.0
        %2046 = vmatpush1.msra.mxu0 %v1833
        %2047 = vmatprep.subr.mxu0 0.0
        %2048 = vmatpush1.msra.mxu0 %v1828
        %2049 = vmatprep.subr.mxu0 0.0
        %2050 = vmatpush1.msra.mxu0 %v1823
        %2051 = vmatprep.subr.mxu0 0.0
        %2052 = vmatpush1.msra.mxu0 %v1818
        %2053 = vmatprep.subr.mxu0 0.0
        %2054 = vmatpush1.msra.mxu0 %v1813
        %2055 = vmatprep.subr.mxu0 0.0
        %2056 = vmatpush1.msra.mxu0 %v1808
        %2057 = vmatprep.subr.mxu0 0.0
        %2058 = vmatpush1.msra.mxu0 %v1803
        %2059 = vmatprep.subr.mxu0 0.0
        %2060 = vmatpush1.msra.mxu0 %v1798
        %2061 = vmatprep.subr.mxu0 0.0
        %2062 = vmatpush2.msra.mxu0 0.0
        %2063 = vmatprep.subr.mxu0 0.0
        %2064 = vmatpush2.msra.mxu0 0.0
        %2065 = vmatprep.subr.mxu0 0.0
        %2066 = vmatpush2.msra.mxu0 0.0
        %2067 = vmatprep.subr.mxu0 0.0
        %2068 = vmatpush2.msra.mxu0 0.0
        %2069 = vmatprep.subr.mxu0 0.0
        %2070 = vmatpush2.msra.mxu0 0.0
        %2071 = vmatprep.subr.mxu0 0.0
        %2072 = vmatpush2.msra.mxu0 0.0
        %2073 = vmatprep.subr.mxu0 0.0
        %2074 = vmatpush2.msra.mxu0 0.0
        %2075 = vmatprep.subr.mxu0 0.0
        %2076 = vmatpush2.msra.mxu0 0.0
        %2077 = vmatprep.subr.mxu0 0.0
        %2078 = vmatpush2.msra.mxu0 0.0
        %2079 = vmatprep.subr.mxu0 0.0
        %2080 = vmatpush2.msra.mxu0 0.0
        %2081 = vmatprep.subr.mxu0 0.0
        %2082 = vmatpush2.msra.mxu0 0.0
        %2083 = vmatprep.subr.mxu0 0.0
        %2084 = vmatpush2.msra.mxu0 0.0
        %2085 = vmatprep.subr.mxu0 0.0
        %2086 = vmatpush2.msra.mxu0 0.0
        %2087 = vmatprep.subr.mxu0 0.0
        %2088 = vmatpush2.msra.mxu0 0.0
        %2089 = vmatprep.subr.mxu0 0.0
        %2090 = vmatpush2.msra.mxu0 0.0
        %2091 = vmatprep.subr.mxu0 0.0
        %2092 = vmatpush2.msra.mxu0 0.0
        %2093 = vmatprep.mubr.f32.mxu0 0.0
        %2094 = vmatmul.mubr.f32.gmra.mxu0 %v1885
        %v2095 = vpop.f32.mrf.mxu0
        %v2096 = vadd.f32 %v1683, %v2095
        %v2097 = vpop.f32.mrf.mxu0
        %2098 = vdwg.mxu0
        %v2099 = vmul.f32 %v1954, 0.5
        %v2100 = vmul.f32 %v1956, 0.5
        %v2101 = vmul.f32 %v2025, 0.5
        %v2102 = vmul.f32 %v2027, 0.5
        %v2103 = vmul.f32 %v2096, 0.5
        %v2104 = vld [vmem:[%s7] sm:$0xff]
        %2106 = vset.pattern.permute.xlu0 0
        %2107 = vperm.xlu0 %2106, %v2104
        %v2108 = vpop.permute.xlu0 %2107
        %v2110 = vmul.f32 %v2099, %v2108
        %v2111 = vmul.f32 %v2100, %v2108
        %v2112 = vmul.f32 %v2101, %v2108
        %v2113 = vmul.f32 %v2102, %v2108
        %v2114 = vmul.f32 %v2103, %v2108
        %v2115 = vld [vmem:[%s8] sm:$0xff]
        %2117 = vset.pattern.permute.xlu0 0
        %2118 = vperm.xlu0 %2117, %v2115
        %v2119 = vpop.permute.xlu0 %2118
        %v2121 = vadd.f32 %v2110, %v2119
        %v2122 = vadd.f32 %v2111, %v2119
        %v2123 = vadd.f32 %v2112, %v2119
        %v2124 = vadd.f32 %v2113, %v2119
        %v2125 = vadd.f32 %v2114, %v2119
        %v2126 = vadd.f32 %v705, %v932
        %v2127 = vadd.f32 %v706, %v933
        %v2128 = vadd.f32 %v707, %v934
        %v2129 = vadd.f32 %v708, %v935
        %v2130 = vadd.f32 %v709, %v936
        %v2131 = vmul.f32 %v2126, 0.5
        %v2132 = vmul.f32 %v2127, 0.5
        %v2133 = vmul.f32 %v2128, 0.5
        %v2134 = vmul.f32 %v2129, 0.5
        %v2135 = vmul.f32 %v2130, 0.5
        %v2136 = vadd.f32 %v2121, %v2131
        %v2137 = vadd.f32 %v2122, %v2132
        %v2138 = vadd.f32 %v2123, %v2133
        %v2139 = vadd.f32 %v2124, %v2134
        %v2140 = vadd.f32 %v2125, %v2135
        %v2141 = vmax.f32 %v2136, 0.0
        %v2142 = vmax.f32 %v2137, 0.0
        %v2143 = vmax.f32 %v2138, 0.0
        %v2144 = vmax.f32 %v2139, 0.0
        %v2145 = vmax.f32 %v2140, 0.0
        %v2146 = vmul.f32 %v2141, %v683
        %v2147 = vmul.f32 %v2142, %v687
        %v2148 = vmul.f32 %v2143, %v691
        %v2149 = vmul.f32 %v2144, %v695
        %v2150 = vmul.f32 %v2145, %v699
        %s2151 = scalar_lea.vmem %s5, 8
        %v2152 = vld [vmem:[%s2151] sm:$0xff]
        %2158 = vrot.lane.b32.xlu0 %v2146, 100
        %v2159 = vpop.permute.xlu0 %2158
        %2160 = vrot.lane.b32.xlu0 %v2147, 100
        %v2161 = vpop.permute.xlu0 %2160
        %2162 = vrot.lane.b32.xlu0 %v2148, 100
        %v2163 = vpop.permute.xlu0 %2162
        %2164 = vrot.lane.b32.xlu0 %v2149, 100
        %v2165 = vpop.permute.xlu0 %2164
        %2166 = vrot.lane.b32.xlu0 %v2150, 100
        %v2167 = vpop.permute.xlu0 %2166
        %v2168 = vsel %vm953, %v2159, %v2161
        %v2169 = vsel %vm953, %v2161, %v2163
        %v2170 = vsel %vm953, %v2163, %v2165
        %v2171 = vsel %vm953, %v2165, %v2167
        %v2174 = vsel %vm953, 0.0, %v2159
        %v2175 = vsel %vm961, %v2167, 0.0
        %2177 = vrot.lane.b32.xlu0 %v2174, 126
        %v2178 = vpop.permute.xlu0 %2177
        %2179 = vrot.lane.b32.xlu0 %v2168, 126
        %v2180 = vpop.permute.xlu0 %2179
        %2181 = vrot.lane.b32.xlu0 %v2169, 126
        %v2182 = vpop.permute.xlu0 %2181
        %2183 = vrot.lane.b32.xlu0 %v2170, 126
        %v2184 = vpop.permute.xlu0 %2183
        %2185 = vrot.lane.b32.xlu0 %v2171, 126
        %v2186 = vpop.permute.xlu0 %2185
        %v2187 = vsel %vm995, %v2178, %v2180
        %v2188 = vsel %vm995, %v2180, %v2182
        %v2189 = vsel %vm995, %v2182, %v2184
        %v2190 = vsel %vm995, %v2184, %v2186
        %2191 = vrot.lane.b32.xlu0 %v2174, 124
        %v2192 = vpop.permute.xlu0 %2191
        %2193 = vrot.lane.b32.xlu0 %v2168, 124
        %v2194 = vpop.permute.xlu0 %2193
        %2195 = vrot.lane.b32.xlu0 %v2169, 124
        %v2196 = vpop.permute.xlu0 %2195
        %2197 = vrot.lane.b32.xlu0 %v2170, 124
        %v2198 = vpop.permute.xlu0 %2197
        %2199 = vrot.lane.b32.xlu0 %v2171, 124
        %v2200 = vpop.permute.xlu0 %2199
        %vm2201 = vcmask 1014784
        %v2202 = vsel %vm2201, %v2192, %v2194
        %v2203 = vsel %vm2201, %v2194, %v2196
        %v2204 = vsel %vm2201, %v2196, %v2198
        %v2205 = vsel %vm2201, %v2198, %v2200
        %2207 = vrot.lane.b32.xlu0 %v2174, 80
        %v2208 = vpop.permute.xlu0 %2207
        %2209 = vrot.lane.b32.xlu0 %v2168, 80
        %v2210 = vpop.permute.xlu0 %2209
        %2211 = vrot.lane.b32.xlu0 %v2169, 80
        %v2212 = vpop.permute.xlu0 %2211
        %2213 = vrot.lane.b32.xlu0 %v2170, 80
        %v2214 = vpop.permute.xlu0 %2213
        %2215 = vrot.lane.b32.xlu0 %v2171, 80
        %v2216 = vpop.permute.xlu0 %2215
        %2217 = vrot.lane.b32.xlu0 %v2175, 80
        %v2218 = vpop.permute.xlu0 %2217
        %v2219 = vsel %vm1067, %v2208, %v2210
        %v2220 = vsel %vm1067, %v2210, %v2212
        %v2221 = vsel %vm1067, %v2212, %v2214
        %v2222 = vsel %vm1067, %v2214, %v2216
        %v2223 = vsel %vm1067, %v2216, %v2218
        %2224 = vrot.lane.b32.xlu0 %v2174, 78
        %v2225 = vpop.permute.xlu0 %2224
        %2226 = vrot.lane.b32.xlu0 %v2168, 78
        %v2227 = vpop.permute.xlu0 %2226
        %2228 = vrot.lane.b32.xlu0 %v2169, 78
        %v2229 = vpop.permute.xlu0 %2228
        %2230 = vrot.lane.b32.xlu0 %v2170, 78
        %v2231 = vpop.permute.xlu0 %2230
        %2232 = vrot.lane.b32.xlu0 %v2171, 78
        %v2233 = vpop.permute.xlu0 %2232
        %2234 = vrot.lane.b32.xlu0 %v2175, 78
        %v2235 = vpop.permute.xlu0 %2234
        %v2236 = vsel %vm1103, %v2225, %v2227
        %v2237 = vsel %vm1103, %v2227, %v2229
        %v2238 = vsel %vm1103, %v2229, %v2231
        %v2239 = vsel %vm1103, %v2231, %v2233
        %v2240 = vsel %vm1103, %v2233, %v2235
        %2241 = vrot.lane.b32.xlu0 %v2174, 76
        %v2242 = vpop.permute.xlu0 %2241
        %2243 = vrot.lane.b32.xlu0 %v2168, 76
        %v2244 = vpop.permute.xlu0 %2243
        %2245 = vrot.lane.b32.xlu0 %v2169, 76
        %v2246 = vpop.permute.xlu0 %2245
        %2247 = vrot.lane.b32.xlu0 %v2170, 76
        %v2248 = vpop.permute.xlu0 %2247
        %2249 = vrot.lane.b32.xlu0 %v2171, 76
        %v2250 = vpop.permute.xlu0 %2249
        %2251 = vrot.lane.b32.xlu0 %v2175, 76
        %v2252 = vpop.permute.xlu0 %2251
        %vm2253 = vcmask 621568
        %v2254 = vsel %vm2253, %v2242, %v2244
        %v2255 = vsel %vm2253, %v2244, %v2246
        %v2256 = vsel %vm2253, %v2246, %v2248
        %v2257 = vsel %vm2253, %v2248, %v2250
        %v2258 = vsel %vm2253, %v2250, %v2252
        %2259 = vrot.lane.b32.xlu0 %v2168, 32
        %v2260 = vpop.permute.xlu0 %2259
        %2261 = vrot.lane.b32.xlu0 %v2169, 32
        %v2262 = vpop.permute.xlu0 %2261
        %2263 = vrot.lane.b32.xlu0 %v2170, 32
        %v2264 = vpop.permute.xlu0 %2263
        %2265 = vrot.lane.b32.xlu0 %v2171, 32
        %v2266 = vpop.permute.xlu0 %2265
        %2267 = vrot.lane.b32.xlu0 %v2175, 32
        %v2268 = vpop.permute.xlu0 %2267
        %vm2269 = vcmask 261120
        %v2270 = vsel %vm2269, %v2260, %v2262
        %v2271 = vsel %vm2269, %v2262, %v2264
        %v2272 = vsel %vm2269, %v2264, %v2266
        %v2273 = vsel %vm2269, %v2266, %v2268
        %2274 = vrot.lane.b32.xlu0 %v2168, 30
        %v2275 = vpop.permute.xlu0 %2274
        %2276 = vrot.lane.b32.xlu0 %v2169, 30
        %v2277 = vpop.permute.xlu0 %2276
        %2278 = vrot.lane.b32.xlu0 %v2170, 30
        %v2279 = vpop.permute.xlu0 %2278
        %2280 = vrot.lane.b32.xlu0 %v2171, 30
        %v2281 = vpop.permute.xlu0 %2280
        %2282 = vrot.lane.b32.xlu0 %v2175, 30
        %v2283 = vpop.permute.xlu0 %2282
        %vm2284 = vcmask 244736
        %v2285 = vsel %vm2284, %v2275, %v2277
        %v2286 = vsel %vm2284, %v2277, %v2279
        %v2287 = vsel %vm2284, %v2279, %v2281
        %v2288 = vsel %vm2284, %v2281, %v2283
        %2289 = vrot.lane.b32.xlu0 %v2168, 28
        %v2290 = vpop.permute.xlu0 %2289
        %2291 = vrot.lane.b32.xlu0 %v2169, 28
        %v2292 = vpop.permute.xlu0 %2291
        %2293 = vrot.lane.b32.xlu0 %v2170, 28
        %v2294 = vpop.permute.xlu0 %2293
        %2295 = vrot.lane.b32.xlu0 %v2171, 28
        %v2296 = vpop.permute.xlu0 %2295
        %2297 = vrot.lane.b32.xlu0 %v2175, 28
        %v2298 = vpop.permute.xlu0 %2297
        %vm2299 = vcmask 228352
        %v2300 = vsel %vm2299, %v2290, %v2292
        %v2301 = vsel %vm2299, %v2292, %v2294
        %v2302 = vsel %vm2299, %v2294, %v2296
        %v2303 = vsel %vm2299, %v2296, %v2298
        %2304 = vrot.lane.b32.xlu0 %v2187, 78
        %v2305 = vpop.permute.xlu0 %2304
        %2306 = vrot.lane.b32.xlu0 %v2188, 78
        %v2307 = vpop.permute.xlu0 %2306
        %2308 = vrot.lane.b32.xlu0 %v2189, 78
        %v2309 = vpop.permute.xlu0 %2308
        %2310 = vrot.lane.b32.xlu0 %v2190, 78
        %v2311 = vpop.permute.xlu0 %2310
        %2312 = vrot.lane.b32.xlu0 %v2186, 78
        %v2313 = vpop.permute.xlu0 %2312
        %2314 = vrot.lane.b32.xlu0 %v2202, 78
        %v2315 = vpop.permute.xlu0 %2314
        %2316 = vrot.lane.b32.xlu0 %v2203, 78
        %v2317 = vpop.permute.xlu0 %2316
        %2318 = vrot.lane.b32.xlu0 %v2204, 78
        %v2319 = vpop.permute.xlu0 %2318
        %2320 = vrot.lane.b32.xlu0 %v2205, 78
        %v2321 = vpop.permute.xlu0 %2320
        %2322 = vrot.lane.b32.xlu0 %v2200, 78
        %v2323 = vpop.permute.xlu0 %2322
        %2324 = vrot.lane.b32.xlu0 %v2219, 78
        %v2325 = vpop.permute.xlu0 %2324
        %2326 = vrot.lane.b32.xlu0 %v2220, 78
        %v2327 = vpop.permute.xlu0 %2326
        %2328 = vrot.lane.b32.xlu0 %v2221, 78
        %v2329 = vpop.permute.xlu0 %2328
        %2330 = vrot.lane.b32.xlu0 %v2222, 78
        %v2331 = vpop.permute.xlu0 %2330
        %2332 = vrot.lane.b32.xlu0 %v2223, 78
        %v2333 = vpop.permute.xlu0 %2332
        %2334 = vrot.lane.b32.xlu0 %v2236, 78
        %v2335 = vpop.permute.xlu0 %2334
        %2336 = vrot.lane.b32.xlu0 %v2237, 78
        %v2337 = vpop.permute.xlu0 %2336
        %2338 = vrot.lane.b32.xlu0 %v2238, 78
        %v2339 = vpop.permute.xlu0 %2338
        %2340 = vrot.lane.b32.xlu0 %v2239, 78
        %v2341 = vpop.permute.xlu0 %2340
        %2342 = vrot.lane.b32.xlu0 %v2240, 78
        %v2343 = vpop.permute.xlu0 %2342
        %2344 = vrot.lane.b32.xlu0 %v2254, 78
        %v2345 = vpop.permute.xlu0 %2344
        %2346 = vrot.lane.b32.xlu0 %v2255, 78
        %v2347 = vpop.permute.xlu0 %2346
        %2348 = vrot.lane.b32.xlu0 %v2256, 78
        %v2349 = vpop.permute.xlu0 %2348
        %2350 = vrot.lane.b32.xlu0 %v2257, 78
        %v2351 = vpop.permute.xlu0 %2350
        %2352 = vrot.lane.b32.xlu0 %v2258, 78
        %v2353 = vpop.permute.xlu0 %2352
        %2354 = vrot.lane.b32.xlu0 %v2260, 78
        %v2355 = vpop.permute.xlu0 %2354
        %2356 = vrot.lane.b32.xlu0 %v2270, 78
        %v2357 = vpop.permute.xlu0 %2356
        %2358 = vrot.lane.b32.xlu0 %v2271, 78
        %v2359 = vpop.permute.xlu0 %2358
        %2360 = vrot.lane.b32.xlu0 %v2272, 78
        %v2361 = vpop.permute.xlu0 %2360
        %2362 = vrot.lane.b32.xlu0 %v2273, 78
        %v2363 = vpop.permute.xlu0 %2362
        %2364 = vrot.lane.b32.xlu0 %v2275, 78
        %v2365 = vpop.permute.xlu0 %2364
        %2366 = vrot.lane.b32.xlu0 %v2285, 78
        %v2367 = vpop.permute.xlu0 %2366
        %2368 = vrot.lane.b32.xlu0 %v2286, 78
        %v2369 = vpop.permute.xlu0 %2368
        %2370 = vrot.lane.b32.xlu0 %v2287, 78
        %v2371 = vpop.permute.xlu0 %2370
        %2372 = vrot.lane.b32.xlu0 %v2288, 78
        %v2373 = vpop.permute.xlu0 %2372
        %2374 = vrot.lane.b32.xlu0 %v2290, 78
        %v2375 = vpop.permute.xlu0 %2374
        %2376 = vrot.lane.b32.xlu0 %v2300, 78
        %v2377 = vpop.permute.xlu0 %2376
        %2378 = vrot.lane.b32.xlu0 %v2301, 78
        %v2379 = vpop.permute.xlu0 %2378
        %2380 = vrot.lane.b32.xlu0 %v2302, 78
        %v2381 = vpop.permute.xlu0 %2380
        %2382 = vrot.lane.b32.xlu0 %v2303, 78
        %v2383 = vpop.permute.xlu0 %2382
        %v2384 = vsel %vm1103, %v2305, %v2307
        %v2385 = vsel %vm1103, %v2307, %v2309
        %v2386 = vsel %vm1103, %v2309, %v2311
        %v2387 = vsel %vm1103, %v2311, %v2313
        %v2388 = vsel %vm1103, %v2315, %v2317
        %v2389 = vsel %vm1103, %v2317, %v2319
        %v2390 = vsel %vm1103, %v2319, %v2321
        %v2391 = vsel %vm1103, %v2321, %v2323
        %v2392 = vsel %vm1103, %v2325, %v2327
        %v2393 = vsel %vm1103, %v2327, %v2329
        %v2394 = vsel %vm1103, %v2329, %v2331
        %v2395 = vsel %vm1103, %v2331, %v2333
        %v2396 = vsel %vm1103, %v2335, %v2337
        %v2397 = vsel %vm1103, %v2337, %v2339
        %v2398 = vsel %vm1103, %v2339, %v2341
        %v2399 = vsel %vm1103, %v2341, %v2343
        %v2400 = vsel %vm1103, %v2345, %v2347
        %v2401 = vsel %vm1103, %v2347, %v2349
        %v2402 = vsel %vm1103, %v2349, %v2351
        %v2403 = vsel %vm1103, %v2351, %v2353
        %v2404 = vsel %vm1103, %v2355, %v2357
        %v2405 = vsel %vm1103, %v2357, %v2359
        %v2406 = vsel %vm1103, %v2359, %v2361
        %v2407 = vsel %vm1103, %v2361, %v2363
        %v2408 = vsel %vm1103, %v2365, %v2367
        %v2409 = vsel %vm1103, %v2367, %v2369
        %v2410 = vsel %vm1103, %v2369, %v2371
        %v2411 = vsel %vm1103, %v2371, %v2373
        %v2412 = vsel %vm1103, %v2375, %v2377
        %v2413 = vsel %vm1103, %v2377, %v2379
        %v2414 = vsel %vm1103, %v2379, %v2381
        %v2415 = vsel %vm1103, %v2381, %v2383
        %v2462 = vsel %vm1470, %v2152, 0
        %2464 = vmatprep.subr.mxu0 0.0
        %2465 = vmatpush1.msra.mxu0 0.0
        %2466 = vmatprep.subr.mxu0 0.0
        %2467 = vmatpush1.msra.mxu0 0.0
        %2468 = vmatprep.subr.mxu0 0.0
        %2469 = vmatpush1.msra.mxu0 0.0
        %2470 = vmatprep.subr.mxu0 0.0
        %2471 = vmatpush1.msra.mxu0 0.0
        %2472 = vmatprep.subr.mxu0 0.0
        %2473 = vmatpush1.msra.mxu0 0.0
        %2474 = vmatprep.subr.mxu0 0.0
        %2475 = vmatpush1.msra.mxu0 0.0
        %2476 = vmatprep.subr.mxu0 0.0
        %2477 = vmatpush1.msra.mxu0 0.0
        %2478 = vmatprep.subr.mxu0 %v2413
        %2479 = vmatpush1.msra.mxu0 %v2412
        %2480 = vmatprep.subr.mxu0 %v2409
        %2481 = vmatpush1.msra.mxu0 %v2408
        %2482 = vmatprep.subr.mxu0 %v2405
        %2483 = vmatpush1.msra.mxu0 %v2404
        %2484 = vmatprep.subr.mxu0 %v2401
        %2485 = vmatpush1.msra.mxu0 %v2400
        %2486 = vmatprep.subr.mxu0 %v2397
        %2487 = vmatpush1.msra.mxu0 %v2396
        %2488 = vmatprep.subr.mxu0 %v2393
        %2489 = vmatpush1.msra.mxu0 %v2392
        %2490 = vmatprep.subr.mxu0 %v2389
        %2491 = vmatpush1.msra.mxu0 %v2388
        %2492 = vmatprep.subr.mxu0 %v2385
        %2493 = vmatpush1.msra.mxu0 %v2384
        %2494 = vmatprep.subr.mxu0 %v2237
        %2495 = vmatpush1.msra.mxu0 %v2236
        %2496 = vmatprep.subr.mxu0 0.0
        %2497 = vmatpush2.msra.mxu0 0.0
        %2498 = vmatprep.subr.mxu0 0.0
        %2499 = vmatpush2.msra.mxu0 0.0
        %2500 = vmatprep.subr.mxu0 0.0
        %2501 = vmatpush2.msra.mxu0 0.0
        %2502 = vmatprep.subr.mxu0 0.0
        %2503 = vmatpush2.msra.mxu0 0.0
        %2504 = vmatprep.subr.mxu0 0.0
        %2505 = vmatpush2.msra.mxu0 0.0
        %2506 = vmatprep.subr.mxu0 0.0
        %2507 = vmatpush2.msra.mxu0 0.0
        %2508 = vmatprep.subr.mxu0 0.0
        %2509 = vmatpush2.msra.mxu0 0.0
        %2510 = vmatprep.subr.mxu0 0.0
        %2511 = vmatpush2.msra.mxu0 0.0
        %2512 = vmatprep.subr.mxu0 0.0
        %2513 = vmatpush2.msra.mxu0 0.0
        %2514 = vmatprep.subr.mxu0 0.0
        %2515 = vmatpush2.msra.mxu0 0.0
        %2516 = vmatprep.subr.mxu0 0.0
        %2517 = vmatpush2.msra.mxu0 0.0
        %2518 = vmatprep.subr.mxu0 0.0
        %2519 = vmatpush2.msra.mxu0 0.0
        %2520 = vmatprep.subr.mxu0 0.0
        %2521 = vmatpush2.msra.mxu0 0.0
        %2522 = vmatprep.subr.mxu0 0.0
        %2523 = vmatpush2.msra.mxu0 0.0
        %2524 = vmatprep.subr.mxu0 0.0
        %2525 = vmatpush2.msra.mxu0 0.0
        %2526 = vmatprep.subr.mxu0 0.0
        %2527 = vmatpush2.msra.mxu0 0.0
        %2528 = vmatprep.mubr.f32.mxu0 0.0
        %2529 = vmatmul.mubr.f32.gmra.mxu0 %v2462
        %v2530 = vpop.f32.mrf.mxu0
        %v2531 = vadd.f32 0.0, %v2530
        %v2532 = vpop.f32.mrf.mxu0
        %v2533 = vadd.f32 0.0, %v2532
        %2534 = vdwg.mxu0
        %2535 = vmatprep.subr.mxu0 0.0
        %2536 = vmatpush1.msra.mxu0 0.0
        %2537 = vmatprep.subr.mxu0 0.0
        %2538 = vmatpush1.msra.mxu0 0.0
        %2539 = vmatprep.subr.mxu0 0.0
        %2540 = vmatpush1.msra.mxu0 0.0
        %2541 = vmatprep.subr.mxu0 0.0
        %2542 = vmatpush1.msra.mxu0 0.0
        %2543 = vmatprep.subr.mxu0 0.0
        %2544 = vmatpush1.msra.mxu0 0.0
        %2545 = vmatprep.subr.mxu0 0.0
        %2546 = vmatpush1.msra.mxu0 0.0
        %2547 = vmatprep.subr.mxu0 0.0
        %2548 = vmatpush1.msra.mxu0 0.0
        %2549 = vmatprep.subr.mxu0 %v2415
        %2550 = vmatpush1.msra.mxu0 %v2414
        %2551 = vmatprep.subr.mxu0 %v2411
        %2552 = vmatpush1.msra.mxu0 %v2410
        %2553 = vmatprep.subr.mxu0 %v2407
        %2554 = vmatpush1.msra.mxu0 %v2406
        %2555 = vmatprep.subr.mxu0 %v2403
        %2556 = vmatpush1.msra.mxu0 %v2402
        %2557 = vmatprep.subr.mxu0 %v2399
        %2558 = vmatpush1.msra.mxu0 %v2398
        %2559 = vmatprep.subr.mxu0 %v2395
        %2560 = vmatpush1.msra.mxu0 %v2394
        %2561 = vmatprep.subr.mxu0 %v2391
        %2562 = vmatpush1.msra.mxu0 %v2390
        %2563 = vmatprep.subr.mxu0 %v2387
        %2564 = vmatpush1.msra.mxu0 %v2386
        %2565 = vmatprep.subr.mxu0 %v2239
        %2566 = vmatpush1.msra.mxu0 %v2238
        %2567 = vmatprep.subr.mxu0 0.0
        %2568 = vmatpush2.msra.mxu0 0.0
        %2569 = vmatprep.subr.mxu0 0.0
        %2570 = vmatpush2.msra.mxu0 0.0
        %2571 = vmatprep.subr.mxu0 0.0
        %2572 = vmatpush2.msra.mxu0 0.0
        %2573 = vmatprep.subr.mxu0 0.0
        %2574 = vmatpush2.msra.mxu0 0.0
        %2575 = vmatprep.subr.mxu0 0.0
        %2576 = vmatpush2.msra.mxu0 0.0
        %2577 = vmatprep.subr.mxu0 0.0
        %2578 = vmatpush2.msra.mxu0 0.0
        %2579 = vmatprep.subr.mxu0 0.0
        %2580 = vmatpush2.msra.mxu0 0.0
        %2581 = vmatprep.subr.mxu0 0.0
        %2582 = vmatpush2.msra.mxu0 0.0
        %2583 = vmatprep.subr.mxu0 0.0
        %2584 = vmatpush2.msra.mxu0 0.0
        %2585 = vmatprep.subr.mxu0 0.0
        %2586 = vmatpush2.msra.mxu0 0.0
        %2587 = vmatprep.subr.mxu0 0.0
        %2588 = vmatpush2.msra.mxu0 0.0
        %2589 = vmatprep.subr.mxu0 0.0
        %2590 = vmatpush2.msra.mxu0 0.0
        %2591 = vmatprep.subr.mxu0 0.0
        %2592 = vmatpush2.msra.mxu0 0.0
        %2593 = vmatprep.subr.mxu0 0.0
        %2594 = vmatpush2.msra.mxu0 0.0
        %2595 = vmatprep.subr.mxu0 0.0
        %2596 = vmatpush2.msra.mxu0 0.0
        %2597 = vmatprep.subr.mxu0 0.0
        %2598 = vmatpush2.msra.mxu0 0.0
        %2599 = vmatprep.mubr.f32.mxu0 0.0
        %2600 = vmatmul.mubr.f32.gmra.mxu0 %v2462
        %v2601 = vpop.f32.mrf.mxu0
        %v2602 = vadd.f32 0.0, %v2601
        %v2603 = vpop.f32.mrf.mxu0
        %v2604 = vadd.f32 0.0, %v2603
        %2605 = vdwg.mxu0
        %2606 = vmatprep.subr.mxu0 0.0
        %2607 = vmatpush1.msra.mxu0 0.0
        %2608 = vmatprep.subr.mxu0 0.0
        %2609 = vmatpush1.msra.mxu0 0.0
        %2610 = vmatprep.subr.mxu0 0.0
        %2611 = vmatpush1.msra.mxu0 0.0
        %2612 = vmatprep.subr.mxu0 0.0
        %2613 = vmatpush1.msra.mxu0 0.0
        %2614 = vmatprep.subr.mxu0 0.0
        %2615 = vmatpush1.msra.mxu0 0.0
        %2616 = vmatprep.subr.mxu0 0.0
        %2617 = vmatpush1.msra.mxu0 0.0
        %2618 = vmatprep.subr.mxu0 0.0
        %2619 = vmatpush1.msra.mxu0 0.0
        %2620 = vmatprep.subr.mxu0 0.0
        %2621 = vmatpush1.msra.mxu0 %v2383
        %2622 = vmatprep.subr.mxu0 0.0
        %2623 = vmatpush1.msra.mxu0 %v2373
        %2624 = vmatprep.subr.mxu0 0.0
        %2625 = vmatpush1.msra.mxu0 %v2363
        %2626 = vmatprep.subr.mxu0 0.0
        %2627 = vmatpush1.msra.mxu0 %v2353
        %2628 = vmatprep.subr.mxu0 0.0
        %2629 = vmatpush1.msra.mxu0 %v2343
        %2630 = vmatprep.subr.mxu0 0.0
        %2631 = vmatpush1.msra.mxu0 %v2333
        %2632 = vmatprep.subr.mxu0 0.0
        %2633 = vmatpush1.msra.mxu0 %v2323
        %2634 = vmatprep.subr.mxu0 0.0
        %2635 = vmatpush1.msra.mxu0 %v2313
        %2636 = vmatprep.subr.mxu0 0.0
        %2637 = vmatpush1.msra.mxu0 %v2233
        %2638 = vmatprep.subr.mxu0 0.0
        %2639 = vmatpush2.msra.mxu0 0.0
        %2640 = vmatprep.subr.mxu0 0.0
        %2641 = vmatpush2.msra.mxu0 0.0
        %2642 = vmatprep.subr.mxu0 0.0
        %2643 = vmatpush2.msra.mxu0 0.0
        %2644 = vmatprep.subr.mxu0 0.0
        %2645 = vmatpush2.msra.mxu0 0.0
        %2646 = vmatprep.subr.mxu0 0.0
        %2647 = vmatpush2.msra.mxu0 0.0
        %2648 = vmatprep.subr.mxu0 0.0
        %2649 = vmatpush2.msra.mxu0 0.0
        %2650 = vmatprep.subr.mxu0 0.0
        %2651 = vmatpush2.msra.mxu0 0.0
        %2652 = vmatprep.subr.mxu0 0.0
        %2653 = vmatpush2.msra.mxu0 0.0
        %2654 = vmatprep.subr.mxu0 0.0
        %2655 = vmatpush2.msra.mxu0 0.0
        %2656 = vmatprep.subr.mxu0 0.0
        %2657 = vmatpush2.msra.mxu0 0.0
        %2658 = vmatprep.subr.mxu0 0.0
        %2659 = vmatpush2.msra.mxu0 0.0
        %2660 = vmatprep.subr.mxu0 0.0
        %2661 = vmatpush2.msra.mxu0 0.0
        %2662 = vmatprep.subr.mxu0 0.0
        %2663 = vmatpush2.msra.mxu0 0.0
        %2664 = vmatprep.subr.mxu0 0.0
        %2665 = vmatpush2.msra.mxu0 0.0
        %2666 = vmatprep.subr.mxu0 0.0
        %2667 = vmatpush2.msra.mxu0 0.0
        %2668 = vmatprep.subr.mxu0 0.0
        %2669 = vmatpush2.msra.mxu0 0.0
        %2670 = vmatprep.mubr.f32.mxu0 0.0
        %2671 = vmatmul.mubr.f32.gmra.mxu0 %v2462
        %v2672 = vpop.f32.mrf.mxu0
        %v2673 = vadd.f32 0.0, %v2672
        %v2674 = vpop.f32.mrf.mxu0
        %2675 = vdwg.mxu0
        %s2676 = scalar_lea.vmem %s7, 8
        %v2677 = vld [vmem:[%s2676] sm:$0xff]
        %2679 = vset.pattern.permute.xlu0 0
        %2680 = vperm.xlu0 %2679, %v2677
        %v2681 = vpop.permute.xlu0 %2680
        %v2683 = vmul.f32 %v2531, %v2681
        %v2684 = vmul.f32 %v2533, %v2681
        %v2685 = vmul.f32 %v2602, %v2681
        %v2686 = vmul.f32 %v2604, %v2681
        %v2687 = vmul.f32 %v2673, %v2681
        %s2688 = scalar_lea.vmem %s8, 8
        %v2689 = vld [vmem:[%s2688] sm:$0xff]
        %2691 = vset.pattern.permute.xlu0 0
        %2692 = vperm.xlu0 %2691, %v2689
        %v2693 = vpop.permute.xlu0 %2692
        %v2695 = vadd.f32 %v2683, %v2693
        %v2696 = vadd.f32 %v2684, %v2693
        %v2697 = vadd.f32 %v2685, %v2693
        %v2698 = vadd.f32 %v2686, %v2693
        %v2699 = vadd.f32 %v2687, %v2693
        %v2700 = vadd.f32 %v2695, %v2146
        %v2701 = vadd.f32 %v2696, %v2147
        %v2702 = vadd.f32 %v2697, %v2148
        %v2703 = vadd.f32 %v2698, %v2149
        %v2704 = vadd.f32 %v2699, %v2150
        %v2705 = vmax.f32 %v2700, 0.0
        %v2706 = vmax.f32 %v2701, 0.0
        %v2707 = vmax.f32 %v2702, 0.0
        %v2708 = vmax.f32 %v2703, 0.0
        %v2709 = vmax.f32 %v2704, 0.0
        %v2710 = vmul.f32 %v2705, %v683
        %v2711 = vmul.f32 %v2706, %v687
        %v2712 = vmul.f32 %v2707, %v691
        %v2713 = vmul.f32 %v2708, %v695
        %v2714 = vmul.f32 %v2709, %v699
        %s2715 = scalar_lea.vmem %s5, 16
        %v2716 = vld [vmem:[%s2715] sm:$0xff]
        %2722 = vrot.lane.b32.xlu0 %v2710, 100
        %v2723 = vpop.permute.xlu0 %2722
        %2724 = vrot.lane.b32.xlu0 %v2711, 100
        %v2725 = vpop.permute.xlu0 %2724
        %2726 = vrot.lane.b32.xlu0 %v2712, 100
        %v2727 = vpop.permute.xlu0 %2726
        %2728 = vrot.lane.b32.xlu0 %v2713, 100
        %v2729 = vpop.permute.xlu0 %2728
        %2730 = vrot.lane.b32.xlu0 %v2714, 100
        %v2731 = vpop.permute.xlu0 %2730
        %v2732 = vsel %vm953, %v2723, %v2725
        %v2733 = vsel %vm953, %v2725, %v2727
        %v2734 = vsel %vm953, %v2727, %v2729
        %v2735 = vsel %vm953, %v2729, %v2731
        %v2742 = vsel %vm953, 0.0, %v2723
        %v2743 = vsel %vm961, %v2731, 0.0
        %2745 = vrot.lane.b32.xlu0 %v2742, 124
        %v2746 = vpop.permute.xlu0 %2745
        %2747 = vrot.lane.b32.xlu0 %v2732, 124
        %v2748 = vpop.permute.xlu0 %2747
        %2749 = vrot.lane.b32.xlu0 %v2733, 124
        %v2750 = vpop.permute.xlu0 %2749
        %2751 = vrot.lane.b32.xlu0 %v2734, 124
        %v2752 = vpop.permute.xlu0 %2751
        %2753 = vrot.lane.b32.xlu0 %v2735, 124
        %v2754 = vpop.permute.xlu0 %2753
        %v2755 = vsel %vm2201, %v2746, %v2748
        %v2756 = vsel %vm2201, %v2748, %v2750
        %v2757 = vsel %vm2201, %v2750, %v2752
        %v2758 = vsel %vm2201, %v2752, %v2754
        %2764 = vrot.lane.b32.xlu0 %v2742, 120
        %v2765 = vpop.permute.xlu0 %2764
        %2766 = vrot.lane.b32.xlu0 %v2732, 120
        %v2767 = vpop.permute.xlu0 %2766
        %2768 = vrot.lane.b32.xlu0 %v2733, 120
        %v2769 = vpop.permute.xlu0 %2768
        %2770 = vrot.lane.b32.xlu0 %v2734, 120
        %v2771 = vpop.permute.xlu0 %2770
        %2772 = vrot.lane.b32.xlu0 %v2735, 120
        %v2773 = vpop.permute.xlu0 %2772
        %vm2774 = vcmask 982016
        %v2775 = vsel %vm2774, %v2765, %v2767
        %v2776 = vsel %vm2774, %v2767, %v2769
        %v2777 = vsel %vm2774, %v2769, %v2771
        %v2778 = vsel %vm2774, %v2771, %v2773
        %2785 = vrot.lane.b32.xlu0 %v2742, 32
        %v2786 = vpop.permute.xlu0 %2785
        %2787 = vrot.lane.b32.xlu0 %v2732, 32
        %v2788 = vpop.permute.xlu0 %2787
        %2789 = vrot.lane.b32.xlu0 %v2733, 32
        %v2790 = vpop.permute.xlu0 %2789
        %2791 = vrot.lane.b32.xlu0 %v2734, 32
        %v2792 = vpop.permute.xlu0 %2791
        %2793 = vrot.lane.b32.xlu0 %v2735, 32
        %v2794 = vpop.permute.xlu0 %2793
        %2795 = vrot.lane.b32.xlu0 %v2743, 32
        %v2796 = vpop.permute.xlu0 %2795
        %v2797 = vsel %vm2269, %v2786, %v2788
        %v2798 = vsel %vm2269, %v2788, %v2790
        %v2799 = vsel %vm2269, %v2790, %v2792
        %v2800 = vsel %vm2269, %v2792, %v2794
        %v2801 = vsel %vm2269, %v2794, %v2796
        %2807 = vrot.lane.b32.xlu0 %v2742, 28
        %v2808 = vpop.permute.xlu0 %2807
        %2809 = vrot.lane.b32.xlu0 %v2732, 28
        %v2810 = vpop.permute.xlu0 %2809
        %2811 = vrot.lane.b32.xlu0 %v2733, 28
        %v2812 = vpop.permute.xlu0 %2811
        %2813 = vrot.lane.b32.xlu0 %v2734, 28
        %v2814 = vpop.permute.xlu0 %2813
        %2815 = vrot.lane.b32.xlu0 %v2735, 28
        %v2816 = vpop.permute.xlu0 %2815
        %2817 = vrot.lane.b32.xlu0 %v2743, 28
        %v2818 = vpop.permute.xlu0 %2817
        %v2819 = vsel %vm2299, %v2808, %v2810
        %v2820 = vsel %vm2299, %v2810, %v2812
        %v2821 = vsel %vm2299, %v2812, %v2814
        %v2822 = vsel %vm2299, %v2814, %v2816
        %v2823 = vsel %vm2299, %v2816, %v2818
        %2829 = vrot.lane.b32.xlu0 %v2742, 24
        %v2830 = vpop.permute.xlu0 %2829
        %2831 = vrot.lane.b32.xlu0 %v2732, 24
        %v2832 = vpop.permute.xlu0 %2831
        %2833 = vrot.lane.b32.xlu0 %v2733, 24
        %v2834 = vpop.permute.xlu0 %2833
        %2835 = vrot.lane.b32.xlu0 %v2734, 24
        %v2836 = vpop.permute.xlu0 %2835
        %2837 = vrot.lane.b32.xlu0 %v2735, 24
        %v2838 = vpop.permute.xlu0 %2837
        %2839 = vrot.lane.b32.xlu0 %v2743, 24
        %v2840 = vpop.permute.xlu0 %2839
        %vm2841 = vcmask 195584
        %v2842 = vsel %vm2841, %v2830, %v2832
        %v2843 = vsel %vm2841, %v2832, %v2834
        %v2844 = vsel %vm2841, %v2834, %v2836
        %v2845 = vsel %vm2841, %v2836, %v2838
        %v2846 = vsel %vm2841, %v2838, %v2840
        %2852 = vrot.lane.b32.xlu0 %v2732, 64
        %v2853 = vpop.permute.xlu0 %2852
        %2854 = vrot.lane.b32.xlu0 %v2733, 64
        %v2855 = vpop.permute.xlu0 %2854
        %2856 = vrot.lane.b32.xlu0 %v2734, 64
        %v2857 = vpop.permute.xlu0 %2856
        %2858 = vrot.lane.b32.xlu0 %v2735, 64
        %v2859 = vpop.permute.xlu0 %2858
        %2860 = vrot.lane.b32.xlu0 %v2743, 64
        %v2861 = vpop.permute.xlu0 %2860
        %vm2862 = vcmask 523264
        %v2863 = vsel %vm2862, %v2853, %v2855
        %v2864 = vsel %vm2862, %v2855, %v2857
        %v2865 = vsel %vm2862, %v2857, %v2859
        %v2866 = vsel %vm2862, %v2859, %v2861
        %2873 = vrot.lane.b32.xlu0 %v2732, 60
        %v2874 = vpop.permute.xlu0 %2873
        %2875 = vrot.lane.b32.xlu0 %v2733, 60
        %v2876 = vpop.permute.xlu0 %2875
        %2877 = vrot.lane.b32.xlu0 %v2734, 60
        %v2878 = vpop.permute.xlu0 %2877
        %2879 = vrot.lane.b32.xlu0 %v2735, 60
        %v2880 = vpop.permute.xlu0 %2879
        %2881 = vrot.lane.b32.xlu0 %v2743, 60
        %v2882 = vpop.permute.xlu0 %2881
        %2883 = vrot.lane.b32.xlu0 0.0, 60
        %v2884 = vpop.permute.xlu0 %2883
        %vm2885 = vcmask 490496
        %v2886 = vsel %vm2885, %v2874, %v2876
        %v2887 = vsel %vm2885, %v2876, %v2878
        %v2888 = vsel %vm2885, %v2878, %v2880
        %v2889 = vsel %vm2885, %v2880, %v2882
        %v2890 = vsel %vm2885, %v2882, %v2884
        %2896 = vrot.lane.b32.xlu0 %v2732, 56
        %v2897 = vpop.permute.xlu0 %2896
        %2898 = vrot.lane.b32.xlu0 %v2733, 56
        %v2899 = vpop.permute.xlu0 %2898
        %2900 = vrot.lane.b32.xlu0 %v2734, 56
        %v2901 = vpop.permute.xlu0 %2900
        %2902 = vrot.lane.b32.xlu0 %v2735, 56
        %v2903 = vpop.permute.xlu0 %2902
        %2904 = vrot.lane.b32.xlu0 %v2743, 56
        %v2905 = vpop.permute.xlu0 %2904
        %2906 = vrot.lane.b32.xlu0 0.0, 56
        %v2907 = vpop.permute.xlu0 %2906
        %vm2908 = vcmask 457728
        %v2909 = vsel %vm2908, %v2897, %v2899
        %v2910 = vsel %vm2908, %v2899, %v2901
        %v2911 = vsel %vm2908, %v2901, %v2903
        %v2912 = vsel %vm2908, %v2903, %v2905
        %v2913 = vsel %vm2908, %v2905, %v2907
        %v2920 = vsel %vm1470, %v2716, 0
        %2922 = vmatprep.subr.mxu0 0.0
        %2923 = vmatpush1.msra.mxu0 0.0
        %2924 = vmatprep.subr.mxu0 0.0
        %2925 = vmatpush1.msra.mxu0 0.0
        %2926 = vmatprep.subr.mxu0 0.0
        %2927 = vmatpush1.msra.mxu0 0.0
        %2928 = vmatprep.subr.mxu0 0.0
        %2929 = vmatpush1.msra.mxu0 0.0
        %2930 = vmatprep.subr.mxu0 0.0
        %2931 = vmatpush1.msra.mxu0 0.0
        %2932 = vmatprep.subr.mxu0 0.0
        %2933 = vmatpush1.msra.mxu0 0.0
        %2934 = vmatprep.subr.mxu0 0.0
        %2935 = vmatpush1.msra.mxu0 0.0
        %2936 = vmatprep.subr.mxu0 %v2910
        %2937 = vmatpush1.msra.mxu0 %v2909
        %2938 = vmatprep.subr.mxu0 %v2887
        %2939 = vmatpush1.msra.mxu0 %v2886
        %2940 = vmatprep.subr.mxu0 %v2864
        %2941 = vmatpush1.msra.mxu0 %v2863
        %2942 = vmatprep.subr.mxu0 %v2843
        %2943 = vmatpush1.msra.mxu0 %v2842
        %2944 = vmatprep.subr.mxu0 %v2820
        %2945 = vmatpush1.msra.mxu0 %v2819
        %2946 = vmatprep.subr.mxu0 %v2798
        %2947 = vmatpush1.msra.mxu0 %v2797
        %2948 = vmatprep.subr.mxu0 %v2776
        %2949 = vmatpush1.msra.mxu0 %v2775
        %2950 = vmatprep.subr.mxu0 %v2756
        %2951 = vmatpush1.msra.mxu0 %v2755
        %2952 = vmatprep.subr.mxu0 %v2732
        %2953 = vmatpush1.msra.mxu0 %v2742
        %2954 = vmatprep.subr.mxu0 0.0
        %2955 = vmatpush2.msra.mxu0 0.0
        %2956 = vmatprep.subr.mxu0 0.0
        %2957 = vmatpush2.msra.mxu0 0.0
        %2958 = vmatprep.subr.mxu0 0.0
        %2959 = vmatpush2.msra.mxu0 0.0
        %2960 = vmatprep.subr.mxu0 0.0
        %2961 = vmatpush2.msra.mxu0 0.0
        %2962 = vmatprep.subr.mxu0 0.0
        %2963 = vmatpush2.msra.mxu0 0.0
        %2964 = vmatprep.subr.mxu0 0.0
        %2965 = vmatpush2.msra.mxu0 0.0
        %2966 = vmatprep.subr.mxu0 0.0
        %2967 = vmatpush2.msra.mxu0 0.0
        %2968 = vmatprep.subr.mxu0 0.0
        %2969 = vmatpush2.msra.mxu0 0.0
        %2970 = vmatprep.subr.mxu0 0.0
        %2971 = vmatpush2.msra.mxu0 0.0
        %2972 = vmatprep.subr.mxu0 0.0
        %2973 = vmatpush2.msra.mxu0 0.0
        %2974 = vmatprep.subr.mxu0 0.0
        %2975 = vmatpush2.msra.mxu0 0.0
        %2976 = vmatprep.subr.mxu0 0.0
        %2977 = vmatpush2.msra.mxu0 0.0
        %2978 = vmatprep.subr.mxu0 0.0
        %2979 = vmatpush2.msra.mxu0 0.0
        %2980 = vmatprep.subr.mxu0 0.0
        %2981 = vmatpush2.msra.mxu0 0.0
        %2982 = vmatprep.subr.mxu0 0.0
        %2983 = vmatpush2.msra.mxu0 0.0
        %2984 = vmatprep.subr.mxu0 0.0
        %2985 = vmatpush2.msra.mxu0 0.0
        %2986 = vmatprep.mubr.f32.mxu0 0.0
        %2987 = vmatmul.mubr.f32.gmra.mxu0 %v2920
        %v2988 = vpop.f32.mrf.mxu0
        %v2989 = vadd.f32 0.0, %v2988
        %v2990 = vpop.f32.mrf.mxu0
        %v2991 = vadd.f32 0.0, %v2990
        %2992 = vdwg.mxu0
        %2993 = vmatprep.subr.mxu0 0.0
        %2994 = vmatpush1.msra.mxu0 0.0
        %2995 = vmatprep.subr.mxu0 0.0
        %2996 = vmatpush1.msra.mxu0 0.0
        %2997 = vmatprep.subr.mxu0 0.0
        %2998 = vmatpush1.msra.mxu0 0.0
        %2999 = vmatprep.subr.mxu0 0.0
        %3000 = vmatpush1.msra.mxu0 0.0
        %3001 = vmatprep.subr.mxu0 0.0
        %3002 = vmatpush1.msra.mxu0 0.0
        %3003 = vmatprep.subr.mxu0 0.0
        %3004 = vmatpush1.msra.mxu0 0.0
        %3005 = vmatprep.subr.mxu0 0.0
        %3006 = vmatpush1.msra.mxu0 0.0
        %3007 = vmatprep.subr.mxu0 %v2912
        %3008 = vmatpush1.msra.mxu0 %v2911
        %3009 = vmatprep.subr.mxu0 %v2889
        %3010 = vmatpush1.msra.mxu0 %v2888
        %3011 = vmatprep.subr.mxu0 %v2866
        %3012 = vmatpush1.msra.mxu0 %v2865
        %3013 = vmatprep.subr.mxu0 %v2845
        %3014 = vmatpush1.msra.mxu0 %v2844
        %3015 = vmatprep.subr.mxu0 %v2822
        %3016 = vmatpush1.msra.mxu0 %v2821
        %3017 = vmatprep.subr.mxu0 %v2800
        %3018 = vmatpush1.msra.mxu0 %v2799
        %3019 = vmatprep.subr.mxu0 %v2778
        %3020 = vmatpush1.msra.mxu0 %v2777
        %3021 = vmatprep.subr.mxu0 %v2758
        %3022 = vmatpush1.msra.mxu0 %v2757
        %3023 = vmatprep.subr.mxu0 %v2734
        %3024 = vmatpush1.msra.mxu0 %v2733
        %3025 = vmatprep.subr.mxu0 0.0
        %3026 = vmatpush2.msra.mxu0 0.0
        %3027 = vmatprep.subr.mxu0 0.0
        %3028 = vmatpush2.msra.mxu0 0.0
        %3029 = vmatprep.subr.mxu0 0.0
        %3030 = vmatpush2.msra.mxu0 0.0
        %3031 = vmatprep.subr.mxu0 0.0
        %3032 = vmatpush2.msra.mxu0 0.0
        %3033 = vmatprep.subr.mxu0 0.0
        %3034 = vmatpush2.msra.mxu0 0.0
        %3035 = vmatprep.subr.mxu0 0.0
        %3036 = vmatpush2.msra.mxu0 0.0
        %3037 = vmatprep.subr.mxu0 0.0
        %3038 = vmatpush2.msra.mxu0 0.0
        %3039 = vmatprep.subr.mxu0 0.0
        %3040 = vmatpush2.msra.mxu0 0.0
        %3041 = vmatprep.subr.mxu0 0.0
        %3042 = vmatpush2.msra.mxu0 0.0
        %3043 = vmatprep.subr.mxu0 0.0
        %3044 = vmatpush2.msra.mxu0 0.0
        %3045 = vmatprep.subr.mxu0 0.0
        %3046 = vmatpush2.msra.mxu0 0.0
        %3047 = vmatprep.subr.mxu0 0.0
        %3048 = vmatpush2.msra.mxu0 0.0
        %3049 = vmatprep.subr.mxu0 0.0
        %3050 = vmatpush2.msra.mxu0 0.0
        %3051 = vmatprep.subr.mxu0 0.0
        %3052 = vmatpush2.msra.mxu0 0.0
        %3053 = vmatprep.subr.mxu0 0.0
        %3054 = vmatpush2.msra.mxu0 0.0
        %3055 = vmatprep.subr.mxu0 0.0
        %3056 = vmatpush2.msra.mxu0 0.0
        %3057 = vmatprep.mubr.f32.mxu0 0.0
        %3058 = vmatmul.mubr.f32.gmra.mxu0 %v2920
        %v3059 = vpop.f32.mrf.mxu0
        %v3060 = vadd.f32 0.0, %v3059
        %v3061 = vpop.f32.mrf.mxu0
        %v3062 = vadd.f32 0.0, %v3061
        %3063 = vdwg.mxu0
        %3064 = vmatprep.subr.mxu0 0.0
        %3065 = vmatpush1.msra.mxu0 0.0
        %3066 = vmatprep.subr.mxu0 0.0
        %3067 = vmatpush1.msra.mxu0 0.0
        %3068 = vmatprep.subr.mxu0 0.0
        %3069 = vmatpush1.msra.mxu0 0.0
        %3070 = vmatprep.subr.mxu0 0.0
        %3071 = vmatpush1.msra.mxu0 0.0
        %3072 = vmatprep.subr.mxu0 0.0
        %3073 = vmatpush1.msra.mxu0 0.0
        %3074 = vmatprep.subr.mxu0 0.0
        %3075 = vmatpush1.msra.mxu0 0.0
        %3076 = vmatprep.subr.mxu0 0.0
        %3077 = vmatpush1.msra.mxu0 0.0
        %3078 = vmatprep.subr.mxu0 0.0
        %3079 = vmatpush1.msra.mxu0 %v2913
        %3080 = vmatprep.subr.mxu0 0.0
        %3081 = vmatpush1.msra.mxu0 %v2890
        %3082 = vmatprep.subr.mxu0 0.0
        %3083 = vmatpush1.msra.mxu0 %v2861
        %3084 = vmatprep.subr.mxu0 0.0
        %3085 = vmatpush1.msra.mxu0 %v2846
        %3086 = vmatprep.subr.mxu0 0.0
        %3087 = vmatpush1.msra.mxu0 %v2823
        %3088 = vmatprep.subr.mxu0 0.0
        %3089 = vmatpush1.msra.mxu0 %v2801
        %3090 = vmatprep.subr.mxu0 0.0
        %3091 = vmatpush1.msra.mxu0 %v2773
        %3092 = vmatprep.subr.mxu0 0.0
        %3093 = vmatpush1.msra.mxu0 %v2754
        %3094 = vmatprep.subr.mxu0 0.0
        %3095 = vmatpush1.msra.mxu0 %v2735
        %3096 = vmatprep.subr.mxu0 0.0
        %3097 = vmatpush2.msra.mxu0 0.0
        %3098 = vmatprep.subr.mxu0 0.0
        %3099 = vmatpush2.msra.mxu0 0.0
        %3100 = vmatprep.subr.mxu0 0.0
        %3101 = vmatpush2.msra.mxu0 0.0
        %3102 = vmatprep.subr.mxu0 0.0
        %3103 = vmatpush2.msra.mxu0 0.0
        %3104 = vmatprep.subr.mxu0 0.0
        %3105 = vmatpush2.msra.mxu0 0.0
        %3106 = vmatprep.subr.mxu0 0.0
        %3107 = vmatpush2.msra.mxu0 0.0
        %3108 = vmatprep.subr.mxu0 0.0
        %3109 = vmatpush2.msra.mxu0 0.0
        %3110 = vmatprep.subr.mxu0 0.0
        %3111 = vmatpush2.msra.mxu0 0.0
        %3112 = vmatprep.subr.mxu0 0.0
        %3113 = vmatpush2.msra.mxu0 0.0
        %3114 = vmatprep.subr.mxu0 0.0
        %3115 = vmatpush2.msra.mxu0 0.0
        %3116 = vmatprep.subr.mxu0 0.0
        %3117 = vmatpush2.msra.mxu0 0.0
        %3118 = vmatprep.subr.mxu0 0.0
        %3119 = vmatpush2.msra.mxu0 0.0
        %3120 = vmatprep.subr.mxu0 0.0
        %3121 = vmatpush2.msra.mxu0 0.0
        %3122 = vmatprep.subr.mxu0 0.0
        %3123 = vmatpush2.msra.mxu0 0.0
        %3124 = vmatprep.subr.mxu0 0.0
        %3125 = vmatpush2.msra.mxu0 0.0
        %3126 = vmatprep.subr.mxu0 0.0
        %3127 = vmatpush2.msra.mxu0 0.0
        %3128 = vmatprep.mubr.f32.mxu0 0.0
        %3129 = vmatmul.mubr.f32.gmra.mxu0 %v2920
        %v3130 = vpop.f32.mrf.mxu0
        %v3131 = vadd.f32 0.0, %v3130
        %v3132 = vpop.f32.mrf.mxu0
        %3133 = vdwg.mxu0
        %s3134 = scalar_lea.vmem %s7, 16
        %v3135 = vld [vmem:[%s3134] sm:$0xff]
        %3137 = vset.pattern.permute.xlu0 0
        %3138 = vperm.xlu0 %3137, %v3135
        %v3139 = vpop.permute.xlu0 %3138
        %v3141 = vmul.f32 %v2989, %v3139
        %v3142 = vmul.f32 %v2991, %v3139
        %v3143 = vmul.f32 %v3060, %v3139
        %v3144 = vmul.f32 %v3062, %v3139
        %v3145 = vmul.f32 %v3131, %v3139
        %s3146 = scalar_lea.vmem %s8, 16
        %v3147 = vld [vmem:[%s3146] sm:$0xff]
        %3149 = vset.pattern.permute.xlu0 0
        %3150 = vperm.xlu0 %3149, %v3147
        %v3151 = vpop.permute.xlu0 %3150
        %v3153 = vadd.f32 %v3141, %v3151
        %v3154 = vadd.f32 %v3142, %v3151
        %v3155 = vadd.f32 %v3143, %v3151
        %v3156 = vadd.f32 %v3144, %v3151
        %v3157 = vadd.f32 %v3145, %v3151
        %v3158 = vadd.f32 %v3153, %v2710
        %v3159 = vadd.f32 %v3154, %v2711
        %v3160 = vadd.f32 %v3155, %v2712
        %v3161 = vadd.f32 %v3156, %v2713
        %v3162 = vadd.f32 %v3157, %v2714
        %v3163 = vmax.f32 %v3158, 0.0
        %v3164 = vmax.f32 %v3159, 0.0
        %v3165 = vmax.f32 %v3160, 0.0
        %v3166 = vmax.f32 %v3161, 0.0
        %v3167 = vmax.f32 %v3162, 0.0
        %v3168 = vmul.f32 %v3163, %v683
        %v3169 = vmul.f32 %v3164, %v687
        %v3170 = vmul.f32 %v3165, %v691
        %v3171 = vmul.f32 %v3166, %v695
        %v3172 = vmul.f32 %v3167, %v699
        %v3173 = vld [vmem:[%s9] sm:$0xff]
        %v3174 = vld [vmem:[%s10] sm:$0xff]
        %3176 = vset.pattern.permute.xlu0 0
        %3177 = vperm.xlu0 %3176, %v3174
        %v3178 = vpop.permute.xlu0 %3177
        %vm3180 = vcmask 64512
        %v3182 = vsel %vm3180, %v3173, 0
        %3184 = vmatprep.subr.mxu0 0.0
        %3185 = vmatpush1.msra.mxu0 0.0
        %3186 = vmatprep.subr.mxu0 0.0
        %3187 = vmatpush1.msra.mxu0 0.0
        %3188 = vmatprep.subr.mxu0 0.0
        %3189 = vmatpush1.msra.mxu0 0.0
        %3190 = vmatprep.subr.mxu0 0.0
        %3191 = vmatpush1.msra.mxu0 0.0
        %3192 = vmatprep.subr.mxu0 0.0
        %3193 = vmatpush1.msra.mxu0 0.0
        %3194 = vmatprep.subr.mxu0 0.0
        %3195 = vmatpush1.msra.mxu0 0.0
        %3196 = vmatprep.subr.mxu0 0.0
        %3197 = vmatpush1.msra.mxu0 0.0
        %3198 = vmatprep.subr.mxu0 0.0
        %3199 = vmatpush1.msra.mxu0 0.0
        %3200 = vmatprep.subr.mxu0 0.0
        %3201 = vmatpush1.msra.mxu0 0.0
        %3202 = vmatprep.subr.mxu0 0.0
        %3203 = vmatpush1.msra.mxu0 0.0
        %3204 = vmatprep.subr.mxu0 0.0
        %3205 = vmatpush1.msra.mxu0 0.0
        %3206 = vmatprep.subr.mxu0 0.0
        %3207 = vmatpush1.msra.mxu0 0.0
        %3208 = vmatprep.subr.mxu0 0.0
        %3209 = vmatpush1.msra.mxu0 0.0
        %3210 = vmatprep.subr.mxu0 0.0
        %3211 = vmatpush1.msra.mxu0 0.0
        %3212 = vmatprep.subr.mxu0 0.0
        %3213 = vmatpush1.msra.mxu0 0.0
        %3214 = vmatprep.subr.mxu0 %v3169
        %3215 = vmatpush1.msra.mxu0 %v3168
        %3216 = vmatprep.subr.mxu0 0.0
        %3217 = vmatpush2.msra.mxu0 0.0
        %3218 = vmatprep.subr.mxu0 0.0
        %3219 = vmatpush2.msra.mxu0 0.0
        %3220 = vmatprep.subr.mxu0 0.0
        %3221 = vmatpush2.msra.mxu0 0.0
        %3222 = vmatprep.subr.mxu0 0.0
        %3223 = vmatpush2.msra.mxu0 0.0
        %3224 = vmatprep.subr.mxu0 0.0
        %3225 = vmatpush2.msra.mxu0 0.0
        %3226 = vmatprep.subr.mxu0 0.0
        %3227 = vmatpush2.msra.mxu0 0.0
        %3228 = vmatprep.subr.mxu0 0.0
        %3229 = vmatpush2.msra.mxu0 0.0
        %3230 = vmatprep.subr.mxu0 0.0
        %3231 = vmatpush2.msra.mxu0 0.0
        %3232 = vmatprep.subr.mxu0 0.0
        %3233 = vmatpush2.msra.mxu0 0.0
        %3234 = vmatprep.subr.mxu0 0.0
        %3235 = vmatpush2.msra.mxu0 0.0
        %3236 = vmatprep.subr.mxu0 0.0
        %3237 = vmatpush2.msra.mxu0 0.0
        %3238 = vmatprep.subr.mxu0 0.0
        %3239 = vmatpush2.msra.mxu0 0.0
        %3240 = vmatprep.subr.mxu0 0.0
        %3241 = vmatpush2.msra.mxu0 0.0
        %3242 = vmatprep.subr.mxu0 0.0
        %3243 = vmatpush2.msra.mxu0 0.0
        %3244 = vmatprep.subr.mxu0 0.0
        %3245 = vmatpush2.msra.mxu0 0.0
        %3246 = vmatprep.subr.mxu0 0.0
        %3247 = vmatpush2.msra.mxu0 0.0
        %3248 = vmatprep.mubr.f32.mxu0 0.0
        %3249 = vmatmul.mubr.f32.gmra.mxu0 %v3182
        %v3250 = vpop.f32.mrf.mxu0
        %v3251 = vadd.f32 %v3178, %v3250
        %v3252 = vpop.f32.mrf.mxu0
        %v3253 = vadd.f32 %v3178, %v3252
        %3254 = vdwg.mxu0
        %3255 = vmatprep.subr.mxu0 0.0
        %3256 = vmatpush1.msra.mxu0 0.0
        %3257 = vmatprep.subr.mxu0 0.0
        %3258 = vmatpush1.msra.mxu0 0.0
        %3259 = vmatprep.subr.mxu0 0.0
        %3260 = vmatpush1.msra.mxu0 0.0
        %3261 = vmatprep.subr.mxu0 0.0
        %3262 = vmatpush1.msra.mxu0 0.0
        %3263 = vmatprep.subr.mxu0 0.0
        %3264 = vmatpush1.msra.mxu0 0.0
        %3265 = vmatprep.subr.mxu0 0.0
        %3266 = vmatpush1.msra.mxu0 0.0
        %3267 = vmatprep.subr.mxu0 0.0
        %3268 = vmatpush1.msra.mxu0 0.0
        %3269 = vmatprep.subr.mxu0 0.0
        %3270 = vmatpush1.msra.mxu0 0.0
        %3271 = vmatprep.subr.mxu0 0.0
        %3272 = vmatpush1.msra.mxu0 0.0
        %3273 = vmatprep.subr.mxu0 0.0
        %3274 = vmatpush1.msra.mxu0 0.0
        %3275 = vmatprep.subr.mxu0 0.0
        %3276 = vmatpush1.msra.mxu0 0.0
        %3277 = vmatprep.subr.mxu0 0.0
        %3278 = vmatpush1.msra.mxu0 0.0
        %3279 = vmatprep.subr.mxu0 0.0
        %3280 = vmatpush1.msra.mxu0 0.0
        %3281 = vmatprep.subr.mxu0 0.0
        %3282 = vmatpush1.msra.mxu0 0.0
        %3283 = vmatprep.subr.mxu0 0.0
        %3284 = vmatpush1.msra.mxu0 0.0
        %3285 = vmatprep.subr.mxu0 %v3171
        %3286 = vmatpush1.msra.mxu0 %v3170
        %3287 = vmatprep.subr.mxu0 0.0
        %3288 = vmatpush2.msra.mxu0 0.0
        %3289 = vmatprep.subr.mxu0 0.0
        %3290 = vmatpush2.msra.mxu0 0.0
        %3291 = vmatprep.subr.mxu0 0.0
        %3292 = vmatpush2.msra.mxu0 0.0
        %3293 = vmatprep.subr.mxu0 0.0
        %3294 = vmatpush2.msra.mxu0 0.0
        %3295 = vmatprep.subr.mxu0 0.0
        %3296 = vmatpush2.msra.mxu0 0.0
        %3297 = vmatprep.subr.mxu0 0.0
        %3298 = vmatpush2.msra.mxu0 0.0
        %3299 = vmatprep.subr.mxu0 0.0
        %3300 = vmatpush2.msra.mxu0 0.0
        %3301 = vmatprep.subr.mxu0 0.0
        %3302 = vmatpush2.msra.mxu0 0.0
        %3303 = vmatprep.subr.mxu0 0.0
        %3304 = vmatpush2.msra.mxu0 0.0
        %3305 = vmatprep.subr.mxu0 0.0
        %3306 = vmatpush2.msra.mxu0 0.0
        %3307 = vmatprep.subr.mxu0 0.0
        %3308 = vmatpush2.msra.mxu0 0.0
        %3309 = vmatprep.subr.mxu0 0.0
        %3310 = vmatpush2.msra.mxu0 0.0
        %3311 = vmatprep.subr.mxu0 0.0
        %3312 = vmatpush2.msra.mxu0 0.0
        %3313 = vmatprep.subr.mxu0 0.0
        %3314 = vmatpush2.msra.mxu0 0.0
        %3315 = vmatprep.subr.mxu0 0.0
        %3316 = vmatpush2.msra.mxu0 0.0
        %3317 = vmatprep.subr.mxu0 0.0
        %3318 = vmatpush2.msra.mxu0 0.0
        %3319 = vmatprep.mubr.f32.mxu0 0.0
        %3320 = vmatmul.mubr.f32.gmra.mxu0 %v3182
        %v3321 = vpop.f32.mrf.mxu0
        %v3322 = vadd.f32 %v3178, %v3321
        %v3323 = vpop.f32.mrf.mxu0
        %v3324 = vadd.f32 %v3178, %v3323
        %3325 = vdwg.mxu0
        %3326 = vmatprep.subr.mxu0 0.0
        %3327 = vmatpush1.msra.mxu0 0.0
        %3328 = vmatprep.subr.mxu0 0.0
        %3329 = vmatpush1.msra.mxu0 0.0
        %3330 = vmatprep.subr.mxu0 0.0
        %3331 = vmatpush1.msra.mxu0 0.0
        %3332 = vmatprep.subr.mxu0 0.0
        %3333 = vmatpush1.msra.mxu0 0.0
        %3334 = vmatprep.subr.mxu0 0.0
        %3335 = vmatpush1.msra.mxu0 0.0
        %3336 = vmatprep.subr.mxu0 0.0
        %3337 = vmatpush1.msra.mxu0 0.0
        %3338 = vmatprep.subr.mxu0 0.0
        %3339 = vmatpush1.msra.mxu0 0.0
        %3340 = vmatprep.subr.mxu0 0.0
        %3341 = vmatpush1.msra.mxu0 0.0
        %3342 = vmatprep.subr.mxu0 0.0
        %3343 = vmatpush1.msra.mxu0 0.0
        %3344 = vmatprep.subr.mxu0 0.0
        %3345 = vmatpush1.msra.mxu0 0.0
        %3346 = vmatprep.subr.mxu0 0.0
        %3347 = vmatpush1.msra.mxu0 0.0
        %3348 = vmatprep.subr.mxu0 0.0
        %3349 = vmatpush1.msra.mxu0 0.0
        %3350 = vmatprep.subr.mxu0 0.0
        %3351 = vmatpush1.msra.mxu0 0.0
        %3352 = vmatprep.subr.mxu0 0.0
        %3353 = vmatpush1.msra.mxu0 0.0
        %3354 = vmatprep.subr.mxu0 0.0
        %3355 = vmatpush1.msra.mxu0 0.0
        %3356 = vmatprep.subr.mxu0 0.0
        %3357 = vmatpush1.msra.mxu0 %v3172
        %3358 = vmatprep.subr.mxu0 0.0
        %3359 = vmatpush2.msra.mxu0 0.0
        %3360 = vmatprep.subr.mxu0 0.0
        %3361 = vmatpush2.msra.mxu0 0.0
        %3362 = vmatprep.subr.mxu0 0.0
        %3363 = vmatpush2.msra.mxu0 0.0
        %3364 = vmatprep.subr.mxu0 0.0
        %3365 = vmatpush2.msra.mxu0 0.0
        %3366 = vmatprep.subr.mxu0 0.0
        %3367 = vmatpush2.msra.mxu0 0.0
        %3368 = vmatprep.subr.mxu0 0.0
        %3369 = vmatpush2.msra.mxu0 0.0
        %3370 = vmatprep.subr.mxu0 0.0
        %3371 = vmatpush2.msra.mxu0 0.0
        %3372 = vmatprep.subr.mxu0 0.0
        %3373 = vmatpush2.msra.mxu0 0.0
        %3374 = vmatprep.subr.mxu0 0.0
        %3375 = vmatpush2.msra.mxu0 0.0
        %3376 = vmatprep.subr.mxu0 0.0
        %3377 = vmatpush2.msra.mxu0 0.0
        %3378 = vmatprep.subr.mxu0 0.0
        %3379 = vmatpush2.msra.mxu0 0.0
        %3380 = vmatprep.subr.mxu0 0.0
        %3381 = vmatpush2.msra.mxu0 0.0
        %3382 = vmatprep.subr.mxu0 0.0
        %3383 = vmatpush2.msra.mxu0 0.0
        %3384 = vmatprep.subr.mxu0 0.0
        %3385 = vmatpush2.msra.mxu0 0.0
        %3386 = vmatprep.subr.mxu0 0.0
        %3387 = vmatpush2.msra.mxu0 0.0
        %3388 = vmatprep.subr.mxu0 0.0
        %3389 = vmatpush2.msra.mxu0 0.0
        %3390 = vmatprep.mubr.f32.mxu0 0.0
        %3391 = vmatmul.mubr.f32.gmra.mxu0 %v3182
        %v3392 = vpop.f32.mrf.mxu0
        %v3393 = vadd.f32 %v3178, %v3392
        %v3394 = vpop.f32.mrf.mxu0
        %3395 = vdwg.mxu0
        %3396 = vst [vmem:[%s444] sm:$0xff] %v3251
        %3397 = vst [vmem:[%s444 + $0x8] sm:$0xff] %v3253
        %3398 = vst [vmem:[%s444 + $0x10] sm:$0xff] %v3322
        %3399 = vst [vmem:[%s444 + $0x18] sm:$0xff] %v3324
        %3400 = vst.msk [vmem:[%s444 + $0x20] sm:$0xff] %vm2862, %v3393
        %s3401 = sand.u32 %s280, 1
        %s3402 = scalar_lea.sflag [#allocation4], %s3401
        %s3403 = sand.u32 %s280, 1
        %s3404 = smul.addr %s3403, 40
        %s3405 = scalar_lea.vmem [#allocation7], %s3404
        // Predicated region
        $region73: #{tpu_custom_call.1} parent=63 // pred_check
          %p3406 = pneg %p290
        $region74: #{tpu_custom_call.1} parent=63 // pred_check_branch
          %3408 = sbr.rel (%p3406) target = $region76
        $region75: #{tpu_custom_call.1} parent=63 // pred_region
          %s3410 = ssub.s32 640, 640
          %3411 = vsyncadd %s3402, %s3410
          %s3412 = smul.addr %s31, 5
          %s3413 = smul.addr %s3412, 128
          %s3414 = scalar_lea.hbm %s11, %s3413
          %s3416 = sshll.u32 %s3405, 4
          %s3417 = int_to_ptr.vmem [resolvable:$true] %s3416
          %3419 = dma.vmem_to_hbm [thread:$0]  %s3417, 640, %s3414, %s3402
        $region76: #{tpu_custom_call.1} parent=63 // pred_fallthru
          _
      $region64: #{tpu_custom_call.1} parent=5 // pred_fallthru
        _
      %p3420 = scmp.le.s32.totalorder 2, %s26
      // Predicated region
      $region77: #{tpu_custom_call.1} parent=5 // pred_check
        %p3421 = pneg %p3420
      $region78: #{tpu_custom_call.1} parent=5 // pred_check_branch
        %3423 = sbr.rel (%p3421) target = $region80
      $region79: #{tpu_custom_call.1} parent=5 // pred_region
        %s3424 = ssub.s32 %s26, 2
        // Predicated region
        $region81: #{tpu_custom_call.1} parent=79 // pred_check
          %p3425 = pneg %p296
        $region82: #{tpu_custom_call.1} parent=79 // pred_check_branch
          %3427 = sbr.rel (%p3425) target = $region84
        $region83: #{tpu_custom_call.1} parent=79 // pred_region
          %s3428 = sand.u32 %s281, 1
          %s3429 = scalar_lea.sflag [#allocation4], %s3428
          %s3430 = sand.u32 %s281, 1
          %s3431 = smul.addr %s3430, 40
          %s3432 = scalar_lea.vmem [#allocation7], %s3431
          %3433 = dma.done %s3429, 640
        $region84: #{tpu_custom_call.1} parent=79 // pred_fallthru
          _
      $region80: #{tpu_custom_call.1} parent=5 // pred_fallthru
        _
    $region6: #{tpu_custom_call.1} parent=1 // loop_footer
      %s30 = sadd.s32 1, %s26
    $region7: #{tpu_custom_call.1} parent=1 // loop_footer_branch
      %25 = sbr.rel target = $region3
    $region8: #{tpu_custom_call.1} parent=1 // loop_exit
      _
    %3434 = vsyncpa [#allocation3], 1
    %s3435 = scalar_lea.sflag [#allocation3], 1
    %3436 = vsyncpa %s3435, 1
    %3437 = vsyncpa [#allocation6], 1
    %s3438 = scalar_lea.sflag [#allocation6], 1
    %3439 = vsyncpa %s3438, 1
    %3440 = vsyncpa [#allocation4], 1
    %s3441 = scalar_lea.sflag [#allocation4], 1
    %3442 = vsyncpa %s3441, 1

</llo_original>
